<compile_context>
chip_gen: v5e
topology: v5e:2x2
jax: 0.10.0
libtpu: 0.0.40
codegen_flags: <defaults>
</compile_context>

<pallas_src>
import functools

import jax
import jax.numpy as jnp
from jax.experimental import pallas as pl
from jax.experimental.pallas import tpu as pltpu


# ----------------------------------------------------------------------------
# Kernels
# ----------------------------------------------------------------------------
def _conv_tile(x_ref, w_ref, *, th, width, cin, n_row_tiles, mxu_dtype):
    """3x3 'same' conv for one Th-row tile of the current batch image.

    x_ref : (H+2, W+2, Cin) spatially padded image (bf16), one batch element
    w_ref : (9*Cin, Cout)   weights with the 3x3 taps stacked along K (bf16)
    returns (Th*W, Cout) f32 conv output for rows [t*Th, t*Th + Th).
    """
    if n_row_tiles == 1:
        x = x_ref[...]
    else:
        row0 = pl.multiple_of(pl.program_id(1) * th, th)
        x = x_ref[pl.ds(row0, th + 2), :, :]
    # The relayout-heavy im2col (slices + 9-way concat) runs in f32; the MXU
    # operands are cast to bf16 right before the single K=9*Cin matmul.
    x = x.astype(jnp.float32)
    taps = [x[dy:dy + th, dx:dx + width, :] for dy in range(3) for dx in range(3)]
    patches = jnp.concatenate(taps, axis=-1).reshape(th * width, 9 * cin)
    # TODO(synk): for very small Cin the 9-way concat is vld/XLU bound; a
    # lane-contiguous (Th, (W+2)*Cin) view with 3 matmuls per dy (or per-tap
    # MRB accumulation on v7x) would remove the relayout if profiling shows it.
    return jnp.dot(patches.astype(mxu_dtype), w_ref[...],
                   preferred_element_type=jnp.float32)


def conv_stats_kernel(x_ref, w_ref, stats_ref, *, th, width, cin, n_row_tiles,
                      mxu_dtype):
    """Pass 1: per-(batch, row-tile) BN partial stats; no conv writeback to HBM.

    stats_ref : (2, Cout) f32 — row 0: sum(conv), row 1: sum((conv - tile_mean)^2)
    """
    acc = _conv_tile(x_ref, w_ref, th=th, width=width, cin=cin,
                     n_row_tiles=n_row_tiles, mxu_dtype=mxu_dtype)
    s = jnp.sum(acc, axis=0, keepdims=True)
    d = acc - s * (1.0 / (th * width))       # centered -> no E[x^2]-mean^2 cancellation
    m2 = jnp.sum(d * d, axis=0, keepdims=True)
    stats_ref[...] = jnp.concatenate([s, m2], axis=0)


def conv_bn_relu_kernel(x_ref, w_ref, scale_ref, shift_ref, o_ref, *, th, width,
                        cin, n_row_tiles, mxu_dtype):
    """Pass 2: recompute the conv tile in VMEM, fused BN FMA + ReLU store."""
    acc = _conv_tile(x_ref, w_ref, th=th, width=width, cin=cin,
                     n_row_tiles=n_row_tiles, mxu_dtype=mxu_dtype)
    o_ref[...] = jnp.maximum(
        acc * scale_ref[...] + shift_ref[...], 0.0).astype(o_ref.dtype)


# ----------------------------------------------------------------------------
# Tiling helpers
# ----------------------------------------------------------------------------
def _pick_row_tile(h, width, batch, target_rows=1024):
    """Largest Th dividing H with Th*W <= target_rows and Th*W % 8 == 0.

    Targets an MXU-friendly M while bounding the im2col VMEM footprint.  If
    batch == 1, prefer Th < H so the parallel grid has >= 2 steps (keeps both
    v7x TensorCores busy)."""
    cands = [d for d in range(1, h + 1)
             if h % d == 0 and (d * width) % 8 == 0 and d * width <= target_rows]
    if not cands:
        return h                      # full-image block: always layout-legal
    if batch == 1 and len(cands) > 1 and cands[-1] == h:
        return cands[-2]
    return cands[-1]


def _vmem_limit_bytes(h, width, cin, cout, th, mxu_itemsize):
    in_block = (h + 2) * (width + 2) * cin * mxu_itemsize
    w_bytes = 9 * cin * cout * mxu_itemsize
    out_block = th * width * cout * 4
    scratch = th * width * (9 * cin + cout) * 4      # im2col patches + f32 acc
    need = 2 * (in_block + out_block) + w_bytes + scratch
    return int(min(max(4 * need, 32 * 1024 * 1024), 64 * 1024 * 1024))


# ----------------------------------------------------------------------------
# Wrapper
# ----------------------------------------------------------------------------
def conv_bn_relu(x_nchw, w_oihw, conv_bias, gamma, beta, *, eps=1e-5,
                 mxu_dtype=jnp.bfloat16, target_rows=1024):
    # Conv bias cancels exactly under training-mode BatchNorm (mean shifts by
    # the same per-channel constant, variance unchanged) -> drop the add.
    del conv_bias

    B, Cin, H, W = x_nchw.shape
    Cout = w_oihw.shape[0]
    itemsize = jnp.dtype(mxu_dtype).itemsize

    Th = _pick_row_tile(H, W, B, target_rows)
    nH = H // Th

    # ---- wrapper glue: single fused pad+cast sweep, no halo copies ---------
    # TODO(synk): the spatial pad could be folded into the kernel (boundary
    # masking / manual halo DMA) to save this one input sweep of HBM.
    xp = jnp.pad(jnp.transpose(x_nchw, (0, 2, 3, 1)).astype(mxu_dtype),
                 ((0, 0), (1, 1), (1, 1), (0, 0)))          # (B, H+2, W+2, Cin)
    # OIHW -> (kh, kw, Cin, Cout) -> (9*Cin, Cout); tap order matches the kernel.
    w_k = jnp.transpose(w_oihw, (2, 3, 1, 0)).reshape(9 * Cin, Cout).astype(mxu_dtype)

    kern_kw = dict(th=Th, width=W, cin=Cin, n_row_tiles=nH, mxu_dtype=mxu_dtype)
    in_spec_x = pl.BlockSpec((None, H + 2, W + 2, Cin), lambda b, t: (b, 0, 0, 0))
    in_spec_w = pl.BlockSpec((9 * Cin, Cout), lambda b, t: (0, 0))
    params = pltpu.CompilerParams(
        dimension_semantics=("parallel", "parallel"),
        vmem_limit_bytes=_vmem_limit_bytes(H, W, Cin, Cout, Th, itemsize))

    conv_flops = 2 * B * H * W * 9 * Cin * Cout
    xp_bytes = B * (H + 2) * (W + 2) * Cin * itemsize
    w_bytes = 9 * Cin * Cout * itemsize

    # ---- pass 1: conv (VMEM only) + per-tile channel stats ------------------
    stats = pl.pallas_call(
        functools.partial(conv_stats_kernel, **kern_kw),
        out_shape=jax.ShapeDtypeStruct((B * nH, 2, Cout), jnp.float32),
        grid=(B, nH),
        in_specs=[in_spec_x, in_spec_w],
        out_specs=pl.BlockSpec((None, 2, Cout), lambda b, t: (b * nH + t, 0, 0)),
        compiler_params=params,
        cost_estimate=pl.CostEstimate(
            flops=conv_flops + 4 * B * H * W * Cout,
            transcendentals=0,
            bytes_accessed=xp_bytes + w_bytes + B * nH * 2 * Cout * 4),
    )(xp, w_k)

    # ---- tiny global combine (Chan-style) + BN affine fold ------------------
    n_tile = Th * W
    n_total = B * H * W
    sums, m2s = stats[:, 0, :], stats[:, 1, :]
    mean = jnp.sum(sums, axis=0) / n_total
    tile_mean = sums / n_tile
    m2 = jnp.sum(m2s, axis=0) + n_tile * jnp.sum((tile_mean - mean) ** 2, axis=0)
    var = m2 / n_total                               # biased, matches BN training mode
    inv_std = jax.lax.rsqrt(var + eps)
    g = gamma.astype(jnp.float32)
    scale = (g * inv_std).reshape(1, Cout)
    shift = (beta.astype(jnp.float32) - mean * g * inv_std).reshape(1, Cout)
    # TODO(synk): running_mean/running_var buffer updates (module state) omitted;
    # the training-mode forward output does not depend on them.

    # ---- pass 2: recompute conv + fused normalize + ReLU --------------------
    y = pl.pallas_call(
        functools.partial(conv_bn_relu_kernel, **kern_kw),
        out_shape=jax.ShapeDtypeStruct((B, H * W, Cout), x_nchw.dtype),
        grid=(B, nH),
        in_specs=[in_spec_x, in_spec_w,
                  pl.BlockSpec((1, Cout), lambda b, t: (0, 0)),
                  pl.BlockSpec((1, Cout), lambda b, t: (0, 0))],
        out_specs=pl.BlockSpec((None, Th * W, Cout), lambda b, t: (b, t, 0)),
        compiler_params=params,
        cost_estimate=pl.CostEstimate(
            flops=conv_flops + 3 * B * H * W * Cout,
            transcendentals=0,
            bytes_accessed=xp_bytes + w_bytes + B * H * W * Cout * 4),
    )(xp, w_k, scale, shift)

    y = y.reshape(B, H, W, Cout)
    return jnp.transpose(y, (0, 3, 1, 2))            # back to NCHW


# ----------------------------------------------------------------------------
# Pure-JAX reference (f32 everywhere)
# ----------------------------------------------------------------------------
def reference(x_nchw, w_oihw, conv_bias, gamma, beta):
    y = jax.lax.conv_general_dilated(
        x_nchw, w_oihw, window_strides=(1, 1), padding=((1, 1), (1, 1)),
        dimension_numbers=("NCHW", "OIHW", "NCHW"))
    y = y + conv_bias[None, :, None, None]
    mean = jnp.mean(y, axis=(0, 2, 3), keepdims=True)
    var = jnp.mean((y - mean) ** 2, axis=(0, 2, 3), keepdims=True)
    y = (y - mean) / jnp.sqrt(var + 1e-5)
    y = y * gamma[None, :, None, None] + beta[None, :, None, None]
    return jnp.maximum(y, 0.0)


if __name__ == "__main__":
    in_channels, out_channels = 4, 8
    B, H, W = 2, 16, 16

    key = jax.random.PRNGKey(0)
    kx, kw, kb = jax.random.split(key, 3)

    x = jax.random.normal(kx, (B, in_channels, H, W), jnp.float32)

    # Deterministic parameter init (Conv2d kaiming-uniform-like bounds; BN defaults).
    fan_in = in_channels * 3 * 3
    bound = 1.0 / (fan_in ** 0.5)
    w = jax.random.uniform(kw, (out_channels, in_channels, 3, 3),
                           jnp.float32, -bound, bound)
    conv_bias = jax.random.uniform(kb, (out_channels,), jnp.float32, -bound, bound)
    gamma = jnp.ones((out_channels,), jnp.float32)   # BatchNorm2d default weight
    beta = jnp.zeros((out_channels,), jnp.float32)   # BatchNorm2d default bias

    fwd = jax.jit(conv_bn_relu)
    out = jax.block_until_ready(fwd(x, w, conv_bias, gamma, beta))
    ref = reference(x, w, conv_bias, gamma, beta)

    assert out.shape == (B, out_channels, H, W)
    # bf16 MXU operands -> compare to the all-f32 reference with a bf16-level tolerance.
    err = float(jnp.max(jnp.abs(out - ref)))
    assert jnp.allclose(out, ref, rtol=2e-2, atol=2e-2), err
    print("KERNEL_OK")
</pallas_src>

<mosaic_0001>
module attributes {stable_mosaic.version = 11 : i64} {
  func.func @conv_bn_relu_kernel(%arg0: i32, %arg1: i32, %arg2: memref<1x18x18x4xbf16, #tpu.memory_space<vmem>>, %arg3: memref<36x8xbf16, #tpu.memory_space<vmem>>, %arg4: memref<1x8xf32, #tpu.memory_space<vmem>>, %arg5: memref<1x8xf32, #tpu.memory_space<vmem>>, %arg6: memref<1x256x8xf32, #tpu.memory_space<vmem>>) attributes {dimension_semantics = [#tpu.dimension_semantics<parallel>, #tpu.dimension_semantics<parallel>], iteration_bounds = array<i64: 2, 1>, scalar_prefetch = 0 : i64, scratch_operands = 0 : i64, tpu.core_type = #tpu.core_type<tc>, window_params = [{transform_indices = @transform_0, window_bounds = array<i64: 1, 18, 18, 4>}, {pipeline_mode = #tpu.pipeline_mode<synchronous>, transform_indices = @transform_1, window_bounds = array<i64: 36, 8>}, {pipeline_mode = #tpu.pipeline_mode<synchronous>, transform_indices = @transform_2, window_bounds = array<i64: 1, 8>}, {pipeline_mode = #tpu.pipeline_mode<synchronous>, transform_indices = @transform_3, window_bounds = array<i64: 1, 8>}, {transform_indices = @transform_4, window_bounds = array<i64: 1, 256, 8>}]} {
    %c0 = arith.constant 0 : index
    %c0_0 = arith.constant 0 : index
    %c0_1 = arith.constant 0 : index
    %c0_2 = arith.constant 0 : index
    %0 = vector.load %arg2[%c0, %c0_0, %c0_1, %c0_2] : memref<1x18x18x4xbf16, #tpu.memory_space<vmem>>, vector<1x18x18x4xbf16>
    %1 = vector.shape_cast %0 : vector<1x18x18x4xbf16> to vector<18x18x4xbf16>
    %2 = arith.extf %1 : vector<18x18x4xbf16> to vector<18x18x4xf32>
    %3 = vector.extract_strided_slice %2 {offsets = [0, 0, 0], sizes = [16, 16, 4], strides = [1, 1, 1]} : vector<18x18x4xf32> to vector<16x16x4xf32>
    %4 = vector.extract_strided_slice %2 {offsets = [0, 1, 0], sizes = [16, 16, 4], strides = [1, 1, 1]} : vector<18x18x4xf32> to vector<16x16x4xf32>
    %5 = vector.extract_strided_slice %2 {offsets = [0, 2, 0], sizes = [16, 16, 4], strides = [1, 1, 1]} : vector<18x18x4xf32> to vector<16x16x4xf32>
    %6 = vector.extract_strided_slice %2 {offsets = [1, 0, 0], sizes = [16, 16, 4], strides = [1, 1, 1]} : vector<18x18x4xf32> to vector<16x16x4xf32>
    %7 = vector.extract_strided_slice %2 {offsets = [1, 1, 0], sizes = [16, 16, 4], strides = [1, 1, 1]} : vector<18x18x4xf32> to vector<16x16x4xf32>
    %8 = vector.extract_strided_slice %2 {offsets = [1, 2, 0], sizes = [16, 16, 4], strides = [1, 1, 1]} : vector<18x18x4xf32> to vector<16x16x4xf32>
    %9 = vector.extract_strided_slice %2 {offsets = [2, 0, 0], sizes = [16, 16, 4], strides = [1, 1, 1]} : vector<18x18x4xf32> to vector<16x16x4xf32>
    %10 = vector.extract_strided_slice %2 {offsets = [2, 1, 0], sizes = [16, 16, 4], strides = [1, 1, 1]} : vector<18x18x4xf32> to vector<16x16x4xf32>
    %11 = vector.extract_strided_slice %2 {offsets = [2, 2, 0], sizes = [16, 16, 4], strides = [1, 1, 1]} : vector<18x18x4xf32> to vector<16x16x4xf32>
    %12 = tpu.concatenate %3, %4, %5, %6, %7, %8, %9, %10, %11 in 2 : vector<16x16x4xf32>, vector<16x16x4xf32>, vector<16x16x4xf32>, vector<16x16x4xf32>, vector<16x16x4xf32>, vector<16x16x4xf32>, vector<16x16x4xf32>, vector<16x16x4xf32>, vector<16x16x4xf32> -> vector<16x16x36xf32>
    %13 = vector.shape_cast %12 : vector<16x16x36xf32> to vector<256x36xf32>
    %14 = arith.truncf %13 : vector<256x36xf32> to vector<256x36xbf16>
    %c0_3 = arith.constant 0 : index
    %c0_4 = arith.constant 0 : index
    %15 = vector.load %arg3[%c0_3, %c0_4] : memref<36x8xbf16, #tpu.memory_space<vmem>>, vector<36x8xbf16>
    %cst = arith.constant dense<0.000000e+00> : vector<256x8xf32>
    %16 = tpu.matmul %14, %15, %cst {dimension_numbers = #tpu.dot_dimension_numbers<[1], [0], [0], [1], [0, 0, 1, 1], [], []>} : vector<256x36xbf16>, vector<36x8xbf16>, vector<256x8xf32> -> vector<256x8xf32>
    %c0_5 = arith.constant 0 : index
    %c0_6 = arith.constant 0 : index
    %17 = vector.load %arg4[%c0_5, %c0_6] : memref<1x8xf32, #tpu.memory_space<vmem>>, vector<1x8xf32>
    %18 = vector.broadcast %17 : vector<1x8xf32> to vector<256x8xf32>
    %19 = arith.mulf %16, %18 : vector<256x8xf32>
    %c0_7 = arith.constant 0 : index
    %c0_8 = arith.constant 0 : index
    %20 = vector.load %arg5[%c0_7, %c0_8] : memref<1x8xf32, #tpu.memory_space<vmem>>, vector<1x8xf32>
    %21 = vector.broadcast %20 : vector<1x8xf32> to vector<256x8xf32>
    %22 = arith.addf %19, %21 : vector<256x8xf32>
    %cst_9 = arith.constant 0.000000e+00 : f32
    %23 = vector.broadcast %cst_9 : f32 to vector<256x8xf32>
    %24 = arith.maximumf %22, %23 : vector<256x8xf32>
    %c0_10 = arith.constant 0 : index
    %c0_11 = arith.constant 0 : index
    %c0_12 = arith.constant 0 : index
    %25 = vector.load %arg6[%c0_10, %c0_11, %c0_12] : memref<1x256x8xf32, #tpu.memory_space<vmem>>, vector<1x256x8xf32>
    %26 = vector.shape_cast %25 : vector<1x256x8xf32> to vector<256x8xf32>
    %27 = vector.shape_cast %24 : vector<256x8xf32> to vector<1x256x8xf32>
    tpu.vector_store %arg6[%c0_10, %c0_11, %c0_12], %27 {strides = array<i32>} : memref<1x256x8xf32, #tpu.memory_space<vmem>>, vector<1x256x8xf32>,
    return
  }
  func.func @transform_0(%arg0: i32, %arg1: i32) -> (i32, i32, i32, i32) {
    %c0_i32 = arith.constant 0 : i32
    %c0_i32_0 = arith.constant 0 : i32
    %c0_i32_1 = arith.constant 0 : i32
    %c0_i32_2 = arith.constant 0 : i32
    return %arg0, %c0_i32, %c0_i32_0, %c0_i32_1 : i32, i32, i32, i32
  }
  func.func @transform_1(%arg0: i32, %arg1: i32) -> (i32, i32) {
    %c0_i32 = arith.constant 0 : i32
    %c0_i32_0 = arith.constant 0 : i32
    %c0_i32_1 = arith.constant 0 : i32
    return %c0_i32, %c0_i32_0 : i32, i32
  }
  func.func @transform_2(%arg0: i32, %arg1: i32) -> (i32, i32) {
    %c0_i32 = arith.constant 0 : i32
    %c0_i32_0 = arith.constant 0 : i32
    %c0_i32_1 = arith.constant 0 : i32
    return %c0_i32, %c0_i32_0 : i32, i32
  }
  func.func @transform_3(%arg0: i32, %arg1: i32) -> (i32, i32) {
    %c0_i32 = arith.constant 0 : i32
    %c0_i32_0 = arith.constant 0 : i32
    %c0_i32_1 = arith.constant 0 : i32
    return %c0_i32, %c0_i32_0 : i32, i32
  }
  func.func @transform_4(%arg0: i32, %arg1: i32) -> (i32, i32, i32) {
    %c0_i32 = arith.constant 0 : i32
    %c0_i32_0 = arith.constant 0 : i32
    return %arg0, %arg1, %c0_i32 : i32, i32, i32
  }
}

module attributes {stable_mosaic.version = 11 : i64} {
  func.func @conv_stats_kernel(%arg0: i32, %arg1: i32, %arg2: memref<1x18x18x4xbf16, #tpu.memory_space<vmem>>, %arg3: memref<36x8xbf16, #tpu.memory_space<vmem>>, %arg4: memref<1x2x8xf32, #tpu.memory_space<vmem>>) attributes {dimension_semantics = [#tpu.dimension_semantics<parallel>, #tpu.dimension_semantics<parallel>], iteration_bounds = array<i64: 2, 1>, scalar_prefetch = 0 : i64, scratch_operands = 0 : i64, tpu.core_type = #tpu.core_type<tc>, window_params = [{transform_indices = @transform_0, window_bounds = array<i64: 1, 18, 18, 4>}, {pipeline_mode = #tpu.pipeline_mode<synchronous>, transform_indices = @transform_1, window_bounds = array<i64: 36, 8>}, {transform_indices = @transform_2, window_bounds = array<i64: 1, 2, 8>}]} {
    %c0 = arith.constant 0 : index
    %c0_0 = arith.constant 0 : index
    %c0_1 = arith.constant 0 : index
    %c0_2 = arith.constant 0 : index
    %0 = vector.load %arg2[%c0, %c0_0, %c0_1, %c0_2] : memref<1x18x18x4xbf16, #tpu.memory_space<vmem>>, vector<1x18x18x4xbf16>
    %1 = vector.shape_cast %0 : vector<1x18x18x4xbf16> to vector<18x18x4xbf16>
    %2 = arith.extf %1 : vector<18x18x4xbf16> to vector<18x18x4xf32>
    %3 = vector.extract_strided_slice %2 {offsets = [0, 0, 0], sizes = [16, 16, 4], strides = [1, 1, 1]} : vector<18x18x4xf32> to vector<16x16x4xf32>
    %4 = vector.extract_strided_slice %2 {offsets = [0, 1, 0], sizes = [16, 16, 4], strides = [1, 1, 1]} : vector<18x18x4xf32> to vector<16x16x4xf32>
    %5 = vector.extract_strided_slice %2 {offsets = [0, 2, 0], sizes = [16, 16, 4], strides = [1, 1, 1]} : vector<18x18x4xf32> to vector<16x16x4xf32>
    %6 = vector.extract_strided_slice %2 {offsets = [1, 0, 0], sizes = [16, 16, 4], strides = [1, 1, 1]} : vector<18x18x4xf32> to vector<16x16x4xf32>
    %7 = vector.extract_strided_slice %2 {offsets = [1, 1, 0], sizes = [16, 16, 4], strides = [1, 1, 1]} : vector<18x18x4xf32> to vector<16x16x4xf32>
    %8 = vector.extract_strided_slice %2 {offsets = [1, 2, 0], sizes = [16, 16, 4], strides = [1, 1, 1]} : vector<18x18x4xf32> to vector<16x16x4xf32>
    %9 = vector.extract_strided_slice %2 {offsets = [2, 0, 0], sizes = [16, 16, 4], strides = [1, 1, 1]} : vector<18x18x4xf32> to vector<16x16x4xf32>
    %10 = vector.extract_strided_slice %2 {offsets = [2, 1, 0], sizes = [16, 16, 4], strides = [1, 1, 1]} : vector<18x18x4xf32> to vector<16x16x4xf32>
    %11 = vector.extract_strided_slice %2 {offsets = [2, 2, 0], sizes = [16, 16, 4], strides = [1, 1, 1]} : vector<18x18x4xf32> to vector<16x16x4xf32>
    %12 = tpu.concatenate %3, %4, %5, %6, %7, %8, %9, %10, %11 in 2 : vector<16x16x4xf32>, vector<16x16x4xf32>, vector<16x16x4xf32>, vector<16x16x4xf32>, vector<16x16x4xf32>, vector<16x16x4xf32>, vector<16x16x4xf32>, vector<16x16x4xf32>, vector<16x16x4xf32> -> vector<16x16x36xf32>
    %13 = vector.shape_cast %12 : vector<16x16x36xf32> to vector<256x36xf32>
    %14 = arith.truncf %13 : vector<256x36xf32> to vector<256x36xbf16>
    %c0_3 = arith.constant 0 : index
    %c0_4 = arith.constant 0 : index
    %15 = vector.load %arg3[%c0_3, %c0_4] : memref<36x8xbf16, #tpu.memory_space<vmem>>, vector<36x8xbf16>
    %cst = arith.constant dense<0.000000e+00> : vector<256x8xf32>
    %16 = tpu.matmul %14, %15, %cst {dimension_numbers = #tpu.dot_dimension_numbers<[1], [0], [0], [1], [0, 0, 1, 1], [], []>} : vector<256x36xbf16>, vector<36x8xbf16>, vector<256x8xf32> -> vector<256x8xf32>
    %cst_5 = arith.constant dense<0.000000e+00> : vector<8xf32>
    %17 = vector.multi_reduction <add>, %16, %cst_5 [0] : vector<256x8xf32> to vector<8xf32>
    %18 = vector.shape_cast %17 : vector<8xf32> to vector<1x8xf32>
    %cst_6 = arith.constant 3.906250e-03 : f32
    %19 = vector.broadcast %cst_6 : f32 to vector<1x8xf32>
    %20 = arith.mulf %18, %19 : vector<1x8xf32>
    %21 = vector.broadcast %20 : vector<1x8xf32> to vector<256x8xf32>
    %22 = arith.subf %16, %21 : vector<256x8xf32>
    %23 = arith.mulf %22, %22 : vector<256x8xf32>
    %cst_7 = arith.constant dense<0.000000e+00> : vector<8xf32>
    %24 = vector.multi_reduction <add>, %23, %cst_7 [0] : vector<256x8xf32> to vector<8xf32>
    %25 = vector.shape_cast %24 : vector<8xf32> to vector<1x8xf32>
    %26 = tpu.concatenate %18, %25 in 0 : vector<1x8xf32>, vector<1x8xf32> -> vector<2x8xf32>
    %c0_8 = arith.constant 0 : index
    %c0_9 = arith.constant 0 : index
    %c0_10 = arith.constant 0 : index
    %27 = vector.load %arg4[%c0_8, %c0_9, %c0_10] : memref<1x2x8xf32, #tpu.memory_space<vmem>>, vector<1x2x8xf32>
    %28 = vector.shape_cast %27 : vector<1x2x8xf32> to vector<2x8xf32>
    %29 = vector.shape_cast %26 : vector<2x8xf32> to vector<1x2x8xf32>
    tpu.vector_store %arg4[%c0_8, %c0_9, %c0_10], %29 {strides = array<i32>} : memref<1x2x8xf32, #tpu.memory_space<vmem>>, vector<1x2x8xf32>,
    return
  }
  func.func @transform_0(%arg0: i32, %arg1: i32) -> (i32, i32, i32, i32) {
    %c0_i32 = arith.constant 0 : i32
    %c0_i32_0 = arith.constant 0 : i32
    %c0_i32_1 = arith.constant 0 : i32
    %c0_i32_2 = arith.constant 0 : i32
    return %arg0, %c0_i32, %c0_i32_0, %c0_i32_1 : i32, i32, i32, i32
  }
  func.func @transform_1(%arg0: i32, %arg1: i32) -> (i32, i32) {
    %c0_i32 = arith.constant 0 : i32
    %c0_i32_0 = arith.constant 0 : i32
    %c0_i32_1 = arith.constant 0 : i32
    return %c0_i32, %c0_i32_0 : i32, i32
  }
  func.func @transform_2(%arg0: i32, %arg1: i32) -> (i32, i32, i32) {
    %c1_i32 = arith.constant 1 : i32
    %0 = arith.muli %arg0, %c1_i32 : i32
    %1 = arith.addi %0, %arg1 : i32
    %c0_i32 = arith.constant 0 : i32
    %c0_i32_0 = arith.constant 0 : i32
    %c0_i32_1 = arith.constant 0 : i32
    return %1, %c0_i32, %c0_i32_0 : i32, i32, i32
  }
}

</mosaic_0001>

<llo_original>
// kernel: conv_bn_relu.2
$region0: #{conv_bn_relu.2}
  #allocation0 [shape = 'u32[]', space=smem, size = 0x4, offset = 0x4, fixed_abs, tag = 'smem constant byte address 0x4 - core index']
  #allocation1 [shape = 'u32[72,128]{1,0:T(1,128)}', space=vmem, size = 0x9000, scoped, tag = 'internal scratch']
  %s0 = inlined_call_operand.vmem [shape: bf16[2,18,18,4], index: 0, kind: input, shape index: {}]
  %s1 = inlined_call_operand.vmem [shape: bf16[36,8], index: 1, kind: input, shape index: {}]
  %s2 = inlined_call_operand.vmem [shape: f32[2,2,8], index: 2, kind: output, shape index: {}]
  %s3 = sld [smem:[#allocation0]]
  $region41: #{conv_bn_relu.2} parent=0
    _
  %s5 = ssub.s32 1, %s3
  %s6 = scalar_select 0, %s5, %s3
  loop: start=0, step=1, limit=4
  $region2: #{conv_bn_relu.2} parent=0 // loop_pre_header
    _
  $region3: #{conv_bn_relu.2} parent=0 // loop_header
    %s8 = sphi 0, %s12
    %p9 = scmp.ge.s32.totalorder %s8, 4
    %s15 = sphi 0, %s27
    %s16 = sphi 0, %s23
    %s17 = sphi 0, %s15
    %s18 = sphi 0, %s16
    %s19 = sphi 0, %s17
    %s20 = sphi 0, %s18
    %s30 = sphi 0, %s32
    %s33 = sphi 0, %s30
    %s34 = sphi 0, %s33
    %s50 = sphi 0, %s34
    %s54 = sphi 0, %s54
    %s56 = sphi 0, %s54
    %s57 = sphi 0, %s56
    %s71 = sphi 0, %s57
    %s79 = sphi 0, %s81
    %s82 = sphi 0, %s79
    %s83 = sphi 0, %s82
    %s99 = sphi 0, %s83
  $region4: #{conv_bn_relu.2} parent=0 // loop_header_branch
    %11 = sbr.rel (%p9) target = $region8
  $region5: #{conv_bn_relu.2} parent=0 // loop_body
    %s13 = ssub.s32 %s8, 1
    %s14 = ssub.s32 %s8, 2
    %s21 = sadd.s32 1, %s16
    %p22 = scmp.ge.s32.totalorder %s21, 1
    %s23 = scalar_select %p22, 0, %s21
    %s24 = sadd.s32 1, %s15
    %s25 = scalar_select %p22, %s24, %s15
    %p26 = scmp.ge.s32.totalorder %s25, 2
    %s27 = scalar_select %p26, 0, %s25
    %s28 = ssub.s32 %s15, %s27
    %p29 = scmp.eq.s32.totalorder %s28, 0
    %s31 = sadd.s32 %s30, 1
    %s32 = scalar_select %p29, %s30, %s31
    %p35 = pneg %p29
    %p36 = scmp.eq.s32.totalorder %s8, 1
    %p37 = por %p35, %p36
    %p38 = scmp.ne.s32.totalorder %s30, %s33
    %p39 = scmp.eq.s32.totalorder %s8, 0
    %p40 = por %p38, %p39
    %p41 = scmp.ne.s32.totalorder %s30, %s33
    %p42 = scmp.eq.s32.totalorder %s13, 1
    %p43 = por %p41, %p42
    %p44 = scmp.ne.s32.totalorder %s33, %s34
    %p45 = scmp.eq.s32.totalorder %s13, 0
    %p46 = por %p44, %p45
    %p47 = scmp.ne.s32.totalorder %s33, %s34
    %p48 = scmp.eq.s32.totalorder %s14, 1
    %p49 = por %p47, %p48
    %p51 = scmp.ne.s32.totalorder %s34, %s50
    %p52 = scmp.eq.s32.totalorder %s14, 0
    %p53 = por %p51, %p52
    %s55 = sadd.s32 %s54, 1
    %p58 = scmp.eq.s32.totalorder %s8, 1
    %p59 = scmp.ne.s32.totalorder %s54, %s56
    %p60 = scmp.eq.s32.totalorder %s8, 0
    %p61 = por %p59, %p60
    %p62 = scmp.ne.s32.totalorder %s54, %s56
    %p63 = scmp.eq.s32.totalorder %s13, 1
    %p64 = por %p62, %p63
    %p65 = scmp.ne.s32.totalorder %s56, %s57
    %p66 = scmp.eq.s32.totalorder %s13, 0
    %p67 = por %p65, %p66
    %p68 = scmp.ne.s32.totalorder %s56, %s57
    %p69 = scmp.eq.s32.totalorder %s14, 1
    %p70 = por %p68, %p69
    %p72 = scmp.ne.s32.totalorder %s57, %s71
    %p73 = scmp.eq.s32.totalorder %s14, 0
    %p74 = por %p72, %p73
    %s75 = sadd.s32 %s15, %s16
    %s76 = sadd.s32 %s27, %s23
    %s77 = ssub.s32 %s75, %s76
    %p78 = scmp.eq.s32.totalorder %s77, 0
    %s80 = sadd.s32 %s79, 1
    %s81 = scalar_select %p78, %s79, %s80
    %p84 = pneg %p78
    %p85 = scmp.eq.s32.totalorder %s8, 1
    %p86 = por %p84, %p85
    %p87 = scmp.ne.s32.totalorder %s79, %s82
    %p88 = scmp.eq.s32.totalorder %s8, 0
    %p89 = por %p87, %p88
    %p90 = scmp.ne.s32.totalorder %s79, %s82
    %p91 = scmp.eq.s32.totalorder %s13, 1
    %p92 = por %p90, %p91
    %p93 = scmp.ne.s32.totalorder %s82, %s83
    %p94 = scmp.eq.s32.totalorder %s13, 0
    %p95 = por %p93, %p94
    %p96 = scmp.ne.s32.totalorder %s82, %s83
    %p97 = scmp.eq.s32.totalorder %s14, 1
    %p98 = por %p96, %p97
    %p100 = scmp.ne.s32.totalorder %s83, %s99
    %p101 = scmp.eq.s32.totalorder %s14, 0
    %p102 = por %p100, %p101
    %p103 = scmp.le.s32.totalorder 1, %s8
    %p104 = scmp.lt.s32.totalorder %s8, 3
    %p105 = pnand %p103, %p104
    %p106 = pneg %p105
    // Predicated region
    $region9: #{conv_bn_relu.2} parent=5 // pred_check
      _
    $region10: #{conv_bn_relu.2} parent=5 // pred_check_branch
      %108 = sbr.rel (%p105) target = $region12
    $region11: #{conv_bn_relu.2} parent=5 // pred_region
      %s109 = ssub.s32 %s8, 1
      // Predicated region
      $region13: #{conv_bn_relu.2} parent=11 // pred_check
        %p110 = pneg %p67
      $region14: #{conv_bn_relu.2} parent=11 // pred_check_branch
        %112 = sbr.rel (%p110) target = $region16
      $region15: #{conv_bn_relu.2} parent=11 // pred_region
        _
      $region16: #{conv_bn_relu.2} parent=11 // pred_fallthru
        _
    $region12: #{conv_bn_relu.2} parent=5 // pred_fallthru
      _
    %p113 = scmp.lt.s32.totalorder %s8, 2
    // Predicated region
    $region17: #{conv_bn_relu.2} parent=5 // pred_check
      %p114 = pneg %p113
    $region18: #{conv_bn_relu.2} parent=5 // pred_check_branch
      %116 = sbr.rel (%p114) target = $region20
    $region19: #{conv_bn_relu.2} parent=5 // pred_region
      // Predicated region
      $region21: #{conv_bn_relu.2} parent=19 // pred_check
        %p117 = pneg %p40
      $region22: #{conv_bn_relu.2} parent=19 // pred_check_branch
        %119 = sbr.rel (%p117) target = $region24
      $region23: #{conv_bn_relu.2} parent=19 // pred_region
        %p120 = scmp.lt.s32.totalorder %s15, 1
        %s121 = scalar_select %p120, %s15, 1
        %s122 = smul.addr %s121, 54
        %s123 = smul.addr %s122, 4
        %s124 = scalar_lea.vmem %s0, %s123
      $region24: #{conv_bn_relu.2} parent=19 // pred_fallthru
        _
    $region20: #{conv_bn_relu.2} parent=5 // pred_fallthru
      _
    %p125 = scmp.le.s32.totalorder 1, %s8
    %p126 = scmp.lt.s32.totalorder %s8, 3
    %p127 = pnand %p125, %p126
    %p128 = pneg %p127
    // Predicated region
    $region25: #{conv_bn_relu.2} parent=5 // pred_check
      _
    $region26: #{conv_bn_relu.2} parent=5 // pred_check_branch
      %130 = sbr.rel (%p127) target = $region28
    $region27: #{conv_bn_relu.2} parent=5 // pred_region
      %s131 = ssub.s32 %s8, 1
      %p132 = scmp.lt.s32.totalorder %s17, 1
      %s133 = scalar_select %p132, %s17, 1
      %s134 = smul.addr %s133, 54
      %s135 = smul.addr %s134, 4
      %s136 = scalar_lea.vmem %s0, %s135
      %p137 = pneg %p46
      %p138 = pneg %p43
      %p139 = pneg %p67
      %p140 = pneg %p64
      %p141 = pneg %p95
      %p142 = pneg %p92
      %s143 = sadd.s32 %s17, %s18
      %p144 = scmp.lt.s32.totalorder %s143, 1
      %s145 = scalar_select %p144, %s143, 1
      %s146 = smul.addr %s145, 2
      %s147 = scalar_lea.vmem %s2, %s146
      %p148 = scmp.lt.s32.totalorder %s17, 1
      %s149 = scalar_select %p148, %s17, 1
      %s150 = smul.addr %s149, 54
      %s151 = smul.addr %s150, 4
      %s152 = scalar_lea.vmem %s0, %s151
      %s153 = sadd.s32 %s17, %s18
      %p154 = scmp.lt.s32.totalorder %s153, 1
      %s155 = scalar_select %p154, %s153, 1
      %s156 = smul.addr %s155, 2
      %s157 = scalar_lea.vmem %s2, %s156
      %s158 = sadd.s32 %s17, %s18
      %v160 = vld [vmem:[%s152] sm:$0xf]
      %v161 = vld [vmem:[%s152 + $0x4] sm:$0xf]
      %v162 = vld [vmem:[%s152 + $0x8] sm:$0x1]
      %v163 = vld [vmem:[%s152 + $0xc] sm:$0xf]
      %v164 = vld [vmem:[%s152 + $0x10] sm:$0xf]
      %v165 = vld [vmem:[%s152 + $0x14] sm:$0x1]
      %v166 = vld [vmem:[%s152 + $0x18] sm:$0xf]
      %v167 = vld [vmem:[%s152 + $0x1c] sm:$0xf]
      %v168 = vld [vmem:[%s152 + $0x20] sm:$0x1]
      %v169 = vld [vmem:[%s152 + $0x24] sm:$0xf]
      %v170 = vld [vmem:[%s152 + $0x28] sm:$0xf]
      %v171 = vld [vmem:[%s152 + $0x2c] sm:$0x1]
      %v172 = vld [vmem:[%s152 + $0x30] sm:$0xf]
      %v173 = vld [vmem:[%s152 + $0x34] sm:$0xf]
      %v174 = vld [vmem:[%s152 + $0x38] sm:$0x1]
      %v175 = vld [vmem:[%s152 + $0x3c] sm:$0xf]
      %v176 = vld [vmem:[%s152 + $0x40] sm:$0xf]
      %v177 = vld [vmem:[%s152 + $0x44] sm:$0x1]
      %v178 = vld [vmem:[%s152 + $0x48] sm:$0xf]
      %v179 = vld [vmem:[%s152 + $0x4c] sm:$0xf]
      %v180 = vld [vmem:[%s152 + $0x50] sm:$0x1]
      %v181 = vld [vmem:[%s152 + $0x54] sm:$0xf]
      %v182 = vld [vmem:[%s152 + $0x58] sm:$0xf]
      %v183 = vld [vmem:[%s152 + $0x5c] sm:$0x1]
      %v184 = vld [vmem:[%s152 + $0x60] sm:$0xf]
      %v185 = vld [vmem:[%s152 + $0x64] sm:$0xf]
      %v186 = vld [vmem:[%s152 + $0x68] sm:$0x1]
      %v187 = vld [vmem:[%s152 + $0x6c] sm:$0xf]
      %v188 = vld [vmem:[%s152 + $0x70] sm:$0xf]
      %v189 = vld [vmem:[%s152 + $0x74] sm:$0x1]
      %v190 = vld [vmem:[%s152 + $0x78] sm:$0xf]
      %v191 = vld [vmem:[%s152 + $0x7c] sm:$0xf]
      %v192 = vld [vmem:[%s152 + $0x80] sm:$0x1]
      %v193 = vld [vmem:[%s152 + $0x84] sm:$0xf]
      %v194 = vld [vmem:[%s152 + $0x88] sm:$0xf]
      %v195 = vld [vmem:[%s152 + $0x8c] sm:$0x1]
      %v196 = vld [vmem:[%s152 + $0x90] sm:$0xf]
      %v197 = vld [vmem:[%s152 + $0x94] sm:$0xf]
      %v198 = vld [vmem:[%s152 + $0x98] sm:$0x1]
      %v199 = vld [vmem:[%s152 + $0x9c] sm:$0xf]
      %v200 = vld [vmem:[%s152 + $0xa0] sm:$0xf]
      %v201 = vld [vmem:[%s152 + $0xa4] sm:$0x1]
      %v202 = vld [vmem:[%s152 + $0xa8] sm:$0xf]
      %v203 = vld [vmem:[%s152 + $0xac] sm:$0xf]
      %v204 = vld [vmem:[%s152 + $0xb0] sm:$0x1]
      %v205 = vld [vmem:[%s152 + $0xb4] sm:$0xf]
      %v206 = vld [vmem:[%s152 + $0xb8] sm:$0xf]
      %v207 = vld [vmem:[%s152 + $0xbc] sm:$0x1]
      %v208 = vld [vmem:[%s152 + $0xc0] sm:$0xf]
      %v209 = vld [vmem:[%s152 + $0xc4] sm:$0xf]
      %v210 = vld [vmem:[%s152 + $0xc8] sm:$0x1]
      %v211 = vld [vmem:[%s152 + $0xcc] sm:$0xf]
      %v212 = vld [vmem:[%s152 + $0xd0] sm:$0xf]
      %v213 = vld [vmem:[%s152 + $0xd4] sm:$0x1]
      %v214 = vunpack.c.l.bf16 %v160
      %v215 = vunpack.c.l.bf16 %v161
      %v216 = vunpack.c.l.bf16 %v162
      %v217 = vunpack.c.l.bf16 %v163
      %v218 = vunpack.c.l.bf16 %v164
      %v219 = vunpack.c.l.bf16 %v165
      %v220 = vunpack.c.l.bf16 %v166
      %v221 = vunpack.c.l.bf16 %v167
      %v222 = vunpack.c.l.bf16 %v168
      %v223 = vunpack.c.l.bf16 %v169
      %v224 = vunpack.c.l.bf16 %v170
      %v225 = vunpack.c.l.bf16 %v171
      %v226 = vunpack.c.l.bf16 %v172
      %v227 = vunpack.c.l.bf16 %v173
      %v228 = vunpack.c.l.bf16 %v174
      %v229 = vunpack.c.l.bf16 %v175
      %v230 = vunpack.c.l.bf16 %v176
      %v231 = vunpack.c.l.bf16 %v177
      %v232 = vunpack.c.l.bf16 %v178
      %v233 = vunpack.c.l.bf16 %v179
      %v234 = vunpack.c.l.bf16 %v180
      %v235 = vunpack.c.l.bf16 %v181
      %v236 = vunpack.c.l.bf16 %v182
      %v237 = vunpack.c.l.bf16 %v183
      %v238 = vunpack.c.l.bf16 %v184
      %v239 = vunpack.c.l.bf16 %v185
      %v240 = vunpack.c.l.bf16 %v186
      %v241 = vunpack.c.l.bf16 %v187
      %v242 = vunpack.c.l.bf16 %v188
      %v243 = vunpack.c.l.bf16 %v189
      %v244 = vunpack.c.l.bf16 %v190
      %v245 = vunpack.c.l.bf16 %v191
      %v246 = vunpack.c.l.bf16 %v192
      %v247 = vunpack.c.l.bf16 %v193
      %v248 = vunpack.c.l.bf16 %v194
      %v249 = vunpack.c.l.bf16 %v195
      %v250 = vunpack.c.l.bf16 %v196
      %v251 = vunpack.c.l.bf16 %v197
      %v252 = vunpack.c.l.bf16 %v198
      %v253 = vunpack.c.l.bf16 %v199
      %v254 = vunpack.c.l.bf16 %v200
      %v255 = vunpack.c.l.bf16 %v201
      %v256 = vunpack.c.l.bf16 %v202
      %v257 = vunpack.c.l.bf16 %v203
      %v258 = vunpack.c.l.bf16 %v204
      %v259 = vunpack.c.l.bf16 %v205
      %v260 = vunpack.c.l.bf16 %v206
      %v261 = vunpack.c.l.bf16 %v207
      %v262 = vunpack.c.l.bf16 %v208
      %v263 = vunpack.c.l.bf16 %v209
      %v264 = vunpack.c.l.bf16 %v210
      %v265 = vunpack.c.l.bf16 %v211
      %v266 = vunpack.c.l.bf16 %v212
      %v267 = vunpack.c.l.bf16 %v213
      %vm316 = vcmask 1046528
      %v317 = vrot.slane %v214, 1
      %v318 = vrot.slane %v215, 1
      %v319 = vsel %vm316, %v317, %v318
      %v320 = vrot.slane %v216, 1
      %v321 = vsel %vm316, %v318, %v320
      %v322 = vrot.slane %v217, 1
      %v323 = vrot.slane %v218, 1
      %v324 = vsel %vm316, %v322, %v323
      %v325 = vrot.slane %v219, 1
      %v326 = vsel %vm316, %v323, %v325
      %v327 = vrot.slane %v220, 1
      %v328 = vrot.slane %v221, 1
      %v329 = vsel %vm316, %v327, %v328
      %v330 = vrot.slane %v222, 1
      %v331 = vsel %vm316, %v328, %v330
      %v332 = vrot.slane %v223, 1
      %v333 = vrot.slane %v224, 1
      %v334 = vsel %vm316, %v332, %v333
      %v335 = vrot.slane %v225, 1
      %v336 = vsel %vm316, %v333, %v335
      %v337 = vrot.slane %v226, 1
      %v338 = vrot.slane %v227, 1
      %v339 = vsel %vm316, %v337, %v338
      %v340 = vrot.slane %v228, 1
      %v341 = vsel %vm316, %v338, %v340
      %v342 = vrot.slane %v229, 1
      %v343 = vrot.slane %v230, 1
      %v344 = vsel %vm316, %v342, %v343
      %v345 = vrot.slane %v231, 1
      %v346 = vsel %vm316, %v343, %v345
      %v347 = vrot.slane %v232, 1
      %v348 = vrot.slane %v233, 1
      %v349 = vsel %vm316, %v347, %v348
      %v350 = vrot.slane %v234, 1
      %v351 = vsel %vm316, %v348, %v350
      %v352 = vrot.slane %v235, 1
      %v353 = vrot.slane %v236, 1
      %v354 = vsel %vm316, %v352, %v353
      %v355 = vrot.slane %v237, 1
      %v356 = vsel %vm316, %v353, %v355
      %v357 = vrot.slane %v238, 1
      %v358 = vrot.slane %v239, 1
      %v359 = vsel %vm316, %v357, %v358
      %v360 = vrot.slane %v240, 1
      %v361 = vsel %vm316, %v358, %v360
      %v362 = vrot.slane %v241, 1
      %v363 = vrot.slane %v242, 1
      %v364 = vsel %vm316, %v362, %v363
      %v365 = vrot.slane %v243, 1
      %v366 = vsel %vm316, %v363, %v365
      %v367 = vrot.slane %v244, 1
      %v368 = vrot.slane %v245, 1
      %v369 = vsel %vm316, %v367, %v368
      %v370 = vrot.slane %v246, 1
      %v371 = vsel %vm316, %v368, %v370
      %v372 = vrot.slane %v247, 1
      %v373 = vrot.slane %v248, 1
      %v374 = vsel %vm316, %v372, %v373
      %v375 = vrot.slane %v249, 1
      %v376 = vsel %vm316, %v373, %v375
      %v377 = vrot.slane %v250, 1
      %v378 = vrot.slane %v251, 1
      %v379 = vsel %vm316, %v377, %v378
      %v380 = vrot.slane %v252, 1
      %v381 = vsel %vm316, %v378, %v380
      %v382 = vrot.slane %v253, 1
      %v383 = vrot.slane %v254, 1
      %v384 = vsel %vm316, %v382, %v383
      %v385 = vrot.slane %v255, 1
      %v386 = vsel %vm316, %v383, %v385
      %v387 = vrot.slane %v256, 1
      %v388 = vrot.slane %v257, 1
      %v389 = vsel %vm316, %v387, %v388
      %v390 = vrot.slane %v258, 1
      %v391 = vsel %vm316, %v388, %v390
      %v392 = vrot.slane %v259, 1
      %v393 = vrot.slane %v260, 1
      %v394 = vsel %vm316, %v392, %v393
      %v395 = vrot.slane %v261, 1
      %v396 = vsel %vm316, %v393, %v395
      %397 = vrot.lane.b32.xlu0 %v319, 4
      %v398 = vpop.permute.xlu0 %397
      %399 = vrot.lane.b32.xlu0 %v321, 4
      %v400 = vpop.permute.xlu0 %399
      %401 = vrot.lane.b32.xlu0 %v324, 4
      %v402 = vpop.permute.xlu0 %401
      %403 = vrot.lane.b32.xlu0 %v326, 4
      %v404 = vpop.permute.xlu0 %403
      %405 = vrot.lane.b32.xlu0 %v329, 4
      %v406 = vpop.permute.xlu0 %405
      %407 = vrot.lane.b32.xlu0 %v331, 4
      %v408 = vpop.permute.xlu0 %407
      %409 = vrot.lane.b32.xlu0 %v334, 4
      %v410 = vpop.permute.xlu0 %409
      %411 = vrot.lane.b32.xlu0 %v336, 4
      %v412 = vpop.permute.xlu0 %411
      %413 = vrot.lane.b32.xlu0 %v339, 4
      %v414 = vpop.permute.xlu0 %413
      %415 = vrot.lane.b32.xlu0 %v341, 4
      %v416 = vpop.permute.xlu0 %415
      %417 = vrot.lane.b32.xlu0 %v344, 4
      %v418 = vpop.permute.xlu0 %417
      %419 = vrot.lane.b32.xlu0 %v346, 4
      %v420 = vpop.permute.xlu0 %419
      %421 = vrot.lane.b32.xlu0 %v349, 4
      %v422 = vpop.permute.xlu0 %421
      %423 = vrot.lane.b32.xlu0 %v351, 4
      %v424 = vpop.permute.xlu0 %423
      %425 = vrot.lane.b32.xlu0 %v354, 4
      %v426 = vpop.permute.xlu0 %425
      %427 = vrot.lane.b32.xlu0 %v356, 4
      %v428 = vpop.permute.xlu0 %427
      %429 = vrot.lane.b32.xlu0 %v359, 4
      %v430 = vpop.permute.xlu0 %429
      %431 = vrot.lane.b32.xlu0 %v361, 4
      %v432 = vpop.permute.xlu0 %431
      %433 = vrot.lane.b32.xlu0 %v364, 4
      %v434 = vpop.permute.xlu0 %433
      %435 = vrot.lane.b32.xlu0 %v366, 4
      %v436 = vpop.permute.xlu0 %435
      %437 = vrot.lane.b32.xlu0 %v369, 4
      %v438 = vpop.permute.xlu0 %437
      %439 = vrot.lane.b32.xlu0 %v371, 4
      %v440 = vpop.permute.xlu0 %439
      %441 = vrot.lane.b32.xlu0 %v374, 4
      %v442 = vpop.permute.xlu0 %441
      %443 = vrot.lane.b32.xlu0 %v376, 4
      %v444 = vpop.permute.xlu0 %443
      %445 = vrot.lane.b32.xlu0 %v379, 4
      %v446 = vpop.permute.xlu0 %445
      %447 = vrot.lane.b32.xlu0 %v381, 4
      %v448 = vpop.permute.xlu0 %447
      %449 = vrot.lane.b32.xlu0 %v384, 4
      %v450 = vpop.permute.xlu0 %449
      %451 = vrot.lane.b32.xlu0 %v386, 4
      %v452 = vpop.permute.xlu0 %451
      %453 = vrot.lane.b32.xlu0 %v389, 4
      %v454 = vpop.permute.xlu0 %453
      %455 = vrot.lane.b32.xlu0 %v391, 4
      %v456 = vpop.permute.xlu0 %455
      %457 = vrot.lane.b32.xlu0 %v394, 4
      %v458 = vpop.permute.xlu0 %457
      %459 = vrot.lane.b32.xlu0 %v396, 4
      %v460 = vpop.permute.xlu0 %459
      %vm493 = vcmask 1045504
      %v494 = vrot.slane %v214, 2
      %v495 = vrot.slane %v215, 2
      %v496 = vsel %vm493, %v494, %v495
      %v497 = vrot.slane %v216, 2
      %v498 = vsel %vm493, %v495, %v497
      %v499 = vrot.slane %v217, 2
      %v500 = vrot.slane %v218, 2
      %v501 = vsel %vm493, %v499, %v500
      %v502 = vrot.slane %v219, 2
      %v503 = vsel %vm493, %v500, %v502
      %v504 = vrot.slane %v220, 2
      %v505 = vrot.slane %v221, 2
      %v506 = vsel %vm493, %v504, %v505
      %v507 = vrot.slane %v222, 2
      %v508 = vsel %vm493, %v505, %v507
      %v509 = vrot.slane %v223, 2
      %v510 = vrot.slane %v224, 2
      %v511 = vsel %vm493, %v509, %v510
      %v512 = vrot.slane %v225, 2
      %v513 = vsel %vm493, %v510, %v512
      %v514 = vrot.slane %v226, 2
      %v515 = vrot.slane %v227, 2
      %v516 = vsel %vm493, %v514, %v515
      %v517 = vrot.slane %v228, 2
      %v518 = vsel %vm493, %v515, %v517
      %v519 = vrot.slane %v229, 2
      %v520 = vrot.slane %v230, 2
      %v521 = vsel %vm493, %v519, %v520
      %v522 = vrot.slane %v231, 2
      %v523 = vsel %vm493, %v520, %v522
      %v524 = vrot.slane %v232, 2
      %v525 = vrot.slane %v233, 2
      %v526 = vsel %vm493, %v524, %v525
      %v527 = vrot.slane %v234, 2
      %v528 = vsel %vm493, %v525, %v527
      %v529 = vrot.slane %v235, 2
      %v530 = vrot.slane %v236, 2
      %v531 = vsel %vm493, %v529, %v530
      %v532 = vrot.slane %v237, 2
      %v533 = vsel %vm493, %v530, %v532
      %v534 = vrot.slane %v238, 2
      %v535 = vrot.slane %v239, 2
      %v536 = vsel %vm493, %v534, %v535
      %v537 = vrot.slane %v240, 2
      %v538 = vsel %vm493, %v535, %v537
      %v539 = vrot.slane %v241, 2
      %v540 = vrot.slane %v242, 2
      %v541 = vsel %vm493, %v539, %v540
      %v542 = vrot.slane %v243, 2
      %v543 = vsel %vm493, %v540, %v542
      %v544 = vrot.slane %v244, 2
      %v545 = vrot.slane %v245, 2
      %v546 = vsel %vm493, %v544, %v545
      %v547 = vrot.slane %v246, 2
      %v548 = vsel %vm493, %v545, %v547
      %v549 = vrot.slane %v247, 2
      %v550 = vrot.slane %v248, 2
      %v551 = vsel %vm493, %v549, %v550
      %v552 = vrot.slane %v249, 2
      %v553 = vsel %vm493, %v550, %v552
      %v554 = vrot.slane %v250, 2
      %v555 = vrot.slane %v251, 2
      %v556 = vsel %vm493, %v554, %v555
      %v557 = vrot.slane %v252, 2
      %v558 = vsel %vm493, %v555, %v557
      %v559 = vrot.slane %v253, 2
      %v560 = vrot.slane %v254, 2
      %v561 = vsel %vm493, %v559, %v560
      %v562 = vrot.slane %v255, 2
      %v563 = vsel %vm493, %v560, %v562
      %v564 = vrot.slane %v256, 2
      %v565 = vrot.slane %v257, 2
      %v566 = vsel %vm493, %v564, %v565
      %v567 = vrot.slane %v258, 2
      %v568 = vsel %vm493, %v565, %v567
      %v569 = vrot.slane %v259, 2
      %v570 = vrot.slane %v260, 2
      %v571 = vsel %vm493, %v569, %v570
      %v572 = vrot.slane %v261, 2
      %v573 = vsel %vm493, %v570, %v572
      %574 = vrot.lane.b32.xlu0 %v496, 8
      %v575 = vpop.permute.xlu0 %574
      %576 = vrot.lane.b32.xlu0 %v498, 8
      %v577 = vpop.permute.xlu0 %576
      %578 = vrot.lane.b32.xlu0 %v501, 8
      %v579 = vpop.permute.xlu0 %578
      %580 = vrot.lane.b32.xlu0 %v503, 8
      %v581 = vpop.permute.xlu0 %580
      %582 = vrot.lane.b32.xlu0 %v506, 8
      %v583 = vpop.permute.xlu0 %582
      %584 = vrot.lane.b32.xlu0 %v508, 8
      %v585 = vpop.permute.xlu0 %584
      %586 = vrot.lane.b32.xlu0 %v511, 8
      %v587 = vpop.permute.xlu0 %586
      %588 = vrot.lane.b32.xlu0 %v513, 8
      %v589 = vpop.permute.xlu0 %588
      %590 = vrot.lane.b32.xlu0 %v516, 8
      %v591 = vpop.permute.xlu0 %590
      %592 = vrot.lane.b32.xlu0 %v518, 8
      %v593 = vpop.permute.xlu0 %592
      %594 = vrot.lane.b32.xlu0 %v521, 8
      %v595 = vpop.permute.xlu0 %594
      %596 = vrot.lane.b32.xlu0 %v523, 8
      %v597 = vpop.permute.xlu0 %596
      %598 = vrot.lane.b32.xlu0 %v526, 8
      %v599 = vpop.permute.xlu0 %598
      %600 = vrot.lane.b32.xlu0 %v528, 8
      %v601 = vpop.permute.xlu0 %600
      %602 = vrot.lane.b32.xlu0 %v531, 8
      %v603 = vpop.permute.xlu0 %602
      %604 = vrot.lane.b32.xlu0 %v533, 8
      %v605 = vpop.permute.xlu0 %604
      %606 = vrot.lane.b32.xlu0 %v536, 8
      %v607 = vpop.permute.xlu0 %606
      %608 = vrot.lane.b32.xlu0 %v538, 8
      %v609 = vpop.permute.xlu0 %608
      %610 = vrot.lane.b32.xlu0 %v541, 8
      %v611 = vpop.permute.xlu0 %610
      %612 = vrot.lane.b32.xlu0 %v543, 8
      %v613 = vpop.permute.xlu0 %612
      %614 = vrot.lane.b32.xlu0 %v546, 8
      %v615 = vpop.permute.xlu0 %614
      %616 = vrot.lane.b32.xlu0 %v548, 8
      %v617 = vpop.permute.xlu0 %616
      %618 = vrot.lane.b32.xlu0 %v551, 8
      %v619 = vpop.permute.xlu0 %618
      %620 = vrot.lane.b32.xlu0 %v553, 8
      %v621 = vpop.permute.xlu0 %620
      %622 = vrot.lane.b32.xlu0 %v556, 8
      %v623 = vpop.permute.xlu0 %622
      %624 = vrot.lane.b32.xlu0 %v558, 8
      %v625 = vpop.permute.xlu0 %624
      %626 = vrot.lane.b32.xlu0 %v561, 8
      %v627 = vpop.permute.xlu0 %626
      %628 = vrot.lane.b32.xlu0 %v563, 8
      %v629 = vpop.permute.xlu0 %628
      %630 = vrot.lane.b32.xlu0 %v566, 8
      %v631 = vpop.permute.xlu0 %630
      %632 = vrot.lane.b32.xlu0 %v568, 8
      %v633 = vpop.permute.xlu0 %632
      %634 = vrot.lane.b32.xlu0 %v571, 8
      %v635 = vpop.permute.xlu0 %634
      %636 = vrot.lane.b32.xlu0 %v573, 8
      %v637 = vpop.permute.xlu0 %636
      %672 = vrot.lane.b32.xlu0 %v217, 12
      %v673 = vpop.permute.xlu0 %672
      %674 = vrot.lane.b32.xlu0 %v218, 12
      %v675 = vpop.permute.xlu0 %674
      %676 = vrot.lane.b32.xlu0 %v220, 12
      %v677 = vpop.permute.xlu0 %676
      %678 = vrot.lane.b32.xlu0 %v221, 12
      %v679 = vpop.permute.xlu0 %678
      %680 = vrot.lane.b32.xlu0 %v223, 12
      %v681 = vpop.permute.xlu0 %680
      %682 = vrot.lane.b32.xlu0 %v224, 12
      %v683 = vpop.permute.xlu0 %682
      %684 = vrot.lane.b32.xlu0 %v226, 12
      %v685 = vpop.permute.xlu0 %684
      %686 = vrot.lane.b32.xlu0 %v227, 12
      %v687 = vpop.permute.xlu0 %686
      %688 = vrot.lane.b32.xlu0 %v229, 12
      %v689 = vpop.permute.xlu0 %688
      %690 = vrot.lane.b32.xlu0 %v230, 12
      %v691 = vpop.permute.xlu0 %690
      %692 = vrot.lane.b32.xlu0 %v232, 12
      %v693 = vpop.permute.xlu0 %692
      %694 = vrot.lane.b32.xlu0 %v233, 12
      %v695 = vpop.permute.xlu0 %694
      %696 = vrot.lane.b32.xlu0 %v235, 12
      %v697 = vpop.permute.xlu0 %696
      %698 = vrot.lane.b32.xlu0 %v236, 12
      %v699 = vpop.permute.xlu0 %698
      %700 = vrot.lane.b32.xlu0 %v238, 12
      %v701 = vpop.permute.xlu0 %700
      %702 = vrot.lane.b32.xlu0 %v239, 12
      %v703 = vpop.permute.xlu0 %702
      %704 = vrot.lane.b32.xlu0 %v241, 12
      %v705 = vpop.permute.xlu0 %704
      %706 = vrot.lane.b32.xlu0 %v242, 12
      %v707 = vpop.permute.xlu0 %706
      %708 = vrot.lane.b32.xlu0 %v244, 12
      %v709 = vpop.permute.xlu0 %708
      %710 = vrot.lane.b32.xlu0 %v245, 12
      %v711 = vpop.permute.xlu0 %710
      %712 = vrot.lane.b32.xlu0 %v247, 12
      %v713 = vpop.permute.xlu0 %712
      %714 = vrot.lane.b32.xlu0 %v248, 12
      %v715 = vpop.permute.xlu0 %714
      %716 = vrot.lane.b32.xlu0 %v250, 12
      %v717 = vpop.permute.xlu0 %716
      %718 = vrot.lane.b32.xlu0 %v251, 12
      %v719 = vpop.permute.xlu0 %718
      %720 = vrot.lane.b32.xlu0 %v253, 12
      %v721 = vpop.permute.xlu0 %720
      %722 = vrot.lane.b32.xlu0 %v254, 12
      %v723 = vpop.permute.xlu0 %722
      %724 = vrot.lane.b32.xlu0 %v256, 12
      %v725 = vpop.permute.xlu0 %724
      %726 = vrot.lane.b32.xlu0 %v257, 12
      %v727 = vpop.permute.xlu0 %726
      %728 = vrot.lane.b32.xlu0 %v259, 12
      %v729 = vpop.permute.xlu0 %728
      %730 = vrot.lane.b32.xlu0 %v260, 12
      %v731 = vpop.permute.xlu0 %730
      %732 = vrot.lane.b32.xlu0 %v262, 12
      %v733 = vpop.permute.xlu0 %732
      %734 = vrot.lane.b32.xlu0 %v263, 12
      %v735 = vpop.permute.xlu0 %734
      %v769 = vrot.slane %v262, 1
      %v770 = vrot.slane %v263, 1
      %v771 = vsel %vm316, %v769, %v770
      %v772 = vrot.slane %v264, 1
      %v773 = vsel %vm316, %v770, %v772
      %774 = vrot.lane.b32.xlu0 %v324, 16
      %v775 = vpop.permute.xlu0 %774
      %776 = vrot.lane.b32.xlu0 %v326, 16
      %v777 = vpop.permute.xlu0 %776
      %778 = vrot.lane.b32.xlu0 %v329, 16
      %v779 = vpop.permute.xlu0 %778
      %780 = vrot.lane.b32.xlu0 %v331, 16
      %v781 = vpop.permute.xlu0 %780
      %782 = vrot.lane.b32.xlu0 %v334, 16
      %v783 = vpop.permute.xlu0 %782
      %784 = vrot.lane.b32.xlu0 %v336, 16
      %v785 = vpop.permute.xlu0 %784
      %786 = vrot.lane.b32.xlu0 %v339, 16
      %v787 = vpop.permute.xlu0 %786
      %788 = vrot.lane.b32.xlu0 %v341, 16
      %v789 = vpop.permute.xlu0 %788
      %790 = vrot.lane.b32.xlu0 %v344, 16
      %v791 = vpop.permute.xlu0 %790
      %792 = vrot.lane.b32.xlu0 %v346, 16
      %v793 = vpop.permute.xlu0 %792
      %794 = vrot.lane.b32.xlu0 %v349, 16
      %v795 = vpop.permute.xlu0 %794
      %796 = vrot.lane.b32.xlu0 %v351, 16
      %v797 = vpop.permute.xlu0 %796
      %798 = vrot.lane.b32.xlu0 %v354, 16
      %v799 = vpop.permute.xlu0 %798
      %800 = vrot.lane.b32.xlu0 %v356, 16
      %v801 = vpop.permute.xlu0 %800
      %802 = vrot.lane.b32.xlu0 %v359, 16
      %v803 = vpop.permute.xlu0 %802
      %804 = vrot.lane.b32.xlu0 %v361, 16
      %v805 = vpop.permute.xlu0 %804
      %806 = vrot.lane.b32.xlu0 %v364, 16
      %v807 = vpop.permute.xlu0 %806
      %808 = vrot.lane.b32.xlu0 %v366, 16
      %v809 = vpop.permute.xlu0 %808
      %810 = vrot.lane.b32.xlu0 %v369, 16
      %v811 = vpop.permute.xlu0 %810
      %812 = vrot.lane.b32.xlu0 %v371, 16
      %v813 = vpop.permute.xlu0 %812
      %814 = vrot.lane.b32.xlu0 %v374, 16
      %v815 = vpop.permute.xlu0 %814
      %816 = vrot.lane.b32.xlu0 %v376, 16
      %v817 = vpop.permute.xlu0 %816
      %818 = vrot.lane.b32.xlu0 %v379, 16
      %v819 = vpop.permute.xlu0 %818
      %820 = vrot.lane.b32.xlu0 %v381, 16
      %v821 = vpop.permute.xlu0 %820
      %822 = vrot.lane.b32.xlu0 %v384, 16
      %v823 = vpop.permute.xlu0 %822
      %824 = vrot.lane.b32.xlu0 %v386, 16
      %v825 = vpop.permute.xlu0 %824
      %826 = vrot.lane.b32.xlu0 %v389, 16
      %v827 = vpop.permute.xlu0 %826
      %828 = vrot.lane.b32.xlu0 %v391, 16
      %v829 = vpop.permute.xlu0 %828
      %830 = vrot.lane.b32.xlu0 %v394, 16
      %v831 = vpop.permute.xlu0 %830
      %832 = vrot.lane.b32.xlu0 %v396, 16
      %v833 = vpop.permute.xlu0 %832
      %834 = vrot.lane.b32.xlu0 %v771, 16
      %v835 = vpop.permute.xlu0 %834
      %836 = vrot.lane.b32.xlu0 %v773, 16
      %v837 = vpop.permute.xlu0 %836
      %v870 = vrot.slane %v262, 2
      %v871 = vrot.slane %v263, 2
      %v872 = vsel %vm493, %v870, %v871
      %v873 = vrot.slane %v264, 2
      %v874 = vsel %vm493, %v871, %v873
      %875 = vrot.lane.b32.xlu0 %v501, 20
      %v876 = vpop.permute.xlu0 %875
      %877 = vrot.lane.b32.xlu0 %v503, 20
      %v878 = vpop.permute.xlu0 %877
      %879 = vrot.lane.b32.xlu0 %v506, 20
      %v880 = vpop.permute.xlu0 %879
      %881 = vrot.lane.b32.xlu0 %v508, 20
      %v882 = vpop.permute.xlu0 %881
      %883 = vrot.lane.b32.xlu0 %v511, 20
      %v884 = vpop.permute.xlu0 %883
      %885 = vrot.lane.b32.xlu0 %v513, 20
      %v886 = vpop.permute.xlu0 %885
      %887 = vrot.lane.b32.xlu0 %v516, 20
      %v888 = vpop.permute.xlu0 %887
      %889 = vrot.lane.b32.xlu0 %v518, 20
      %v890 = vpop.permute.xlu0 %889
      %891 = vrot.lane.b32.xlu0 %v521, 20
      %v892 = vpop.permute.xlu0 %891
      %893 = vrot.lane.b32.xlu0 %v523, 20
      %v894 = vpop.permute.xlu0 %893
      %895 = vrot.lane.b32.xlu0 %v526, 20
      %v896 = vpop.permute.xlu0 %895
      %897 = vrot.lane.b32.xlu0 %v528, 20
      %v898 = vpop.permute.xlu0 %897
      %899 = vrot.lane.b32.xlu0 %v531, 20
      %v900 = vpop.permute.xlu0 %899
      %901 = vrot.lane.b32.xlu0 %v533, 20
      %v902 = vpop.permute.xlu0 %901
      %903 = vrot.lane.b32.xlu0 %v536, 20
      %v904 = vpop.permute.xlu0 %903
      %905 = vrot.lane.b32.xlu0 %v538, 20
      %v906 = vpop.permute.xlu0 %905
      %907 = vrot.lane.b32.xlu0 %v541, 20
      %v908 = vpop.permute.xlu0 %907
      %909 = vrot.lane.b32.xlu0 %v543, 20
      %v910 = vpop.permute.xlu0 %909
      %911 = vrot.lane.b32.xlu0 %v546, 20
      %v912 = vpop.permute.xlu0 %911
      %913 = vrot.lane.b32.xlu0 %v548, 20
      %v914 = vpop.permute.xlu0 %913
      %915 = vrot.lane.b32.xlu0 %v551, 20
      %v916 = vpop.permute.xlu0 %915
      %917 = vrot.lane.b32.xlu0 %v553, 20
      %v918 = vpop.permute.xlu0 %917
      %919 = vrot.lane.b32.xlu0 %v556, 20
      %v920 = vpop.permute.xlu0 %919
      %921 = vrot.lane.b32.xlu0 %v558, 20
      %v922 = vpop.permute.xlu0 %921
      %923 = vrot.lane.b32.xlu0 %v561, 20
      %v924 = vpop.permute.xlu0 %923
      %925 = vrot.lane.b32.xlu0 %v563, 20
      %v926 = vpop.permute.xlu0 %925
      %927 = vrot.lane.b32.xlu0 %v566, 20
      %v928 = vpop.permute.xlu0 %927
      %929 = vrot.lane.b32.xlu0 %v568, 20
      %v930 = vpop.permute.xlu0 %929
      %931 = vrot.lane.b32.xlu0 %v571, 20
      %v932 = vpop.permute.xlu0 %931
      %933 = vrot.lane.b32.xlu0 %v573, 20
      %v934 = vpop.permute.xlu0 %933
      %935 = vrot.lane.b32.xlu0 %v872, 20
      %v936 = vpop.permute.xlu0 %935
      %937 = vrot.lane.b32.xlu0 %v874, 20
      %v938 = vpop.permute.xlu0 %937
      %973 = vrot.lane.b32.xlu0 %v220, 24
      %v974 = vpop.permute.xlu0 %973
      %975 = vrot.lane.b32.xlu0 %v221, 24
      %v976 = vpop.permute.xlu0 %975
      %977 = vrot.lane.b32.xlu0 %v223, 24
      %v978 = vpop.permute.xlu0 %977
      %979 = vrot.lane.b32.xlu0 %v224, 24
      %v980 = vpop.permute.xlu0 %979
      %981 = vrot.lane.b32.xlu0 %v226, 24
      %v982 = vpop.permute.xlu0 %981
      %983 = vrot.lane.b32.xlu0 %v227, 24
      %v984 = vpop.permute.xlu0 %983
      %985 = vrot.lane.b32.xlu0 %v229, 24
      %v986 = vpop.permute.xlu0 %985
      %987 = vrot.lane.b32.xlu0 %v230, 24
      %v988 = vpop.permute.xlu0 %987
      %989 = vrot.lane.b32.xlu0 %v232, 24
      %v990 = vpop.permute.xlu0 %989
      %991 = vrot.lane.b32.xlu0 %v233, 24
      %v992 = vpop.permute.xlu0 %991
      %993 = vrot.lane.b32.xlu0 %v235, 24
      %v994 = vpop.permute.xlu0 %993
      %995 = vrot.lane.b32.xlu0 %v236, 24
      %v996 = vpop.permute.xlu0 %995
      %997 = vrot.lane.b32.xlu0 %v238, 24
      %v998 = vpop.permute.xlu0 %997
      %999 = vrot.lane.b32.xlu0 %v239, 24
      %v1000 = vpop.permute.xlu0 %999
      %1001 = vrot.lane.b32.xlu0 %v241, 24
      %v1002 = vpop.permute.xlu0 %1001
      %1003 = vrot.lane.b32.xlu0 %v242, 24
      %v1004 = vpop.permute.xlu0 %1003
      %1005 = vrot.lane.b32.xlu0 %v244, 24
      %v1006 = vpop.permute.xlu0 %1005
      %1007 = vrot.lane.b32.xlu0 %v245, 24
      %v1008 = vpop.permute.xlu0 %1007
      %1009 = vrot.lane.b32.xlu0 %v247, 24
      %v1010 = vpop.permute.xlu0 %1009
      %1011 = vrot.lane.b32.xlu0 %v248, 24
      %v1012 = vpop.permute.xlu0 %1011
      %1013 = vrot.lane.b32.xlu0 %v250, 24
      %v1014 = vpop.permute.xlu0 %1013
      %1015 = vrot.lane.b32.xlu0 %v251, 24
      %v1016 = vpop.permute.xlu0 %1015
      %1017 = vrot.lane.b32.xlu0 %v253, 24
      %v1018 = vpop.permute.xlu0 %1017
      %1019 = vrot.lane.b32.xlu0 %v254, 24
      %v1020 = vpop.permute.xlu0 %1019
      %1021 = vrot.lane.b32.xlu0 %v256, 24
      %v1022 = vpop.permute.xlu0 %1021
      %1023 = vrot.lane.b32.xlu0 %v257, 24
      %v1024 = vpop.permute.xlu0 %1023
      %1025 = vrot.lane.b32.xlu0 %v259, 24
      %v1026 = vpop.permute.xlu0 %1025
      %1027 = vrot.lane.b32.xlu0 %v260, 24
      %v1028 = vpop.permute.xlu0 %1027
      %1029 = vrot.lane.b32.xlu0 %v262, 24
      %v1030 = vpop.permute.xlu0 %1029
      %1031 = vrot.lane.b32.xlu0 %v263, 24
      %v1032 = vpop.permute.xlu0 %1031
      %1033 = vrot.lane.b32.xlu0 %v265, 24
      %v1034 = vpop.permute.xlu0 %1033
      %1035 = vrot.lane.b32.xlu0 %v266, 24
      %v1036 = vpop.permute.xlu0 %1035
      %v1070 = vrot.slane %v265, 1
      %v1071 = vrot.slane %v266, 1
      %v1072 = vsel %vm316, %v1070, %v1071
      %v1073 = vrot.slane %v267, 1
      %v1074 = vsel %vm316, %v1071, %v1073
      %1075 = vrot.lane.b32.xlu0 %v329, 28
      %v1076 = vpop.permute.xlu0 %1075
      %1077 = vrot.lane.b32.xlu0 %v331, 28
      %v1078 = vpop.permute.xlu0 %1077
      %1079 = vrot.lane.b32.xlu0 %v334, 28
      %v1080 = vpop.permute.xlu0 %1079
      %1081 = vrot.lane.b32.xlu0 %v336, 28
      %v1082 = vpop.permute.xlu0 %1081
      %1083 = vrot.lane.b32.xlu0 %v339, 28
      %v1084 = vpop.permute.xlu0 %1083
      %1085 = vrot.lane.b32.xlu0 %v341, 28
      %v1086 = vpop.permute.xlu0 %1085
      %1087 = vrot.lane.b32.xlu0 %v344, 28
      %v1088 = vpop.permute.xlu0 %1087
      %1089 = vrot.lane.b32.xlu0 %v346, 28
      %v1090 = vpop.permute.xlu0 %1089
      %1091 = vrot.lane.b32.xlu0 %v349, 28
      %v1092 = vpop.permute.xlu0 %1091
      %1093 = vrot.lane.b32.xlu0 %v351, 28
      %v1094 = vpop.permute.xlu0 %1093
      %1095 = vrot.lane.b32.xlu0 %v354, 28
      %v1096 = vpop.permute.xlu0 %1095
      %1097 = vrot.lane.b32.xlu0 %v356, 28
      %v1098 = vpop.permute.xlu0 %1097
      %1099 = vrot.lane.b32.xlu0 %v359, 28
      %v1100 = vpop.permute.xlu0 %1099
      %1101 = vrot.lane.b32.xlu0 %v361, 28
      %v1102 = vpop.permute.xlu0 %1101
      %1103 = vrot.lane.b32.xlu0 %v364, 28
      %v1104 = vpop.permute.xlu0 %1103
      %1105 = vrot.lane.b32.xlu0 %v366, 28
      %v1106 = vpop.permute.xlu0 %1105
      %1107 = vrot.lane.b32.xlu0 %v369, 28
      %v1108 = vpop.permute.xlu0 %1107
      %1109 = vrot.lane.b32.xlu0 %v371, 28
      %v1110 = vpop.permute.xlu0 %1109
      %1111 = vrot.lane.b32.xlu0 %v374, 28
      %v1112 = vpop.permute.xlu0 %1111
      %1113 = vrot.lane.b32.xlu0 %v376, 28
      %v1114 = vpop.permute.xlu0 %1113
      %1115 = vrot.lane.b32.xlu0 %v379, 28
      %v1116 = vpop.permute.xlu0 %1115
      %1117 = vrot.lane.b32.xlu0 %v381, 28
      %v1118 = vpop.permute.xlu0 %1117
      %1119 = vrot.lane.b32.xlu0 %v384, 28
      %v1120 = vpop.permute.xlu0 %1119
      %1121 = vrot.lane.b32.xlu0 %v386, 28
      %v1122 = vpop.permute.xlu0 %1121
      %1123 = vrot.lane.b32.xlu0 %v389, 28
      %v1124 = vpop.permute.xlu0 %1123
      %1125 = vrot.lane.b32.xlu0 %v391, 28
      %v1126 = vpop.permute.xlu0 %1125
      %1127 = vrot.lane.b32.xlu0 %v394, 28
      %v1128 = vpop.permute.xlu0 %1127
      %1129 = vrot.lane.b32.xlu0 %v396, 28
      %v1130 = vpop.permute.xlu0 %1129
      %1131 = vrot.lane.b32.xlu0 %v771, 28
      %v1132 = vpop.permute.xlu0 %1131
      %1133 = vrot.lane.b32.xlu0 %v773, 28
      %v1134 = vpop.permute.xlu0 %1133
      %1135 = vrot.lane.b32.xlu0 %v1072, 28
      %v1136 = vpop.permute.xlu0 %1135
      %1137 = vrot.lane.b32.xlu0 %v1074, 28
      %v1138 = vpop.permute.xlu0 %1137
      %v1171 = vrot.slane %v265, 2
      %v1172 = vrot.slane %v266, 2
      %v1173 = vsel %vm493, %v1171, %v1172
      %v1174 = vrot.slane %v267, 2
      %v1175 = vsel %vm493, %v1172, %v1174
      %1176 = vrot.lane.b32.xlu0 %v506, 32
      %v1177 = vpop.permute.xlu0 %1176
      %1178 = vrot.lane.b32.xlu0 %v508, 32
      %v1179 = vpop.permute.xlu0 %1178
      %1180 = vrot.lane.b32.xlu0 %v511, 32
      %v1181 = vpop.permute.xlu0 %1180
      %1182 = vrot.lane.b32.xlu0 %v513, 32
      %v1183 = vpop.permute.xlu0 %1182
      %1184 = vrot.lane.b32.xlu0 %v516, 32
      %v1185 = vpop.permute.xlu0 %1184
      %1186 = vrot.lane.b32.xlu0 %v518, 32
      %v1187 = vpop.permute.xlu0 %1186
      %1188 = vrot.lane.b32.xlu0 %v521, 32
      %v1189 = vpop.permute.xlu0 %1188
      %1190 = vrot.lane.b32.xlu0 %v523, 32
      %v1191 = vpop.permute.xlu0 %1190
      %1192 = vrot.lane.b32.xlu0 %v526, 32
      %v1193 = vpop.permute.xlu0 %1192
      %1194 = vrot.lane.b32.xlu0 %v528, 32
      %v1195 = vpop.permute.xlu0 %1194
      %1196 = vrot.lane.b32.xlu0 %v531, 32
      %v1197 = vpop.permute.xlu0 %1196
      %1198 = vrot.lane.b32.xlu0 %v533, 32
      %v1199 = vpop.permute.xlu0 %1198
      %1200 = vrot.lane.b32.xlu0 %v536, 32
      %v1201 = vpop.permute.xlu0 %1200
      %1202 = vrot.lane.b32.xlu0 %v538, 32
      %v1203 = vpop.permute.xlu0 %1202
      %1204 = vrot.lane.b32.xlu0 %v541, 32
      %v1205 = vpop.permute.xlu0 %1204
      %1206 = vrot.lane.b32.xlu0 %v543, 32
      %v1207 = vpop.permute.xlu0 %1206
      %1208 = vrot.lane.b32.xlu0 %v546, 32
      %v1209 = vpop.permute.xlu0 %1208
      %1210 = vrot.lane.b32.xlu0 %v548, 32
      %v1211 = vpop.permute.xlu0 %1210
      %1212 = vrot.lane.b32.xlu0 %v551, 32
      %v1213 = vpop.permute.xlu0 %1212
      %1214 = vrot.lane.b32.xlu0 %v553, 32
      %v1215 = vpop.permute.xlu0 %1214
      %1216 = vrot.lane.b32.xlu0 %v556, 32
      %v1217 = vpop.permute.xlu0 %1216
      %1218 = vrot.lane.b32.xlu0 %v558, 32
      %v1219 = vpop.permute.xlu0 %1218
      %1220 = vrot.lane.b32.xlu0 %v561, 32
      %v1221 = vpop.permute.xlu0 %1220
      %1222 = vrot.lane.b32.xlu0 %v563, 32
      %v1223 = vpop.permute.xlu0 %1222
      %1224 = vrot.lane.b32.xlu0 %v566, 32
      %v1225 = vpop.permute.xlu0 %1224
      %1226 = vrot.lane.b32.xlu0 %v568, 32
      %v1227 = vpop.permute.xlu0 %1226
      %1228 = vrot.lane.b32.xlu0 %v571, 32
      %v1229 = vpop.permute.xlu0 %1228
      %1230 = vrot.lane.b32.xlu0 %v573, 32
      %v1231 = vpop.permute.xlu0 %1230
      %1232 = vrot.lane.b32.xlu0 %v872, 32
      %v1233 = vpop.permute.xlu0 %1232
      %1234 = vrot.lane.b32.xlu0 %v874, 32
      %v1235 = vpop.permute.xlu0 %1234
      %1236 = vrot.lane.b32.xlu0 %v1173, 32
      %v1237 = vpop.permute.xlu0 %1236
      %1238 = vrot.lane.b32.xlu0 %v1175, 32
      %v1239 = vpop.permute.xlu0 %1238
      %vm1272 = vcmask 31744
      %v1273 = vsel %vm1272, %v214, %v398
      %v1274 = vsel %vm1272, %v215, %v400
      %v1275 = vsel %vm1272, %v217, %v402
      %v1276 = vsel %vm1272, %v218, %v404
      %v1277 = vsel %vm1272, %v220, %v406
      %v1278 = vsel %vm1272, %v221, %v408
      %v1279 = vsel %vm1272, %v223, %v410
      %v1280 = vsel %vm1272, %v224, %v412
      %v1281 = vsel %vm1272, %v226, %v414
      %v1282 = vsel %vm1272, %v227, %v416
      %v1283 = vsel %vm1272, %v229, %v418
      %v1284 = vsel %vm1272, %v230, %v420
      %v1285 = vsel %vm1272, %v232, %v422
      %v1286 = vsel %vm1272, %v233, %v424
      %v1287 = vsel %vm1272, %v235, %v426
      %v1288 = vsel %vm1272, %v236, %v428
      %v1289 = vsel %vm1272, %v238, %v430
      %v1290 = vsel %vm1272, %v239, %v432
      %v1291 = vsel %vm1272, %v241, %v434
      %v1292 = vsel %vm1272, %v242, %v436
      %v1293 = vsel %vm1272, %v244, %v438
      %v1294 = vsel %vm1272, %v245, %v440
      %v1295 = vsel %vm1272, %v247, %v442
      %v1296 = vsel %vm1272, %v248, %v444
      %v1297 = vsel %vm1272, %v250, %v446
      %v1298 = vsel %vm1272, %v251, %v448
      %v1299 = vsel %vm1272, %v253, %v450
      %v1300 = vsel %vm1272, %v254, %v452
      %v1301 = vsel %vm1272, %v256, %v454
      %v1302 = vsel %vm1272, %v257, %v456
      %v1303 = vsel %vm1272, %v259, %v458
      %v1304 = vsel %vm1272, %v260, %v460
      %vm1305 = vcmask 64512
      %v1306 = vsel %vm1305, %v1273, %v575
      %v1307 = vsel %vm1305, %v1274, %v577
      %v1308 = vsel %vm1305, %v1275, %v579
      %v1309 = vsel %vm1305, %v1276, %v581
      %v1310 = vsel %vm1305, %v1277, %v583
      %v1311 = vsel %vm1305, %v1278, %v585
      %v1312 = vsel %vm1305, %v1279, %v587
      %v1313 = vsel %vm1305, %v1280, %v589
      %v1314 = vsel %vm1305, %v1281, %v591
      %v1315 = vsel %vm1305, %v1282, %v593
      %v1316 = vsel %vm1305, %v1283, %v595
      %v1317 = vsel %vm1305, %v1284, %v597
      %v1318 = vsel %vm1305, %v1285, %v599
      %v1319 = vsel %vm1305, %v1286, %v601
      %v1320 = vsel %vm1305, %v1287, %v603
      %v1321 = vsel %vm1305, %v1288, %v605
      %v1322 = vsel %vm1305, %v1289, %v607
      %v1323 = vsel %vm1305, %v1290, %v609
      %v1324 = vsel %vm1305, %v1291, %v611
      %v1325 = vsel %vm1305, %v1292, %v613
      %v1326 = vsel %vm1305, %v1293, %v615
      %v1327 = vsel %vm1305, %v1294, %v617
      %v1328 = vsel %vm1305, %v1295, %v619
      %v1329 = vsel %vm1305, %v1296, %v621
      %v1330 = vsel %vm1305, %v1297, %v623
      %v1331 = vsel %vm1305, %v1298, %v625
      %v1332 = vsel %vm1305, %v1299, %v627
      %v1333 = vsel %vm1305, %v1300, %v629
      %v1334 = vsel %vm1305, %v1301, %v631
      %v1335 = vsel %vm1305, %v1302, %v633
      %v1336 = vsel %vm1305, %v1303, %v635
      %v1337 = vsel %vm1305, %v1304, %v637
      %vm1338 = vcmask 97280
      %v1339 = vsel %vm1338, %v1306, %v673
      %v1340 = vsel %vm1338, %v1307, %v675
      %v1341 = vsel %vm1338, %v1308, %v677
      %v1342 = vsel %vm1338, %v1309, %v679
      %v1343 = vsel %vm1338, %v1310, %v681
      %v1344 = vsel %vm1338, %v1311, %v683
      %v1345 = vsel %vm1338, %v1312, %v685
      %v1346 = vsel %vm1338, %v1313, %v687
      %v1347 = vsel %vm1338, %v1314, %v689
      %v1348 = vsel %vm1338, %v1315, %v691
      %v1349 = vsel %vm1338, %v1316, %v693
      %v1350 = vsel %vm1338, %v1317, %v695
      %v1351 = vsel %vm1338, %v1318, %v697
      %v1352 = vsel %vm1338, %v1319, %v699
      %v1353 = vsel %vm1338, %v1320, %v701
      %v1354 = vsel %vm1338, %v1321, %v703
      %v1355 = vsel %vm1338, %v1322, %v705
      %v1356 = vsel %vm1338, %v1323, %v707
      %v1357 = vsel %vm1338, %v1324, %v709
      %v1358 = vsel %vm1338, %v1325, %v711
      %v1359 = vsel %vm1338, %v1326, %v713
      %v1360 = vsel %vm1338, %v1327, %v715
      %v1361 = vsel %vm1338, %v1328, %v717
      %v1362 = vsel %vm1338, %v1329, %v719
      %v1363 = vsel %vm1338, %v1330, %v721
      %v1364 = vsel %vm1338, %v1331, %v723
      %v1365 = vsel %vm1338, %v1332, %v725
      %v1366 = vsel %vm1338, %v1333, %v727
      %v1367 = vsel %vm1338, %v1334, %v729
      %v1368 = vsel %vm1338, %v1335, %v731
      %v1369 = vsel %vm1338, %v1336, %v733
      %v1370 = vsel %vm1338, %v1337, %v735
      %vm1371 = vcmask 130048
      %v1372 = vsel %vm1371, %v1339, %v775
      %v1373 = vsel %vm1371, %v1340, %v777
      %v1374 = vsel %vm1371, %v1341, %v779
      %v1375 = vsel %vm1371, %v1342, %v781
      %v1376 = vsel %vm1371, %v1343, %v783
      %v1377 = vsel %vm1371, %v1344, %v785
      %v1378 = vsel %vm1371, %v1345, %v787
      %v1379 = vsel %vm1371, %v1346, %v789
      %v1380 = vsel %vm1371, %v1347, %v791
      %v1381 = vsel %vm1371, %v1348, %v793
      %v1382 = vsel %vm1371, %v1349, %v795
      %v1383 = vsel %vm1371, %v1350, %v797
      %v1384 = vsel %vm1371, %v1351, %v799
      %v1385 = vsel %vm1371, %v1352, %v801
      %v1386 = vsel %vm1371, %v1353, %v803
      %v1387 = vsel %vm1371, %v1354, %v805
      %v1388 = vsel %vm1371, %v1355, %v807
      %v1389 = vsel %vm1371, %v1356, %v809
      %v1390 = vsel %vm1371, %v1357, %v811
      %v1391 = vsel %vm1371, %v1358, %v813
      %v1392 = vsel %vm1371, %v1359, %v815
      %v1393 = vsel %vm1371, %v1360, %v817
      %v1394 = vsel %vm1371, %v1361, %v819
      %v1395 = vsel %vm1371, %v1362, %v821
      %v1396 = vsel %vm1371, %v1363, %v823
      %v1397 = vsel %vm1371, %v1364, %v825
      %v1398 = vsel %vm1371, %v1365, %v827
      %v1399 = vsel %vm1371, %v1366, %v829
      %v1400 = vsel %vm1371, %v1367, %v831
      %v1401 = vsel %vm1371, %v1368, %v833
      %v1402 = vsel %vm1371, %v1369, %v835
      %v1403 = vsel %vm1371, %v1370, %v837
      %vm1404 = vcmask 162816
      %v1405 = vsel %vm1404, %v1372, %v876
      %v1406 = vsel %vm1404, %v1373, %v878
      %v1407 = vsel %vm1404, %v1374, %v880
      %v1408 = vsel %vm1404, %v1375, %v882
      %v1409 = vsel %vm1404, %v1376, %v884
      %v1410 = vsel %vm1404, %v1377, %v886
      %v1411 = vsel %vm1404, %v1378, %v888
      %v1412 = vsel %vm1404, %v1379, %v890
      %v1413 = vsel %vm1404, %v1380, %v892
      %v1414 = vsel %vm1404, %v1381, %v894
      %v1415 = vsel %vm1404, %v1382, %v896
      %v1416 = vsel %vm1404, %v1383, %v898
      %v1417 = vsel %vm1404, %v1384, %v900
      %v1418 = vsel %vm1404, %v1385, %v902
      %v1419 = vsel %vm1404, %v1386, %v904
      %v1420 = vsel %vm1404, %v1387, %v906
      %v1421 = vsel %vm1404, %v1388, %v908
      %v1422 = vsel %vm1404, %v1389, %v910
      %v1423 = vsel %vm1404, %v1390, %v912
      %v1424 = vsel %vm1404, %v1391, %v914
      %v1425 = vsel %vm1404, %v1392, %v916
      %v1426 = vsel %vm1404, %v1393, %v918
      %v1427 = vsel %vm1404, %v1394, %v920
      %v1428 = vsel %vm1404, %v1395, %v922
      %v1429 = vsel %vm1404, %v1396, %v924
      %v1430 = vsel %vm1404, %v1397, %v926
      %v1431 = vsel %vm1404, %v1398, %v928
      %v1432 = vsel %vm1404, %v1399, %v930
      %v1433 = vsel %vm1404, %v1400, %v932
      %v1434 = vsel %vm1404, %v1401, %v934
      %v1435 = vsel %vm1404, %v1402, %v936
      %v1436 = vsel %vm1404, %v1403, %v938
      %vm1437 = vcmask 195584
      %v1438 = vsel %vm1437, %v1405, %v974
      %v1439 = vsel %vm1437, %v1406, %v976
      %v1440 = vsel %vm1437, %v1407, %v978
      %v1441 = vsel %vm1437, %v1408, %v980
      %v1442 = vsel %vm1437, %v1409, %v982
      %v1443 = vsel %vm1437, %v1410, %v984
      %v1444 = vsel %vm1437, %v1411, %v986
      %v1445 = vsel %vm1437, %v1412, %v988
      %v1446 = vsel %vm1437, %v1413, %v990
      %v1447 = vsel %vm1437, %v1414, %v992
      %v1448 = vsel %vm1437, %v1415, %v994
      %v1449 = vsel %vm1437, %v1416, %v996
      %v1450 = vsel %vm1437, %v1417, %v998
      %v1451 = vsel %vm1437, %v1418, %v1000
      %v1452 = vsel %vm1437, %v1419, %v1002
      %v1453 = vsel %vm1437, %v1420, %v1004
      %v1454 = vsel %vm1437, %v1421, %v1006
      %v1455 = vsel %vm1437, %v1422, %v1008
      %v1456 = vsel %vm1437, %v1423, %v1010
      %v1457 = vsel %vm1437, %v1424, %v1012
      %v1458 = vsel %vm1437, %v1425, %v1014
      %v1459 = vsel %vm1437, %v1426, %v1016
      %v1460 = vsel %vm1437, %v1427, %v1018
      %v1461 = vsel %vm1437, %v1428, %v1020
      %v1462 = vsel %vm1437, %v1429, %v1022
      %v1463 = vsel %vm1437, %v1430, %v1024
      %v1464 = vsel %vm1437, %v1431, %v1026
      %v1465 = vsel %vm1437, %v1432, %v1028
      %v1466 = vsel %vm1437, %v1433, %v1030
      %v1467 = vsel %vm1437, %v1434, %v1032
      %v1468 = vsel %vm1437, %v1435, %v1034
      %v1469 = vsel %vm1437, %v1436, %v1036
      %vm1470 = vcmask 228352
      %v1471 = vsel %vm1470, %v1438, %v1076
      %v1472 = vsel %vm1470, %v1439, %v1078
      %v1473 = vsel %vm1470, %v1440, %v1080
      %v1474 = vsel %vm1470, %v1441, %v1082
      %v1475 = vsel %vm1470, %v1442, %v1084
      %v1476 = vsel %vm1470, %v1443, %v1086
      %v1477 = vsel %vm1470, %v1444, %v1088
      %v1478 = vsel %vm1470, %v1445, %v1090
      %v1479 = vsel %vm1470, %v1446, %v1092
      %v1480 = vsel %vm1470, %v1447, %v1094
      %v1481 = vsel %vm1470, %v1448, %v1096
      %v1482 = vsel %vm1470, %v1449, %v1098
      %v1483 = vsel %vm1470, %v1450, %v1100
      %v1484 = vsel %vm1470, %v1451, %v1102
      %v1485 = vsel %vm1470, %v1452, %v1104
      %v1486 = vsel %vm1470, %v1453, %v1106
      %v1487 = vsel %vm1470, %v1454, %v1108
      %v1488 = vsel %vm1470, %v1455, %v1110
      %v1489 = vsel %vm1470, %v1456, %v1112
      %v1490 = vsel %vm1470, %v1457, %v1114
      %v1491 = vsel %vm1470, %v1458, %v1116
      %v1492 = vsel %vm1470, %v1459, %v1118
      %v1493 = vsel %vm1470, %v1460, %v1120
      %v1494 = vsel %vm1470, %v1461, %v1122
      %v1495 = vsel %vm1470, %v1462, %v1124
      %v1496 = vsel %vm1470, %v1463, %v1126
      %v1497 = vsel %vm1470, %v1464, %v1128
      %v1498 = vsel %vm1470, %v1465, %v1130
      %v1499 = vsel %vm1470, %v1466, %v1132
      %v1500 = vsel %vm1470, %v1467, %v1134
      %v1501 = vsel %vm1470, %v1468, %v1136
      %v1502 = vsel %vm1470, %v1469, %v1138
      %vm1503 = vcmask 261120
      %v1504 = vsel %vm1503, %v1471, %v1177
      %v1505 = vsel %vm1503, %v1472, %v1179
      %v1506 = vsel %vm1503, %v1473, %v1181
      %v1507 = vsel %vm1503, %v1474, %v1183
      %v1508 = vsel %vm1503, %v1475, %v1185
      %v1509 = vsel %vm1503, %v1476, %v1187
      %v1510 = vsel %vm1503, %v1477, %v1189
      %v1511 = vsel %vm1503, %v1478, %v1191
      %v1512 = vsel %vm1503, %v1479, %v1193
      %v1513 = vsel %vm1503, %v1480, %v1195
      %v1514 = vsel %vm1503, %v1481, %v1197
      %v1515 = vsel %vm1503, %v1482, %v1199
      %v1516 = vsel %vm1503, %v1483, %v1201
      %v1517 = vsel %vm1503, %v1484, %v1203
      %v1518 = vsel %vm1503, %v1485, %v1205
      %v1519 = vsel %vm1503, %v1486, %v1207
      %v1520 = vsel %vm1503, %v1487, %v1209
      %v1521 = vsel %vm1503, %v1488, %v1211
      %v1522 = vsel %vm1503, %v1489, %v1213
      %v1523 = vsel %vm1503, %v1490, %v1215
      %v1524 = vsel %vm1503, %v1491, %v1217
      %v1525 = vsel %vm1503, %v1492, %v1219
      %v1526 = vsel %vm1503, %v1493, %v1221
      %v1527 = vsel %vm1503, %v1494, %v1223
      %v1528 = vsel %vm1503, %v1495, %v1225
      %v1529 = vsel %vm1503, %v1496, %v1227
      %v1530 = vsel %vm1503, %v1497, %v1229
      %v1531 = vsel %vm1503, %v1498, %v1231
      %v1532 = vsel %vm1503, %v1499, %v1233
      %v1533 = vsel %vm1503, %v1500, %v1235
      %v1534 = vsel %vm1503, %v1501, %v1237
      %v1535 = vsel %vm1503, %v1502, %v1239
      %v1536 = vpack.c.bf16 %v1505, %v1504
      %v1537 = vpack.c.bf16 %v1507, %v1506
      %v1538 = vpack.c.bf16 %v1509, %v1508
      %v1539 = vpack.c.bf16 %v1511, %v1510
      %v1540 = vpack.c.bf16 %v1513, %v1512
      %v1541 = vpack.c.bf16 %v1515, %v1514
      %v1542 = vpack.c.bf16 %v1517, %v1516
      %v1543 = vpack.c.bf16 %v1519, %v1518
      %v1544 = vpack.c.bf16 %v1521, %v1520
      %v1545 = vpack.c.bf16 %v1523, %v1522
      %v1546 = vpack.c.bf16 %v1525, %v1524
      %v1547 = vpack.c.bf16 %v1527, %v1526
      %v1548 = vpack.c.bf16 %v1529, %v1528
      %v1549 = vpack.c.bf16 %v1531, %v1530
      %v1550 = vpack.c.bf16 %v1533, %v1532
      %v1551 = vpack.c.bf16 %v1535, %v1534
      %v1552 = vld [vmem:[%s1] sm:$0xf]
      %v1553 = vld [vmem:[%s1 + $0x4] sm:$0xf]
      %v1554 = vld [vmem:[%s1 + $0x8] sm:$0xf]
      %v1555 = vld [vmem:[%s1 + $0xc] sm:$0xf]
      %v1556 = vld [vmem:[%s1 + $0x10] sm:$0x3]
      %v1562 = vunpack.c.l.b16 %v1552
      %v1563 = vunpack.c.l.b16 %v1553
      %v1564 = vunpack.c.l.b16 %v1554
      %v1565 = vunpack.c.l.b16 %v1555
      %v1566 = vunpack.c.l.b16 %v1556
      %v1567 = vpack.c.b16 %v1563, %v1562
      %v1568 = vpack.c.b16 %v1565, %v1564
      %v1569 = vpack.c.b16 %v1566, %v1566
      %vm1572 = vcmask 293888
      %v1574 = vsel %vm1572, %v1536, 0
      %v1577 = vsel %vm1572, %v1537, 0
      %v1580 = vsel %vm1572, %v1538, 0
      %v1583 = vsel %vm1572, %v1539, 0
      %v1586 = vsel %vm1572, %v1540, 0
      %v1589 = vsel %vm1572, %v1541, 0
      %v1592 = vsel %vm1572, %v1542, 0
      %v1595 = vsel %vm1572, %v1543, 0
      %v1598 = vsel %vm1572, %v1544, 0
      %v1601 = vsel %vm1572, %v1545, 0
      %v1604 = vsel %vm1572, %v1546, 0
      %v1607 = vsel %vm1572, %v1547, 0
      %v1610 = vsel %vm1572, %v1548, 0
      %v1613 = vsel %vm1572, %v1549, 0
      %v1616 = vsel %vm1572, %v1550, 0
      %v1619 = vsel %vm1572, %v1551, 0
      %vm1621 = vcmask 1041408
      %v1623 = vsel %vm1621, %v1569, 0
      %1625 = vmatpush.bf16.msra.mxu0 0
      %1626 = vmatpush.bf16.msra.mxu0 0
      %1627 = vmatpush.bf16.msra.mxu0 0
      %1628 = vmatpush.bf16.msra.mxu0 0
      %1629 = vmatpush.bf16.msra.mxu0 0
      %1630 = vmatpush.bf16.msra.mxu0 %v1623
      %1631 = vmatpush.bf16.msra.mxu0 %v1568
      %1632 = vmatpush.bf16.msra.mxu0 %v1567
      %1633 = vmatmul.bf16.gmra.mxu0 %v1574
      %v1634 = vpop.f32.mrf.mxu0
      %v1635 = vadd.f32 0.0, %v1634
      %v1636 = vpop.f32.mrf.mxu0
      %v1637 = vadd.f32 0.0, %v1636
      %1638 = vmatmul.bf16.gmra.mxu0 %v1577
      %v1639 = vpop.f32.mrf.mxu0
      %v1640 = vadd.f32 0.0, %v1639
      %v1641 = vpop.f32.mrf.mxu0
      %v1642 = vadd.f32 0.0, %v1641
      %1643 = vmatmul.bf16.gmra.mxu0 %v1580
      %v1644 = vpop.f32.mrf.mxu0
      %v1645 = vadd.f32 0.0, %v1644
      %v1646 = vpop.f32.mrf.mxu0
      %v1647 = vadd.f32 0.0, %v1646
      %1648 = vmatmul.bf16.gmra.mxu0 %v1583
      %v1649 = vpop.f32.mrf.mxu0
      %v1650 = vadd.f32 0.0, %v1649
      %v1651 = vpop.f32.mrf.mxu0
      %v1652 = vadd.f32 0.0, %v1651
      %1653 = vmatmul.bf16.gmra.mxu0 %v1586
      %v1654 = vpop.f32.mrf.mxu0
      %v1655 = vadd.f32 0.0, %v1654
      %v1656 = vpop.f32.mrf.mxu0
      %v1657 = vadd.f32 0.0, %v1656
      %1658 = vmatmul.bf16.gmra.mxu0 %v1589
      %v1659 = vpop.f32.mrf.mxu0
      %v1660 = vadd.f32 0.0, %v1659
      %v1661 = vpop.f32.mrf.mxu0
      %v1662 = vadd.f32 0.0, %v1661
      %1663 = vmatmul.bf16.gmra.mxu0 %v1592
      %v1664 = vpop.f32.mrf.mxu0
      %v1665 = vadd.f32 0.0, %v1664
      %v1666 = vpop.f32.mrf.mxu0
      %v1667 = vadd.f32 0.0, %v1666
      %1668 = vmatmul.bf16.gmra.mxu0 %v1595
      %v1669 = vpop.f32.mrf.mxu0
      %v1670 = vadd.f32 0.0, %v1669
      %v1671 = vpop.f32.mrf.mxu0
      %v1672 = vadd.f32 0.0, %v1671
      %1673 = vmatmul.bf16.gmra.mxu0 %v1598
      %v1674 = vpop.f32.mrf.mxu0
      %v1675 = vadd.f32 0.0, %v1674
      %v1676 = vpop.f32.mrf.mxu0
      %v1677 = vadd.f32 0.0, %v1676
      %1678 = vmatmul.bf16.gmra.mxu0 %v1601
      %v1679 = vpop.f32.mrf.mxu0
      %v1680 = vadd.f32 0.0, %v1679
      %v1681 = vpop.f32.mrf.mxu0
      %v1682 = vadd.f32 0.0, %v1681
      %1683 = vmatmul.bf16.gmra.mxu0 %v1604
      %v1684 = vpop.f32.mrf.mxu0
      %v1685 = vadd.f32 0.0, %v1684
      %v1686 = vpop.f32.mrf.mxu0
      %v1687 = vadd.f32 0.0, %v1686
      %1688 = vmatmul.bf16.gmra.mxu0 %v1607
      %v1689 = vpop.f32.mrf.mxu0
      %v1690 = vadd.f32 0.0, %v1689
      %v1691 = vpop.f32.mrf.mxu0
      %v1692 = vadd.f32 0.0, %v1691
      %1693 = vmatmul.bf16.gmra.mxu0 %v1610
      %v1694 = vpop.f32.mrf.mxu0
      %v1695 = vadd.f32 0.0, %v1694
      %v1696 = vpop.f32.mrf.mxu0
      %v1697 = vadd.f32 0.0, %v1696
      %1698 = vmatmul.bf16.gmra.mxu0 %v1613
      %v1699 = vpop.f32.mrf.mxu0
      %v1700 = vadd.f32 0.0, %v1699
      %v1701 = vpop.f32.mrf.mxu0
      %v1702 = vadd.f32 0.0, %v1701
      %1703 = vmatmul.bf16.gmra.mxu0 %v1616
      %v1704 = vpop.f32.mrf.mxu0
      %v1705 = vadd.f32 0.0, %v1704
      %v1706 = vpop.f32.mrf.mxu0
      %v1707 = vadd.f32 0.0, %v1706
      %1708 = vmatmul.bf16.gmra.mxu0 %v1619
      %v1709 = vpop.f32.mrf.mxu0
      %v1710 = vadd.f32 0.0, %v1709
      %v1711 = vpop.f32.mrf.mxu0
      %v1712 = vadd.f32 0.0, %v1711
      %1713 = vdwg.mxu0
      %v1714 = vsel %vm1305, %v1635, 0.0
      %v1715 = vsel %vm1305, %v1637, 0.0
      %v1716 = vadd.f32 %v1714, %v1715
      %v1717 = vsel %vm1305, %v1640, 0.0
      %v1718 = vadd.f32 %v1716, %v1717
      %v1719 = vsel %vm1305, %v1642, 0.0
      %v1720 = vadd.f32 %v1718, %v1719
      %v1721 = vsel %vm1305, %v1645, 0.0
      %v1722 = vadd.f32 %v1720, %v1721
      %v1723 = vsel %vm1305, %v1647, 0.0
      %v1724 = vadd.f32 %v1722, %v1723
      %v1725 = vsel %vm1305, %v1650, 0.0
      %v1726 = vadd.f32 %v1724, %v1725
      %v1727 = vsel %vm1305, %v1652, 0.0
      %v1728 = vadd.f32 %v1726, %v1727
      %v1729 = vsel %vm1305, %v1655, 0.0
      %v1730 = vadd.f32 %v1728, %v1729
      %v1731 = vsel %vm1305, %v1657, 0.0
      %v1732 = vadd.f32 %v1730, %v1731
      %v1733 = vsel %vm1305, %v1660, 0.0
      %v1734 = vadd.f32 %v1732, %v1733
      %v1735 = vsel %vm1305, %v1662, 0.0
      %v1736 = vadd.f32 %v1734, %v1735
      %v1737 = vsel %vm1305, %v1665, 0.0
      %v1738 = vadd.f32 %v1736, %v1737
      %v1739 = vsel %vm1305, %v1667, 0.0
      %v1740 = vadd.f32 %v1738, %v1739
      %v1741 = vsel %vm1305, %v1670, 0.0
      %v1742 = vadd.f32 %v1740, %v1741
      %v1743 = vsel %vm1305, %v1672, 0.0
      %v1744 = vadd.f32 %v1742, %v1743
      %v1745 = vsel %vm1305, %v1675, 0.0
      %v1746 = vadd.f32 %v1744, %v1745
      %v1747 = vsel %vm1305, %v1677, 0.0
      %v1748 = vadd.f32 %v1746, %v1747
      %v1749 = vsel %vm1305, %v1680, 0.0
      %v1750 = vadd.f32 %v1748, %v1749
      %v1751 = vsel %vm1305, %v1682, 0.0
      %v1752 = vadd.f32 %v1750, %v1751
      %v1753 = vsel %vm1305, %v1685, 0.0
      %v1754 = vadd.f32 %v1752, %v1753
      %v1755 = vsel %vm1305, %v1687, 0.0
      %v1756 = vadd.f32 %v1754, %v1755
      %v1757 = vsel %vm1305, %v1690, 0.0
      %v1758 = vadd.f32 %v1756, %v1757
      %v1759 = vsel %vm1305, %v1692, 0.0
      %v1760 = vadd.f32 %v1758, %v1759
      %v1761 = vsel %vm1305, %v1695, 0.0
      %v1762 = vadd.f32 %v1760, %v1761
      %v1763 = vsel %vm1305, %v1697, 0.0
      %v1764 = vadd.f32 %v1762, %v1763
      %v1765 = vsel %vm1305, %v1700, 0.0
      %v1766 = vadd.f32 %v1764, %v1765
      %v1767 = vsel %vm1305, %v1702, 0.0
      %v1768 = vadd.f32 %v1766, %v1767
      %v1769 = vsel %vm1305, %v1705, 0.0
      %v1770 = vadd.f32 %v1768, %v1769
      %v1771 = vsel %vm1305, %v1707, 0.0
      %v1772 = vadd.f32 %v1770, %v1771
      %v1773 = vsel %vm1305, %v1710, 0.0
      %v1774 = vadd.f32 %v1772, %v1773
      %v1775 = vsel %vm1305, %v1712, 0.0
      %v1776 = vadd.f32 %v1774, %v1775
      %v1777 = vrot.slane %v1776, 4
      %v1778 = vadd.f32 %v1776, %v1777
      %v1779 = vrot.slane %v1778, 2
      %v1780 = vadd.f32 %v1778, %v1779
      %v1781 = vrot.slane %v1780, 1
      %v1782 = vadd.f32 %v1780, %v1781
      %v1783 = vmul.f32 %v1782, 0.00390625
      %v1784 = vsub.f32 %v1635, %v1783
      %v1785 = vsub.f32 %v1637, %v1783
      %v1786 = vsub.f32 %v1640, %v1783
      %v1787 = vsub.f32 %v1642, %v1783
      %v1788 = vsub.f32 %v1645, %v1783
      %v1789 = vsub.f32 %v1647, %v1783
      %v1790 = vsub.f32 %v1650, %v1783
      %v1791 = vsub.f32 %v1652, %v1783
      %v1792 = vsub.f32 %v1655, %v1783
      %v1793 = vsub.f32 %v1657, %v1783
      %v1794 = vsub.f32 %v1660, %v1783
      %v1795 = vsub.f32 %v1662, %v1783
      %v1796 = vsub.f32 %v1665, %v1783
      %v1797 = vsub.f32 %v1667, %v1783
      %v1798 = vsub.f32 %v1670, %v1783
      %v1799 = vsub.f32 %v1672, %v1783
      %v1800 = vsub.f32 %v1675, %v1783
      %v1801 = vsub.f32 %v1677, %v1783
      %v1802 = vsub.f32 %v1680, %v1783
      %v1803 = vsub.f32 %v1682, %v1783
      %v1804 = vsub.f32 %v1685, %v1783
      %v1805 = vsub.f32 %v1687, %v1783
      %v1806 = vsub.f32 %v1690, %v1783
      %v1807 = vsub.f32 %v1692, %v1783
      %v1808 = vsub.f32 %v1695, %v1783
      %v1809 = vsub.f32 %v1697, %v1783
      %v1810 = vsub.f32 %v1700, %v1783
      %v1811 = vsub.f32 %v1702, %v1783
      %v1812 = vsub.f32 %v1705, %v1783
      %v1813 = vsub.f32 %v1707, %v1783
      %v1814 = vsub.f32 %v1710, %v1783
      %v1815 = vsub.f32 %v1712, %v1783
      %v1816 = vmul.f32 %v1784, %v1784
      %v1817 = vmul.f32 %v1785, %v1785
      %v1818 = vmul.f32 %v1786, %v1786
      %v1819 = vmul.f32 %v1787, %v1787
      %v1820 = vmul.f32 %v1788, %v1788
      %v1821 = vmul.f32 %v1789, %v1789
      %v1822 = vmul.f32 %v1790, %v1790
      %v1823 = vmul.f32 %v1791, %v1791
      %v1824 = vmul.f32 %v1792, %v1792
      %v1825 = vmul.f32 %v1793, %v1793
      %v1826 = vmul.f32 %v1794, %v1794
      %v1827 = vmul.f32 %v1795, %v1795
      %v1828 = vmul.f32 %v1796, %v1796
      %v1829 = vmul.f32 %v1797, %v1797
      %v1830 = vmul.f32 %v1798, %v1798
      %v1831 = vmul.f32 %v1799, %v1799
      %v1832 = vmul.f32 %v1800, %v1800
      %v1833 = vmul.f32 %v1801, %v1801
      %v1834 = vmul.f32 %v1802, %v1802
      %v1835 = vmul.f32 %v1803, %v1803
      %v1836 = vmul.f32 %v1804, %v1804
      %v1837 = vmul.f32 %v1805, %v1805
      %v1838 = vmul.f32 %v1806, %v1806
      %v1839 = vmul.f32 %v1807, %v1807
      %v1840 = vmul.f32 %v1808, %v1808
      %v1841 = vmul.f32 %v1809, %v1809
      %v1842 = vmul.f32 %v1810, %v1810
      %v1843 = vmul.f32 %v1811, %v1811
      %v1844 = vmul.f32 %v1812, %v1812
      %v1845 = vmul.f32 %v1813, %v1813
      %v1846 = vmul.f32 %v1814, %v1814
      %v1847 = vmul.f32 %v1815, %v1815
      %v1848 = vsel %vm1305, %v1816, 0.0
      %v1849 = vsel %vm1305, %v1817, 0.0
      %v1850 = vadd.f32 %v1848, %v1849
      %v1851 = vsel %vm1305, %v1818, 0.0
      %v1852 = vadd.f32 %v1850, %v1851
      %v1853 = vsel %vm1305, %v1819, 0.0
      %v1854 = vadd.f32 %v1852, %v1853
      %v1855 = vsel %vm1305, %v1820, 0.0
      %v1856 = vadd.f32 %v1854, %v1855
      %v1857 = vsel %vm1305, %v1821, 0.0
      %v1858 = vadd.f32 %v1856, %v1857
      %v1859 = vsel %vm1305, %v1822, 0.0
      %v1860 = vadd.f32 %v1858, %v1859
      %v1861 = vsel %vm1305, %v1823, 0.0
      %v1862 = vadd.f32 %v1860, %v1861
      %v1863 = vsel %vm1305, %v1824, 0.0
      %v1864 = vadd.f32 %v1862, %v1863
      %v1865 = vsel %vm1305, %v1825, 0.0
      %v1866 = vadd.f32 %v1864, %v1865
      %v1867 = vsel %vm1305, %v1826, 0.0
      %v1868 = vadd.f32 %v1866, %v1867
      %v1869 = vsel %vm1305, %v1827, 0.0
      %v1870 = vadd.f32 %v1868, %v1869
      %v1871 = vsel %vm1305, %v1828, 0.0
      %v1872 = vadd.f32 %v1870, %v1871
      %v1873 = vsel %vm1305, %v1829, 0.0
      %v1874 = vadd.f32 %v1872, %v1873
      %v1875 = vsel %vm1305, %v1830, 0.0
      %v1876 = vadd.f32 %v1874, %v1875
      %v1877 = vsel %vm1305, %v1831, 0.0
      %v1878 = vadd.f32 %v1876, %v1877
      %v1879 = vsel %vm1305, %v1832, 0.0
      %v1880 = vadd.f32 %v1878, %v1879
      %v1881 = vsel %vm1305, %v1833, 0.0
      %v1882 = vadd.f32 %v1880, %v1881
      %v1883 = vsel %vm1305, %v1834, 0.0
      %v1884 = vadd.f32 %v1882, %v1883
      %v1885 = vsel %vm1305, %v1835, 0.0
      %v1886 = vadd.f32 %v1884, %v1885
      %v1887 = vsel %vm1305, %v1836, 0.0
      %v1888 = vadd.f32 %v1886, %v1887
      %v1889 = vsel %vm1305, %v1837, 0.0
      %v1890 = vadd.f32 %v1888, %v1889
      %v1891 = vsel %vm1305, %v1838, 0.0
      %v1892 = vadd.f32 %v1890, %v1891
      %v1893 = vsel %vm1305, %v1839, 0.0
      %v1894 = vadd.f32 %v1892, %v1893
      %v1895 = vsel %vm1305, %v1840, 0.0
      %v1896 = vadd.f32 %v1894, %v1895
      %v1897 = vsel %vm1305, %v1841, 0.0
      %v1898 = vadd.f32 %v1896, %v1897
      %v1899 = vsel %vm1305, %v1842, 0.0
      %v1900 = vadd.f32 %v1898, %v1899
      %v1901 = vsel %vm1305, %v1843, 0.0
      %v1902 = vadd.f32 %v1900, %v1901
      %v1903 = vsel %vm1305, %v1844, 0.0
      %v1904 = vadd.f32 %v1902, %v1903
      %v1905 = vsel %vm1305, %v1845, 0.0
      %v1906 = vadd.f32 %v1904, %v1905
      %v1907 = vsel %vm1305, %v1846, 0.0
      %v1908 = vadd.f32 %v1906, %v1907
      %v1909 = vsel %vm1305, %v1847, 0.0
      %v1910 = vadd.f32 %v1908, %v1909
      %v1911 = vrot.slane %v1910, 4
      %v1912 = vadd.f32 %v1910, %v1911
      %v1913 = vrot.slane %v1912, 2
      %v1914 = vadd.f32 %v1912, %v1913
      %v1915 = vrot.slane %v1914, 1
      %v1916 = vadd.f32 %v1914, %v1915
      %vm1917 = vcmask 1040384
      %v1918 = vsel %vm1917, %v1782, %v1916
      %vm1919 = vcmask 58368
      %1920 = vst.msk [vmem:[%s157] sm:$0x3] %vm1919, %v1918
      %s1921 = sadd.s32 %s17, %s18
      %p1922 = scmp.lt.s32.totalorder %s1921, 1
      %s1923 = scalar_select %p1922, %s1921, 1
      %s1924 = smul.addr %s1923, 2
      %s1925 = scalar_lea.vmem %s2, %s1924
      // Predicated region
      $region29: #{conv_bn_relu.2} parent=27 // pred_check
        %p1926 = pneg %p92
      $region30: #{conv_bn_relu.2} parent=27 // pred_check_branch
        %1928 = sbr.rel (%p1926) target = $region32
      $region31: #{conv_bn_relu.2} parent=27 // pred_region
        %s1929 = sadd.s32 %s17, %s18
      $region32: #{conv_bn_relu.2} parent=27 // pred_fallthru
        _
    $region28: #{conv_bn_relu.2} parent=5 // pred_fallthru
      _
    %p1930 = scmp.le.s32.totalorder 2, %s8
    // Predicated region
    $region33: #{conv_bn_relu.2} parent=5 // pred_check
      %p1931 = pneg %p1930
    $region34: #{conv_bn_relu.2} parent=5 // pred_check_branch
      %1933 = sbr.rel (%p1931) target = $region36
    $region35: #{conv_bn_relu.2} parent=5 // pred_region
      %s1934 = ssub.s32 %s8, 2
      // Predicated region
      $region37: #{conv_bn_relu.2} parent=35 // pred_check
        %p1935 = pneg %p98
      $region38: #{conv_bn_relu.2} parent=35 // pred_check_branch
        %1937 = sbr.rel (%p1935) target = $region40
      $region39: #{conv_bn_relu.2} parent=35 // pred_region
        %s1938 = sadd.s32 %s19, %s20
        %p1939 = scmp.lt.s32.totalorder %s1938, 1
        %s1940 = scalar_select %p1939, %s1938, 1
        %s1941 = smul.addr %s1940, 2
        %s1942 = scalar_lea.vmem %s2, %s1941
      $region40: #{conv_bn_relu.2} parent=35 // pred_fallthru
        _
    $region36: #{conv_bn_relu.2} parent=5 // pred_fallthru
      _
  $region6: #{conv_bn_relu.2} parent=0 // loop_footer
    %s12 = sadd.s32 1, %s8
  $region7: #{conv_bn_relu.2} parent=0 // loop_footer_branch
    %7 = sbr.rel target = $region3
  $region8: #{conv_bn_relu.2} parent=0 // loop_exit
    _

// kernel: conv_bn_relu.3
$region0: #{conv_bn_relu.3}
  #allocation0 [shape = 'u32[]', space=smem, size = 0x4, offset = 0x4, fixed_abs, tag = 'smem constant byte address 0x4 - core index']
  #allocation1 [shape = 'u32[72,128]{1,0:T(1,128)}', space=vmem, size = 0x9000, scoped, tag = 'internal scratch']
  %s0 = inlined_call_operand.vmem [shape: bf16[2,18,18,4], index: 0, kind: input, shape index: {}]
  %s1 = inlined_call_operand.vmem [shape: bf16[36,8], index: 1, kind: input, shape index: {}]
  %s2 = inlined_call_operand.vmem [shape: f32[1,8], index: 2, kind: input, shape index: {}]
  %s3 = inlined_call_operand.vmem [shape: f32[1,8], index: 3, kind: input, shape index: {}]
  %s4 = inlined_call_operand.vmem [shape: f32[2,256,8], index: 4, kind: output, shape index: {}]
  %s5 = sld [smem:[#allocation0]]
  $region49: #{conv_bn_relu.3} parent=0
    _
  %s7 = ssub.s32 1, %s5
  %s8 = scalar_select 0, %s7, %s5
  loop: start=0, step=1, limit=4
  $region2: #{conv_bn_relu.3} parent=0 // loop_pre_header
    _
  $region3: #{conv_bn_relu.3} parent=0 // loop_header
    %s10 = sphi 0, %s14
    %p11 = scmp.ge.s32.totalorder %s10, 4
    %s17 = sphi 0, %s29
    %s18 = sphi 0, %s25
    %s19 = sphi 0, %s17
    %s20 = sphi 0, %s18
    %s21 = sphi 0, %s19
    %s22 = sphi 0, %s20
    %s32 = sphi 0, %s34
    %s35 = sphi 0, %s32
    %s36 = sphi 0, %s35
    %s52 = sphi 0, %s36
    %s56 = sphi 0, %s56
    %s58 = sphi 0, %s56
    %s59 = sphi 0, %s58
    %s73 = sphi 0, %s59
    %s77 = sphi 0, %s77
    %s79 = sphi 0, %s77
    %s80 = sphi 0, %s79
    %s94 = sphi 0, %s80
    %s98 = sphi 0, %s98
    %s100 = sphi 0, %s98
    %s101 = sphi 0, %s100
    %s115 = sphi 0, %s101
    %s123 = sphi 0, %s125
    %s126 = sphi 0, %s123
    %s127 = sphi 0, %s126
    %s143 = sphi 0, %s127
  $region4: #{conv_bn_relu.3} parent=0 // loop_header_branch
    %13 = sbr.rel (%p11) target = $region8
  $region5: #{conv_bn_relu.3} parent=0 // loop_body
    %s15 = ssub.s32 %s10, 1
    %s16 = ssub.s32 %s10, 2
    %s23 = sadd.s32 1, %s18
    %p24 = scmp.ge.s32.totalorder %s23, 1
    %s25 = scalar_select %p24, 0, %s23
    %s26 = sadd.s32 1, %s17
    %s27 = scalar_select %p24, %s26, %s17
    %p28 = scmp.ge.s32.totalorder %s27, 2
    %s29 = scalar_select %p28, 0, %s27
    %s30 = ssub.s32 %s17, %s29
    %p31 = scmp.eq.s32.totalorder %s30, 0
    %s33 = sadd.s32 %s32, 1
    %s34 = scalar_select %p31, %s32, %s33
    %p37 = pneg %p31
    %p38 = scmp.eq.s32.totalorder %s10, 1
    %p39 = por %p37, %p38
    %p40 = scmp.ne.s32.totalorder %s32, %s35
    %p41 = scmp.eq.s32.totalorder %s10, 0
    %p42 = por %p40, %p41
    %p43 = scmp.ne.s32.totalorder %s32, %s35
    %p44 = scmp.eq.s32.totalorder %s15, 1
    %p45 = por %p43, %p44
    %p46 = scmp.ne.s32.totalorder %s35, %s36
    %p47 = scmp.eq.s32.totalorder %s15, 0
    %p48 = por %p46, %p47
    %p49 = scmp.ne.s32.totalorder %s35, %s36
    %p50 = scmp.eq.s32.totalorder %s16, 1
    %p51 = por %p49, %p50
    %p53 = scmp.ne.s32.totalorder %s36, %s52
    %p54 = scmp.eq.s32.totalorder %s16, 0
    %p55 = por %p53, %p54
    %s57 = sadd.s32 %s56, 1
    %p60 = scmp.eq.s32.totalorder %s10, 1
    %p61 = scmp.ne.s32.totalorder %s56, %s58
    %p62 = scmp.eq.s32.totalorder %s10, 0
    %p63 = por %p61, %p62
    %p64 = scmp.ne.s32.totalorder %s56, %s58
    %p65 = scmp.eq.s32.totalorder %s15, 1
    %p66 = por %p64, %p65
    %p67 = scmp.ne.s32.totalorder %s58, %s59
    %p68 = scmp.eq.s32.totalorder %s15, 0
    %p69 = por %p67, %p68
    %p70 = scmp.ne.s32.totalorder %s58, %s59
    %p71 = scmp.eq.s32.totalorder %s16, 1
    %p72 = por %p70, %p71
    %p74 = scmp.ne.s32.totalorder %s59, %s73
    %p75 = scmp.eq.s32.totalorder %s16, 0
    %p76 = por %p74, %p75
    %s78 = sadd.s32 %s77, 1
    %p81 = scmp.eq.s32.totalorder %s10, 1
    %p82 = scmp.ne.s32.totalorder %s77, %s79
    %p83 = scmp.eq.s32.totalorder %s10, 0
    %p84 = por %p82, %p83
    %p85 = scmp.ne.s32.totalorder %s77, %s79
    %p86 = scmp.eq.s32.totalorder %s15, 1
    %p87 = por %p85, %p86
    %p88 = scmp.ne.s32.totalorder %s79, %s80
    %p89 = scmp.eq.s32.totalorder %s15, 0
    %p90 = por %p88, %p89
    %p91 = scmp.ne.s32.totalorder %s79, %s80
    %p92 = scmp.eq.s32.totalorder %s16, 1
    %p93 = por %p91, %p92
    %p95 = scmp.ne.s32.totalorder %s80, %s94
    %p96 = scmp.eq.s32.totalorder %s16, 0
    %p97 = por %p95, %p96
    %s99 = sadd.s32 %s98, 1
    %p102 = scmp.eq.s32.totalorder %s10, 1
    %p103 = scmp.ne.s32.totalorder %s98, %s100
    %p104 = scmp.eq.s32.totalorder %s10, 0
    %p105 = por %p103, %p104
    %p106 = scmp.ne.s32.totalorder %s98, %s100
    %p107 = scmp.eq.s32.totalorder %s15, 1
    %p108 = por %p106, %p107
    %p109 = scmp.ne.s32.totalorder %s100, %s101
    %p110 = scmp.eq.s32.totalorder %s15, 0
    %p111 = por %p109, %p110
    %p112 = scmp.ne.s32.totalorder %s100, %s101
    %p113 = scmp.eq.s32.totalorder %s16, 1
    %p114 = por %p112, %p113
    %p116 = scmp.ne.s32.totalorder %s101, %s115
    %p117 = scmp.eq.s32.totalorder %s16, 0
    %p118 = por %p116, %p117
    %s119 = ssub.s32 %s17, %s29
    %s120 = ssub.s32 %s18, %s25
    %s121 = sor.u32 %s119, %s120
    %p122 = scmp.eq.s32.totalorder %s121, 0
    %s124 = sadd.s32 %s123, 1
    %s125 = scalar_select %p122, %s123, %s124
    %p128 = pneg %p122
    %p129 = scmp.eq.s32.totalorder %s10, 1
    %p130 = por %p128, %p129
    %p131 = scmp.ne.s32.totalorder %s123, %s126
    %p132 = scmp.eq.s32.totalorder %s10, 0
    %p133 = por %p131, %p132
    %p134 = scmp.ne.s32.totalorder %s123, %s126
    %p135 = scmp.eq.s32.totalorder %s15, 1
    %p136 = por %p134, %p135
    %p137 = scmp.ne.s32.totalorder %s126, %s127
    %p138 = scmp.eq.s32.totalorder %s15, 0
    %p139 = por %p137, %p138
    %p140 = scmp.ne.s32.totalorder %s126, %s127
    %p141 = scmp.eq.s32.totalorder %s16, 1
    %p142 = por %p140, %p141
    %p144 = scmp.ne.s32.totalorder %s127, %s143
    %p145 = scmp.eq.s32.totalorder %s16, 0
    %p146 = por %p144, %p145
    %p147 = scmp.le.s32.totalorder 1, %s10
    %p148 = scmp.lt.s32.totalorder %s10, 3
    %p149 = pnand %p147, %p148
    %p150 = pneg %p149
    // Predicated region
    $region9: #{conv_bn_relu.3} parent=5 // pred_check
      _
    $region10: #{conv_bn_relu.3} parent=5 // pred_check_branch
      %152 = sbr.rel (%p149) target = $region12
    $region11: #{conv_bn_relu.3} parent=5 // pred_region
      %s153 = ssub.s32 %s10, 1
      // Predicated region
      $region13: #{conv_bn_relu.3} parent=11 // pred_check
        %p154 = pneg %p69
      $region14: #{conv_bn_relu.3} parent=11 // pred_check_branch
        %156 = sbr.rel (%p154) target = $region16
      $region15: #{conv_bn_relu.3} parent=11 // pred_region
        _
      $region16: #{conv_bn_relu.3} parent=11 // pred_fallthru
        _
      // Predicated region
      $region17: #{conv_bn_relu.3} parent=11 // pred_check
        %p157 = pneg %p90
      $region18: #{conv_bn_relu.3} parent=11 // pred_check_branch
        %159 = sbr.rel (%p157) target = $region20
      $region19: #{conv_bn_relu.3} parent=11 // pred_region
        _
      $region20: #{conv_bn_relu.3} parent=11 // pred_fallthru
        _
      // Predicated region
      $region21: #{conv_bn_relu.3} parent=11 // pred_check
        %p160 = pneg %p111
      $region22: #{conv_bn_relu.3} parent=11 // pred_check_branch
        %162 = sbr.rel (%p160) target = $region24
      $region23: #{conv_bn_relu.3} parent=11 // pred_region
        _
      $region24: #{conv_bn_relu.3} parent=11 // pred_fallthru
        _
    $region12: #{conv_bn_relu.3} parent=5 // pred_fallthru
      _
    %p163 = scmp.lt.s32.totalorder %s10, 2
    // Predicated region
    $region25: #{conv_bn_relu.3} parent=5 // pred_check
      %p164 = pneg %p163
    $region26: #{conv_bn_relu.3} parent=5 // pred_check_branch
      %166 = sbr.rel (%p164) target = $region28
    $region27: #{conv_bn_relu.3} parent=5 // pred_region
      // Predicated region
      $region29: #{conv_bn_relu.3} parent=27 // pred_check
        %p167 = pneg %p42
      $region30: #{conv_bn_relu.3} parent=27 // pred_check_branch
        %169 = sbr.rel (%p167) target = $region32
      $region31: #{conv_bn_relu.3} parent=27 // pred_region
        %p170 = scmp.lt.s32.totalorder %s17, 1
        %s171 = scalar_select %p170, %s17, 1
        %s172 = smul.addr %s171, 54
        %s173 = smul.addr %s172, 4
        %s174 = scalar_lea.vmem %s0, %s173
      $region32: #{conv_bn_relu.3} parent=27 // pred_fallthru
        _
    $region28: #{conv_bn_relu.3} parent=5 // pred_fallthru
      _
    %p175 = scmp.le.s32.totalorder 1, %s10
    %p176 = scmp.lt.s32.totalorder %s10, 3
    %p177 = pnand %p175, %p176
    %p178 = pneg %p177
    // Predicated region
    $region33: #{conv_bn_relu.3} parent=5 // pred_check
      _
    $region34: #{conv_bn_relu.3} parent=5 // pred_check_branch
      %180 = sbr.rel (%p177) target = $region36
    $region35: #{conv_bn_relu.3} parent=5 // pred_region
      %s181 = ssub.s32 %s10, 1
      %p182 = scmp.lt.s32.totalorder %s19, 1
      %s183 = scalar_select %p182, %s19, 1
      %s184 = smul.addr %s183, 54
      %s185 = smul.addr %s184, 4
      %s186 = scalar_lea.vmem %s0, %s185
      %p187 = pneg %p48
      %p188 = pneg %p45
      %p189 = pneg %p69
      %p190 = pneg %p66
      %p191 = pneg %p90
      %p192 = pneg %p87
      %p193 = pneg %p111
      %p194 = pneg %p108
      %p195 = pneg %p139
      %p196 = pneg %p136
      %s197 = smul.u32 32, %s20
      %p198 = scmp.lt.s32.totalorder %s19, 1
      %s199 = scalar_select %p198, %s19, 1
      %p200 = scmp.lt.s32.totalorder %s197, 31
      %s201 = scalar_select %p200, %s197, 31
      %s202 = smul.addr %s199, 32
      %s203 = sadd.s32 %s201, %s202
      %s204 = smul.addr %s203, 8
      %s205 = scalar_lea.vmem %s4, %s204
      %p206 = scmp.lt.s32.totalorder %s19, 1
      %s207 = scalar_select %p206, %s19, 1
      %s208 = smul.addr %s207, 54
      %s209 = smul.addr %s208, 4
      %s210 = scalar_lea.vmem %s0, %s209
      %s211 = smul.u32 32, %s20
      %p212 = scmp.lt.s32.totalorder %s19, 1
      %s213 = scalar_select %p212, %s19, 1
      %p214 = scmp.lt.s32.totalorder %s211, 31
      %s215 = scalar_select %p214, %s211, 31
      %s216 = smul.addr %s213, 32
      %s217 = sadd.s32 %s215, %s216
      %s218 = smul.addr %s217, 8
      %s219 = scalar_lea.vmem %s4, %s218
      %s220 = smul.u32 32, %s20
      %v222 = vld [vmem:[%s210] sm:$0xf]
      %v223 = vld [vmem:[%s210 + $0x4] sm:$0xf]
      %v224 = vld [vmem:[%s210 + $0x8] sm:$0x1]
      %v225 = vld [vmem:[%s210 + $0xc] sm:$0xf]
      %v226 = vld [vmem:[%s210 + $0x10] sm:$0xf]
      %v227 = vld [vmem:[%s210 + $0x14] sm:$0x1]
      %v228 = vld [vmem:[%s210 + $0x18] sm:$0xf]
      %v229 = vld [vmem:[%s210 + $0x1c] sm:$0xf]
      %v230 = vld [vmem:[%s210 + $0x20] sm:$0x1]
      %v231 = vld [vmem:[%s210 + $0x24] sm:$0xf]
      %v232 = vld [vmem:[%s210 + $0x28] sm:$0xf]
      %v233 = vld [vmem:[%s210 + $0x2c] sm:$0x1]
      %v234 = vld [vmem:[%s210 + $0x30] sm:$0xf]
      %v235 = vld [vmem:[%s210 + $0x34] sm:$0xf]
      %v236 = vld [vmem:[%s210 + $0x38] sm:$0x1]
      %v237 = vld [vmem:[%s210 + $0x3c] sm:$0xf]
      %v238 = vld [vmem:[%s210 + $0x40] sm:$0xf]
      %v239 = vld [vmem:[%s210 + $0x44] sm:$0x1]
      %v240 = vld [vmem:[%s210 + $0x48] sm:$0xf]
      %v241 = vld [vmem:[%s210 + $0x4c] sm:$0xf]
      %v242 = vld [vmem:[%s210 + $0x50] sm:$0x1]
      %v243 = vld [vmem:[%s210 + $0x54] sm:$0xf]
      %v244 = vld [vmem:[%s210 + $0x58] sm:$0xf]
      %v245 = vld [vmem:[%s210 + $0x5c] sm:$0x1]
      %v246 = vld [vmem:[%s210 + $0x60] sm:$0xf]
      %v247 = vld [vmem:[%s210 + $0x64] sm:$0xf]
      %v248 = vld [vmem:[%s210 + $0x68] sm:$0x1]
      %v249 = vld [vmem:[%s210 + $0x6c] sm:$0xf]
      %v250 = vld [vmem:[%s210 + $0x70] sm:$0xf]
      %v251 = vld [vmem:[%s210 + $0x74] sm:$0x1]
      %v252 = vld [vmem:[%s210 + $0x78] sm:$0xf]
      %v253 = vld [vmem:[%s210 + $0x7c] sm:$0xf]
      %v254 = vld [vmem:[%s210 + $0x80] sm:$0x1]
      %v255 = vld [vmem:[%s210 + $0x84] sm:$0xf]
      %v256 = vld [vmem:[%s210 + $0x88] sm:$0xf]
      %v257 = vld [vmem:[%s210 + $0x8c] sm:$0x1]
      %v258 = vld [vmem:[%s210 + $0x90] sm:$0xf]
      %v259 = vld [vmem:[%s210 + $0x94] sm:$0xf]
      %v260 = vld [vmem:[%s210 + $0x98] sm:$0x1]
      %v261 = vld [vmem:[%s210 + $0x9c] sm:$0xf]
      %v262 = vld [vmem:[%s210 + $0xa0] sm:$0xf]
      %v263 = vld [vmem:[%s210 + $0xa4] sm:$0x1]
      %v264 = vld [vmem:[%s210 + $0xa8] sm:$0xf]
      %v265 = vld [vmem:[%s210 + $0xac] sm:$0xf]
      %v266 = vld [vmem:[%s210 + $0xb0] sm:$0x1]
      %v267 = vld [vmem:[%s210 + $0xb4] sm:$0xf]
      %v268 = vld [vmem:[%s210 + $0xb8] sm:$0xf]
      %v269 = vld [vmem:[%s210 + $0xbc] sm:$0x1]
      %v270 = vld [vmem:[%s210 + $0xc0] sm:$0xf]
      %v271 = vld [vmem:[%s210 + $0xc4] sm:$0xf]
      %v272 = vld [vmem:[%s210 + $0xc8] sm:$0x1]
      %v273 = vld [vmem:[%s210 + $0xcc] sm:$0xf]
      %v274 = vld [vmem:[%s210 + $0xd0] sm:$0xf]
      %v275 = vld [vmem:[%s210 + $0xd4] sm:$0x1]
      %v276 = vunpack.c.l.bf16 %v222
      %v277 = vunpack.c.l.bf16 %v223
      %v278 = vunpack.c.l.bf16 %v224
      %v279 = vunpack.c.l.bf16 %v225
      %v280 = vunpack.c.l.bf16 %v226
      %v281 = vunpack.c.l.bf16 %v227
      %v282 = vunpack.c.l.bf16 %v228
      %v283 = vunpack.c.l.bf16 %v229
      %v284 = vunpack.c.l.bf16 %v230
      %v285 = vunpack.c.l.bf16 %v231
      %v286 = vunpack.c.l.bf16 %v232
      %v287 = vunpack.c.l.bf16 %v233
      %v288 = vunpack.c.l.bf16 %v234
      %v289 = vunpack.c.l.bf16 %v235
      %v290 = vunpack.c.l.bf16 %v236
      %v291 = vunpack.c.l.bf16 %v237
      %v292 = vunpack.c.l.bf16 %v238
      %v293 = vunpack.c.l.bf16 %v239
      %v294 = vunpack.c.l.bf16 %v240
      %v295 = vunpack.c.l.bf16 %v241
      %v296 = vunpack.c.l.bf16 %v242
      %v297 = vunpack.c.l.bf16 %v243
      %v298 = vunpack.c.l.bf16 %v244
      %v299 = vunpack.c.l.bf16 %v245
      %v300 = vunpack.c.l.bf16 %v246
      %v301 = vunpack.c.l.bf16 %v247
      %v302 = vunpack.c.l.bf16 %v248
      %v303 = vunpack.c.l.bf16 %v249
      %v304 = vunpack.c.l.bf16 %v250
      %v305 = vunpack.c.l.bf16 %v251
      %v306 = vunpack.c.l.bf16 %v252
      %v307 = vunpack.c.l.bf16 %v253
      %v308 = vunpack.c.l.bf16 %v254
      %v309 = vunpack.c.l.bf16 %v255
      %v310 = vunpack.c.l.bf16 %v256
      %v311 = vunpack.c.l.bf16 %v257
      %v312 = vunpack.c.l.bf16 %v258
      %v313 = vunpack.c.l.bf16 %v259
      %v314 = vunpack.c.l.bf16 %v260
      %v315 = vunpack.c.l.bf16 %v261
      %v316 = vunpack.c.l.bf16 %v262
      %v317 = vunpack.c.l.bf16 %v263
      %v318 = vunpack.c.l.bf16 %v264
      %v319 = vunpack.c.l.bf16 %v265
      %v320 = vunpack.c.l.bf16 %v266
      %v321 = vunpack.c.l.bf16 %v267
      %v322 = vunpack.c.l.bf16 %v268
      %v323 = vunpack.c.l.bf16 %v269
      %v324 = vunpack.c.l.bf16 %v270
      %v325 = vunpack.c.l.bf16 %v271
      %v326 = vunpack.c.l.bf16 %v272
      %v327 = vunpack.c.l.bf16 %v273
      %v328 = vunpack.c.l.bf16 %v274
      %v329 = vunpack.c.l.bf16 %v275
      %vm378 = vcmask 1046528
      %v379 = vrot.slane %v276, 1
      %v380 = vrot.slane %v277, 1
      %v381 = vsel %vm378, %v379, %v380
      %v382 = vrot.slane %v278, 1
      %v383 = vsel %vm378, %v380, %v382
      %v384 = vrot.slane %v279, 1
      %v385 = vrot.slane %v280, 1
      %v386 = vsel %vm378, %v384, %v385
      %v387 = vrot.slane %v281, 1
      %v388 = vsel %vm378, %v385, %v387
      %v389 = vrot.slane %v282, 1
      %v390 = vrot.slane %v283, 1
      %v391 = vsel %vm378, %v389, %v390
      %v392 = vrot.slane %v284, 1
      %v393 = vsel %vm378, %v390, %v392
      %v394 = vrot.slane %v285, 1
      %v395 = vrot.slane %v286, 1
      %v396 = vsel %vm378, %v394, %v395
      %v397 = vrot.slane %v287, 1
      %v398 = vsel %vm378, %v395, %v397
      %v399 = vrot.slane %v288, 1
      %v400 = vrot.slane %v289, 1
      %v401 = vsel %vm378, %v399, %v400
      %v402 = vrot.slane %v290, 1
      %v403 = vsel %vm378, %v400, %v402
      %v404 = vrot.slane %v291, 1
      %v405 = vrot.slane %v292, 1
      %v406 = vsel %vm378, %v404, %v405
      %v407 = vrot.slane %v293, 1
      %v408 = vsel %vm378, %v405, %v407
      %v409 = vrot.slane %v294, 1
      %v410 = vrot.slane %v295, 1
      %v411 = vsel %vm378, %v409, %v410
      %v412 = vrot.slane %v296, 1
      %v413 = vsel %vm378, %v410, %v412
      %v414 = vrot.slane %v297, 1
      %v415 = vrot.slane %v298, 1
      %v416 = vsel %vm378, %v414, %v415
      %v417 = vrot.slane %v299, 1
      %v418 = vsel %vm378, %v415, %v417
      %v419 = vrot.slane %v300, 1
      %v420 = vrot.slane %v301, 1
      %v421 = vsel %vm378, %v419, %v420
      %v422 = vrot.slane %v302, 1
      %v423 = vsel %vm378, %v420, %v422
      %v424 = vrot.slane %v303, 1
      %v425 = vrot.slane %v304, 1
      %v426 = vsel %vm378, %v424, %v425
      %v427 = vrot.slane %v305, 1
      %v428 = vsel %vm378, %v425, %v427
      %v429 = vrot.slane %v306, 1
      %v430 = vrot.slane %v307, 1
      %v431 = vsel %vm378, %v429, %v430
      %v432 = vrot.slane %v308, 1
      %v433 = vsel %vm378, %v430, %v432
      %v434 = vrot.slane %v309, 1
      %v435 = vrot.slane %v310, 1
      %v436 = vsel %vm378, %v434, %v435
      %v437 = vrot.slane %v311, 1
      %v438 = vsel %vm378, %v435, %v437
      %v439 = vrot.slane %v312, 1
      %v440 = vrot.slane %v313, 1
      %v441 = vsel %vm378, %v439, %v440
      %v442 = vrot.slane %v314, 1
      %v443 = vsel %vm378, %v440, %v442
      %v444 = vrot.slane %v315, 1
      %v445 = vrot.slane %v316, 1
      %v446 = vsel %vm378, %v444, %v445
      %v447 = vrot.slane %v317, 1
      %v448 = vsel %vm378, %v445, %v447
      %v449 = vrot.slane %v318, 1
      %v450 = vrot.slane %v319, 1
      %v451 = vsel %vm378, %v449, %v450
      %v452 = vrot.slane %v320, 1
      %v453 = vsel %vm378, %v450, %v452
      %v454 = vrot.slane %v321, 1
      %v455 = vrot.slane %v322, 1
      %v456 = vsel %vm378, %v454, %v455
      %v457 = vrot.slane %v323, 1
      %v458 = vsel %vm378, %v455, %v457
      %459 = vrot.lane.b32.xlu0 %v381, 4
      %v460 = vpop.permute.xlu0 %459
      %461 = vrot.lane.b32.xlu0 %v383, 4
      %v462 = vpop.permute.xlu0 %461
      %463 = vrot.lane.b32.xlu0 %v386, 4
      %v464 = vpop.permute.xlu0 %463
      %465 = vrot.lane.b32.xlu0 %v388, 4
      %v466 = vpop.permute.xlu0 %465
      %467 = vrot.lane.b32.xlu0 %v391, 4
      %v468 = vpop.permute.xlu0 %467
      %469 = vrot.lane.b32.xlu0 %v393, 4
      %v470 = vpop.permute.xlu0 %469
      %471 = vrot.lane.b32.xlu0 %v396, 4
      %v472 = vpop.permute.xlu0 %471
      %473 = vrot.lane.b32.xlu0 %v398, 4
      %v474 = vpop.permute.xlu0 %473
      %475 = vrot.lane.b32.xlu0 %v401, 4
      %v476 = vpop.permute.xlu0 %475
      %477 = vrot.lane.b32.xlu0 %v403, 4
      %v478 = vpop.permute.xlu0 %477
      %479 = vrot.lane.b32.xlu0 %v406, 4
      %v480 = vpop.permute.xlu0 %479
      %481 = vrot.lane.b32.xlu0 %v408, 4
      %v482 = vpop.permute.xlu0 %481
      %483 = vrot.lane.b32.xlu0 %v411, 4
      %v484 = vpop.permute.xlu0 %483
      %485 = vrot.lane.b32.xlu0 %v413, 4
      %v486 = vpop.permute.xlu0 %485
      %487 = vrot.lane.b32.xlu0 %v416, 4
      %v488 = vpop.permute.xlu0 %487
      %489 = vrot.lane.b32.xlu0 %v418, 4
      %v490 = vpop.permute.xlu0 %489
      %491 = vrot.lane.b32.xlu0 %v421, 4
      %v492 = vpop.permute.xlu0 %491
      %493 = vrot.lane.b32.xlu0 %v423, 4
      %v494 = vpop.permute.xlu0 %493
      %495 = vrot.lane.b32.xlu0 %v426, 4
      %v496 = vpop.permute.xlu0 %495
      %497 = vrot.lane.b32.xlu0 %v428, 4
      %v498 = vpop.permute.xlu0 %497
      %499 = vrot.lane.b32.xlu0 %v431, 4
      %v500 = vpop.permute.xlu0 %499
      %501 = vrot.lane.b32.xlu0 %v433, 4
      %v502 = vpop.permute.xlu0 %501
      %503 = vrot.lane.b32.xlu0 %v436, 4
      %v504 = vpop.permute.xlu0 %503
      %505 = vrot.lane.b32.xlu0 %v438, 4
      %v506 = vpop.permute.xlu0 %505
      %507 = vrot.lane.b32.xlu0 %v441, 4
      %v508 = vpop.permute.xlu0 %507
      %509 = vrot.lane.b32.xlu0 %v443, 4
      %v510 = vpop.permute.xlu0 %509
      %511 = vrot.lane.b32.xlu0 %v446, 4
      %v512 = vpop.permute.xlu0 %511
      %513 = vrot.lane.b32.xlu0 %v448, 4
      %v514 = vpop.permute.xlu0 %513
      %515 = vrot.lane.b32.xlu0 %v451, 4
      %v516 = vpop.permute.xlu0 %515
      %517 = vrot.lane.b32.xlu0 %v453, 4
      %v518 = vpop.permute.xlu0 %517
      %519 = vrot.lane.b32.xlu0 %v456, 4
      %v520 = vpop.permute.xlu0 %519
      %521 = vrot.lane.b32.xlu0 %v458, 4
      %v522 = vpop.permute.xlu0 %521
      %vm555 = vcmask 1045504
      %v556 = vrot.slane %v276, 2
      %v557 = vrot.slane %v277, 2
      %v558 = vsel %vm555, %v556, %v557
      %v559 = vrot.slane %v278, 2
      %v560 = vsel %vm555, %v557, %v559
      %v561 = vrot.slane %v279, 2
      %v562 = vrot.slane %v280, 2
      %v563 = vsel %vm555, %v561, %v562
      %v564 = vrot.slane %v281, 2
      %v565 = vsel %vm555, %v562, %v564
      %v566 = vrot.slane %v282, 2
      %v567 = vrot.slane %v283, 2
      %v568 = vsel %vm555, %v566, %v567
      %v569 = vrot.slane %v284, 2
      %v570 = vsel %vm555, %v567, %v569
      %v571 = vrot.slane %v285, 2
      %v572 = vrot.slane %v286, 2
      %v573 = vsel %vm555, %v571, %v572
      %v574 = vrot.slane %v287, 2
      %v575 = vsel %vm555, %v572, %v574
      %v576 = vrot.slane %v288, 2
      %v577 = vrot.slane %v289, 2
      %v578 = vsel %vm555, %v576, %v577
      %v579 = vrot.slane %v290, 2
      %v580 = vsel %vm555, %v577, %v579
      %v581 = vrot.slane %v291, 2
      %v582 = vrot.slane %v292, 2
      %v583 = vsel %vm555, %v581, %v582
      %v584 = vrot.slane %v293, 2
      %v585 = vsel %vm555, %v582, %v584
      %v586 = vrot.slane %v294, 2
      %v587 = vrot.slane %v295, 2
      %v588 = vsel %vm555, %v586, %v587
      %v589 = vrot.slane %v296, 2
      %v590 = vsel %vm555, %v587, %v589
      %v591 = vrot.slane %v297, 2
      %v592 = vrot.slane %v298, 2
      %v593 = vsel %vm555, %v591, %v592
      %v594 = vrot.slane %v299, 2
      %v595 = vsel %vm555, %v592, %v594
      %v596 = vrot.slane %v300, 2
      %v597 = vrot.slane %v301, 2
      %v598 = vsel %vm555, %v596, %v597
      %v599 = vrot.slane %v302, 2
      %v600 = vsel %vm555, %v597, %v599
      %v601 = vrot.slane %v303, 2
      %v602 = vrot.slane %v304, 2
      %v603 = vsel %vm555, %v601, %v602
      %v604 = vrot.slane %v305, 2
      %v605 = vsel %vm555, %v602, %v604
      %v606 = vrot.slane %v306, 2
      %v607 = vrot.slane %v307, 2
      %v608 = vsel %vm555, %v606, %v607
      %v609 = vrot.slane %v308, 2
      %v610 = vsel %vm555, %v607, %v609
      %v611 = vrot.slane %v309, 2
      %v612 = vrot.slane %v310, 2
      %v613 = vsel %vm555, %v611, %v612
      %v614 = vrot.slane %v311, 2
      %v615 = vsel %vm555, %v612, %v614
      %v616 = vrot.slane %v312, 2
      %v617 = vrot.slane %v313, 2
      %v618 = vsel %vm555, %v616, %v617
      %v619 = vrot.slane %v314, 2
      %v620 = vsel %vm555, %v617, %v619
      %v621 = vrot.slane %v315, 2
      %v622 = vrot.slane %v316, 2
      %v623 = vsel %vm555, %v621, %v622
      %v624 = vrot.slane %v317, 2
      %v625 = vsel %vm555, %v622, %v624
      %v626 = vrot.slane %v318, 2
      %v627 = vrot.slane %v319, 2
      %v628 = vsel %vm555, %v626, %v627
      %v629 = vrot.slane %v320, 2
      %v630 = vsel %vm555, %v627, %v629
      %v631 = vrot.slane %v321, 2
      %v632 = vrot.slane %v322, 2
      %v633 = vsel %vm555, %v631, %v632
      %v634 = vrot.slane %v323, 2
      %v635 = vsel %vm555, %v632, %v634
      %636 = vrot.lane.b32.xlu0 %v558, 8
      %v637 = vpop.permute.xlu0 %636
      %638 = vrot.lane.b32.xlu0 %v560, 8
      %v639 = vpop.permute.xlu0 %638
      %640 = vrot.lane.b32.xlu0 %v563, 8
      %v641 = vpop.permute.xlu0 %640
      %642 = vrot.lane.b32.xlu0 %v565, 8
      %v643 = vpop.permute.xlu0 %642
      %644 = vrot.lane.b32.xlu0 %v568, 8
      %v645 = vpop.permute.xlu0 %644
      %646 = vrot.lane.b32.xlu0 %v570, 8
      %v647 = vpop.permute.xlu0 %646
      %648 = vrot.lane.b32.xlu0 %v573, 8
      %v649 = vpop.permute.xlu0 %648
      %650 = vrot.lane.b32.xlu0 %v575, 8
      %v651 = vpop.permute.xlu0 %650
      %652 = vrot.lane.b32.xlu0 %v578, 8
      %v653 = vpop.permute.xlu0 %652
      %654 = vrot.lane.b32.xlu0 %v580, 8
      %v655 = vpop.permute.xlu0 %654
      %656 = vrot.lane.b32.xlu0 %v583, 8
      %v657 = vpop.permute.xlu0 %656
      %658 = vrot.lane.b32.xlu0 %v585, 8
      %v659 = vpop.permute.xlu0 %658
      %660 = vrot.lane.b32.xlu0 %v588, 8
      %v661 = vpop.permute.xlu0 %660
      %662 = vrot.lane.b32.xlu0 %v590, 8
      %v663 = vpop.permute.xlu0 %662
      %664 = vrot.lane.b32.xlu0 %v593, 8
      %v665 = vpop.permute.xlu0 %664
      %666 = vrot.lane.b32.xlu0 %v595, 8
      %v667 = vpop.permute.xlu0 %666
      %668 = vrot.lane.b32.xlu0 %v598, 8
      %v669 = vpop.permute.xlu0 %668
      %670 = vrot.lane.b32.xlu0 %v600, 8
      %v671 = vpop.permute.xlu0 %670
      %672 = vrot.lane.b32.xlu0 %v603, 8
      %v673 = vpop.permute.xlu0 %672
      %674 = vrot.lane.b32.xlu0 %v605, 8
      %v675 = vpop.permute.xlu0 %674
      %676 = vrot.lane.b32.xlu0 %v608, 8
      %v677 = vpop.permute.xlu0 %676
      %678 = vrot.lane.b32.xlu0 %v610, 8
      %v679 = vpop.permute.xlu0 %678
      %680 = vrot.lane.b32.xlu0 %v613, 8
      %v681 = vpop.permute.xlu0 %680
      %682 = vrot.lane.b32.xlu0 %v615, 8
      %v683 = vpop.permute.xlu0 %682
      %684 = vrot.lane.b32.xlu0 %v618, 8
      %v685 = vpop.permute.xlu0 %684
      %686 = vrot.lane.b32.xlu0 %v620, 8
      %v687 = vpop.permute.xlu0 %686
      %688 = vrot.lane.b32.xlu0 %v623, 8
      %v689 = vpop.permute.xlu0 %688
      %690 = vrot.lane.b32.xlu0 %v625, 8
      %v691 = vpop.permute.xlu0 %690
      %692 = vrot.lane.b32.xlu0 %v628, 8
      %v693 = vpop.permute.xlu0 %692
      %694 = vrot.lane.b32.xlu0 %v630, 8
      %v695 = vpop.permute.xlu0 %694
      %696 = vrot.lane.b32.xlu0 %v633, 8
      %v697 = vpop.permute.xlu0 %696
      %698 = vrot.lane.b32.xlu0 %v635, 8
      %v699 = vpop.permute.xlu0 %698
      %734 = vrot.lane.b32.xlu0 %v279, 12
      %v735 = vpop.permute.xlu0 %734
      %736 = vrot.lane.b32.xlu0 %v280, 12
      %v737 = vpop.permute.xlu0 %736
      %738 = vrot.lane.b32.xlu0 %v282, 12
      %v739 = vpop.permute.xlu0 %738
      %740 = vrot.lane.b32.xlu0 %v283, 12
      %v741 = vpop.permute.xlu0 %740
      %742 = vrot.lane.b32.xlu0 %v285, 12
      %v743 = vpop.permute.xlu0 %742
      %744 = vrot.lane.b32.xlu0 %v286, 12
      %v745 = vpop.permute.xlu0 %744
      %746 = vrot.lane.b32.xlu0 %v288, 12
      %v747 = vpop.permute.xlu0 %746
      %748 = vrot.lane.b32.xlu0 %v289, 12
      %v749 = vpop.permute.xlu0 %748
      %750 = vrot.lane.b32.xlu0 %v291, 12
      %v751 = vpop.permute.xlu0 %750
      %752 = vrot.lane.b32.xlu0 %v292, 12
      %v753 = vpop.permute.xlu0 %752
      %754 = vrot.lane.b32.xlu0 %v294, 12
      %v755 = vpop.permute.xlu0 %754
      %756 = vrot.lane.b32.xlu0 %v295, 12
      %v757 = vpop.permute.xlu0 %756
      %758 = vrot.lane.b32.xlu0 %v297, 12
      %v759 = vpop.permute.xlu0 %758
      %760 = vrot.lane.b32.xlu0 %v298, 12
      %v761 = vpop.permute.xlu0 %760
      %762 = vrot.lane.b32.xlu0 %v300, 12
      %v763 = vpop.permute.xlu0 %762
      %764 = vrot.lane.b32.xlu0 %v301, 12
      %v765 = vpop.permute.xlu0 %764
      %766 = vrot.lane.b32.xlu0 %v303, 12
      %v767 = vpop.permute.xlu0 %766
      %768 = vrot.lane.b32.xlu0 %v304, 12
      %v769 = vpop.permute.xlu0 %768
      %770 = vrot.lane.b32.xlu0 %v306, 12
      %v771 = vpop.permute.xlu0 %770
      %772 = vrot.lane.b32.xlu0 %v307, 12
      %v773 = vpop.permute.xlu0 %772
      %774 = vrot.lane.b32.xlu0 %v309, 12
      %v775 = vpop.permute.xlu0 %774
      %776 = vrot.lane.b32.xlu0 %v310, 12
      %v777 = vpop.permute.xlu0 %776
      %778 = vrot.lane.b32.xlu0 %v312, 12
      %v779 = vpop.permute.xlu0 %778
      %780 = vrot.lane.b32.xlu0 %v313, 12
      %v781 = vpop.permute.xlu0 %780
      %782 = vrot.lane.b32.xlu0 %v315, 12
      %v783 = vpop.permute.xlu0 %782
      %784 = vrot.lane.b32.xlu0 %v316, 12
      %v785 = vpop.permute.xlu0 %784
      %786 = vrot.lane.b32.xlu0 %v318, 12
      %v787 = vpop.permute.xlu0 %786
      %788 = vrot.lane.b32.xlu0 %v319, 12
      %v789 = vpop.permute.xlu0 %788
      %790 = vrot.lane.b32.xlu0 %v321, 12
      %v791 = vpop.permute.xlu0 %790
      %792 = vrot.lane.b32.xlu0 %v322, 12
      %v793 = vpop.permute.xlu0 %792
      %794 = vrot.lane.b32.xlu0 %v324, 12
      %v795 = vpop.permute.xlu0 %794
      %796 = vrot.lane.b32.xlu0 %v325, 12
      %v797 = vpop.permute.xlu0 %796
      %v831 = vrot.slane %v324, 1
      %v832 = vrot.slane %v325, 1
      %v833 = vsel %vm378, %v831, %v832
      %v834 = vrot.slane %v326, 1
      %v835 = vsel %vm378, %v832, %v834
      %836 = vrot.lane.b32.xlu0 %v386, 16
      %v837 = vpop.permute.xlu0 %836
      %838 = vrot.lane.b32.xlu0 %v388, 16
      %v839 = vpop.permute.xlu0 %838
      %840 = vrot.lane.b32.xlu0 %v391, 16
      %v841 = vpop.permute.xlu0 %840
      %842 = vrot.lane.b32.xlu0 %v393, 16
      %v843 = vpop.permute.xlu0 %842
      %844 = vrot.lane.b32.xlu0 %v396, 16
      %v845 = vpop.permute.xlu0 %844
      %846 = vrot.lane.b32.xlu0 %v398, 16
      %v847 = vpop.permute.xlu0 %846
      %848 = vrot.lane.b32.xlu0 %v401, 16
      %v849 = vpop.permute.xlu0 %848
      %850 = vrot.lane.b32.xlu0 %v403, 16
      %v851 = vpop.permute.xlu0 %850
      %852 = vrot.lane.b32.xlu0 %v406, 16
      %v853 = vpop.permute.xlu0 %852
      %854 = vrot.lane.b32.xlu0 %v408, 16
      %v855 = vpop.permute.xlu0 %854
      %856 = vrot.lane.b32.xlu0 %v411, 16
      %v857 = vpop.permute.xlu0 %856
      %858 = vrot.lane.b32.xlu0 %v413, 16
      %v859 = vpop.permute.xlu0 %858
      %860 = vrot.lane.b32.xlu0 %v416, 16
      %v861 = vpop.permute.xlu0 %860
      %862 = vrot.lane.b32.xlu0 %v418, 16
      %v863 = vpop.permute.xlu0 %862
      %864 = vrot.lane.b32.xlu0 %v421, 16
      %v865 = vpop.permute.xlu0 %864
      %866 = vrot.lane.b32.xlu0 %v423, 16
      %v867 = vpop.permute.xlu0 %866
      %868 = vrot.lane.b32.xlu0 %v426, 16
      %v869 = vpop.permute.xlu0 %868
      %870 = vrot.lane.b32.xlu0 %v428, 16
      %v871 = vpop.permute.xlu0 %870
      %872 = vrot.lane.b32.xlu0 %v431, 16
      %v873 = vpop.permute.xlu0 %872
      %874 = vrot.lane.b32.xlu0 %v433, 16
      %v875 = vpop.permute.xlu0 %874
      %876 = vrot.lane.b32.xlu0 %v436, 16
      %v877 = vpop.permute.xlu0 %876
      %878 = vrot.lane.b32.xlu0 %v438, 16
      %v879 = vpop.permute.xlu0 %878
      %880 = vrot.lane.b32.xlu0 %v441, 16
      %v881 = vpop.permute.xlu0 %880
      %882 = vrot.lane.b32.xlu0 %v443, 16
      %v883 = vpop.permute.xlu0 %882
      %884 = vrot.lane.b32.xlu0 %v446, 16
      %v885 = vpop.permute.xlu0 %884
      %886 = vrot.lane.b32.xlu0 %v448, 16
      %v887 = vpop.permute.xlu0 %886
      %888 = vrot.lane.b32.xlu0 %v451, 16
      %v889 = vpop.permute.xlu0 %888
      %890 = vrot.lane.b32.xlu0 %v453, 16
      %v891 = vpop.permute.xlu0 %890
      %892 = vrot.lane.b32.xlu0 %v456, 16
      %v893 = vpop.permute.xlu0 %892
      %894 = vrot.lane.b32.xlu0 %v458, 16
      %v895 = vpop.permute.xlu0 %894
      %896 = vrot.lane.b32.xlu0 %v833, 16
      %v897 = vpop.permute.xlu0 %896
      %898 = vrot.lane.b32.xlu0 %v835, 16
      %v899 = vpop.permute.xlu0 %898
      %v932 = vrot.slane %v324, 2
      %v933 = vrot.slane %v325, 2
      %v934 = vsel %vm555, %v932, %v933
      %v935 = vrot.slane %v326, 2
      %v936 = vsel %vm555, %v933, %v935
      %937 = vrot.lane.b32.xlu0 %v563, 20
      %v938 = vpop.permute.xlu0 %937
      %939 = vrot.lane.b32.xlu0 %v565, 20
      %v940 = vpop.permute.xlu0 %939
      %941 = vrot.lane.b32.xlu0 %v568, 20
      %v942 = vpop.permute.xlu0 %941
      %943 = vrot.lane.b32.xlu0 %v570, 20
      %v944 = vpop.permute.xlu0 %943
      %945 = vrot.lane.b32.xlu0 %v573, 20
      %v946 = vpop.permute.xlu0 %945
      %947 = vrot.lane.b32.xlu0 %v575, 20
      %v948 = vpop.permute.xlu0 %947
      %949 = vrot.lane.b32.xlu0 %v578, 20
      %v950 = vpop.permute.xlu0 %949
      %951 = vrot.lane.b32.xlu0 %v580, 20
      %v952 = vpop.permute.xlu0 %951
      %953 = vrot.lane.b32.xlu0 %v583, 20
      %v954 = vpop.permute.xlu0 %953
      %955 = vrot.lane.b32.xlu0 %v585, 20
      %v956 = vpop.permute.xlu0 %955
      %957 = vrot.lane.b32.xlu0 %v588, 20
      %v958 = vpop.permute.xlu0 %957
      %959 = vrot.lane.b32.xlu0 %v590, 20
      %v960 = vpop.permute.xlu0 %959
      %961 = vrot.lane.b32.xlu0 %v593, 20
      %v962 = vpop.permute.xlu0 %961
      %963 = vrot.lane.b32.xlu0 %v595, 20
      %v964 = vpop.permute.xlu0 %963
      %965 = vrot.lane.b32.xlu0 %v598, 20
      %v966 = vpop.permute.xlu0 %965
      %967 = vrot.lane.b32.xlu0 %v600, 20
      %v968 = vpop.permute.xlu0 %967
      %969 = vrot.lane.b32.xlu0 %v603, 20
      %v970 = vpop.permute.xlu0 %969
      %971 = vrot.lane.b32.xlu0 %v605, 20
      %v972 = vpop.permute.xlu0 %971
      %973 = vrot.lane.b32.xlu0 %v608, 20
      %v974 = vpop.permute.xlu0 %973
      %975 = vrot.lane.b32.xlu0 %v610, 20
      %v976 = vpop.permute.xlu0 %975
      %977 = vrot.lane.b32.xlu0 %v613, 20
      %v978 = vpop.permute.xlu0 %977
      %979 = vrot.lane.b32.xlu0 %v615, 20
      %v980 = vpop.permute.xlu0 %979
      %981 = vrot.lane.b32.xlu0 %v618, 20
      %v982 = vpop.permute.xlu0 %981
      %983 = vrot.lane.b32.xlu0 %v620, 20
      %v984 = vpop.permute.xlu0 %983
      %985 = vrot.lane.b32.xlu0 %v623, 20
      %v986 = vpop.permute.xlu0 %985
      %987 = vrot.lane.b32.xlu0 %v625, 20
      %v988 = vpop.permute.xlu0 %987
      %989 = vrot.lane.b32.xlu0 %v628, 20
      %v990 = vpop.permute.xlu0 %989
      %991 = vrot.lane.b32.xlu0 %v630, 20
      %v992 = vpop.permute.xlu0 %991
      %993 = vrot.lane.b32.xlu0 %v633, 20
      %v994 = vpop.permute.xlu0 %993
      %995 = vrot.lane.b32.xlu0 %v635, 20
      %v996 = vpop.permute.xlu0 %995
      %997 = vrot.lane.b32.xlu0 %v934, 20
      %v998 = vpop.permute.xlu0 %997
      %999 = vrot.lane.b32.xlu0 %v936, 20
      %v1000 = vpop.permute.xlu0 %999
      %1035 = vrot.lane.b32.xlu0 %v282, 24
      %v1036 = vpop.permute.xlu0 %1035
      %1037 = vrot.lane.b32.xlu0 %v283, 24
      %v1038 = vpop.permute.xlu0 %1037
      %1039 = vrot.lane.b32.xlu0 %v285, 24
      %v1040 = vpop.permute.xlu0 %1039
      %1041 = vrot.lane.b32.xlu0 %v286, 24
      %v1042 = vpop.permute.xlu0 %1041
      %1043 = vrot.lane.b32.xlu0 %v288, 24
      %v1044 = vpop.permute.xlu0 %1043
      %1045 = vrot.lane.b32.xlu0 %v289, 24
      %v1046 = vpop.permute.xlu0 %1045
      %1047 = vrot.lane.b32.xlu0 %v291, 24
      %v1048 = vpop.permute.xlu0 %1047
      %1049 = vrot.lane.b32.xlu0 %v292, 24
      %v1050 = vpop.permute.xlu0 %1049
      %1051 = vrot.lane.b32.xlu0 %v294, 24
      %v1052 = vpop.permute.xlu0 %1051
      %1053 = vrot.lane.b32.xlu0 %v295, 24
      %v1054 = vpop.permute.xlu0 %1053
      %1055 = vrot.lane.b32.xlu0 %v297, 24
      %v1056 = vpop.permute.xlu0 %1055
      %1057 = vrot.lane.b32.xlu0 %v298, 24
      %v1058 = vpop.permute.xlu0 %1057
      %1059 = vrot.lane.b32.xlu0 %v300, 24
      %v1060 = vpop.permute.xlu0 %1059
      %1061 = vrot.lane.b32.xlu0 %v301, 24
      %v1062 = vpop.permute.xlu0 %1061
      %1063 = vrot.lane.b32.xlu0 %v303, 24
      %v1064 = vpop.permute.xlu0 %1063
      %1065 = vrot.lane.b32.xlu0 %v304, 24
      %v1066 = vpop.permute.xlu0 %1065
      %1067 = vrot.lane.b32.xlu0 %v306, 24
      %v1068 = vpop.permute.xlu0 %1067
      %1069 = vrot.lane.b32.xlu0 %v307, 24
      %v1070 = vpop.permute.xlu0 %1069
      %1071 = vrot.lane.b32.xlu0 %v309, 24
      %v1072 = vpop.permute.xlu0 %1071
      %1073 = vrot.lane.b32.xlu0 %v310, 24
      %v1074 = vpop.permute.xlu0 %1073
      %1075 = vrot.lane.b32.xlu0 %v312, 24
      %v1076 = vpop.permute.xlu0 %1075
      %1077 = vrot.lane.b32.xlu0 %v313, 24
      %v1078 = vpop.permute.xlu0 %1077
      %1079 = vrot.lane.b32.xlu0 %v315, 24
      %v1080 = vpop.permute.xlu0 %1079
      %1081 = vrot.lane.b32.xlu0 %v316, 24
      %v1082 = vpop.permute.xlu0 %1081
      %1083 = vrot.lane.b32.xlu0 %v318, 24
      %v1084 = vpop.permute.xlu0 %1083
      %1085 = vrot.lane.b32.xlu0 %v319, 24
      %v1086 = vpop.permute.xlu0 %1085
      %1087 = vrot.lane.b32.xlu0 %v321, 24
      %v1088 = vpop.permute.xlu0 %1087
      %1089 = vrot.lane.b32.xlu0 %v322, 24
      %v1090 = vpop.permute.xlu0 %1089
      %1091 = vrot.lane.b32.xlu0 %v324, 24
      %v1092 = vpop.permute.xlu0 %1091
      %1093 = vrot.lane.b32.xlu0 %v325, 24
      %v1094 = vpop.permute.xlu0 %1093
      %1095 = vrot.lane.b32.xlu0 %v327, 24
      %v1096 = vpop.permute.xlu0 %1095
      %1097 = vrot.lane.b32.xlu0 %v328, 24
      %v1098 = vpop.permute.xlu0 %1097
      %v1132 = vrot.slane %v327, 1
      %v1133 = vrot.slane %v328, 1
      %v1134 = vsel %vm378, %v1132, %v1133
      %v1135 = vrot.slane %v329, 1
      %v1136 = vsel %vm378, %v1133, %v1135
      %1137 = vrot.lane.b32.xlu0 %v391, 28
      %v1138 = vpop.permute.xlu0 %1137
      %1139 = vrot.lane.b32.xlu0 %v393, 28
      %v1140 = vpop.permute.xlu0 %1139
      %1141 = vrot.lane.b32.xlu0 %v396, 28
      %v1142 = vpop.permute.xlu0 %1141
      %1143 = vrot.lane.b32.xlu0 %v398, 28
      %v1144 = vpop.permute.xlu0 %1143
      %1145 = vrot.lane.b32.xlu0 %v401, 28
      %v1146 = vpop.permute.xlu0 %1145
      %1147 = vrot.lane.b32.xlu0 %v403, 28
      %v1148 = vpop.permute.xlu0 %1147
      %1149 = vrot.lane.b32.xlu0 %v406, 28
      %v1150 = vpop.permute.xlu0 %1149
      %1151 = vrot.lane.b32.xlu0 %v408, 28
      %v1152 = vpop.permute.xlu0 %1151
      %1153 = vrot.lane.b32.xlu0 %v411, 28
      %v1154 = vpop.permute.xlu0 %1153
      %1155 = vrot.lane.b32.xlu0 %v413, 28
      %v1156 = vpop.permute.xlu0 %1155
      %1157 = vrot.lane.b32.xlu0 %v416, 28
      %v1158 = vpop.permute.xlu0 %1157
      %1159 = vrot.lane.b32.xlu0 %v418, 28
      %v1160 = vpop.permute.xlu0 %1159
      %1161 = vrot.lane.b32.xlu0 %v421, 28
      %v1162 = vpop.permute.xlu0 %1161
      %1163 = vrot.lane.b32.xlu0 %v423, 28
      %v1164 = vpop.permute.xlu0 %1163
      %1165 = vrot.lane.b32.xlu0 %v426, 28
      %v1166 = vpop.permute.xlu0 %1165
      %1167 = vrot.lane.b32.xlu0 %v428, 28
      %v1168 = vpop.permute.xlu0 %1167
      %1169 = vrot.lane.b32.xlu0 %v431, 28
      %v1170 = vpop.permute.xlu0 %1169
      %1171 = vrot.lane.b32.xlu0 %v433, 28
      %v1172 = vpop.permute.xlu0 %1171
      %1173 = vrot.lane.b32.xlu0 %v436, 28
      %v1174 = vpop.permute.xlu0 %1173
      %1175 = vrot.lane.b32.xlu0 %v438, 28
      %v1176 = vpop.permute.xlu0 %1175
      %1177 = vrot.lane.b32.xlu0 %v441, 28
      %v1178 = vpop.permute.xlu0 %1177
      %1179 = vrot.lane.b32.xlu0 %v443, 28
      %v1180 = vpop.permute.xlu0 %1179
      %1181 = vrot.lane.b32.xlu0 %v446, 28
      %v1182 = vpop.permute.xlu0 %1181
      %1183 = vrot.lane.b32.xlu0 %v448, 28
      %v1184 = vpop.permute.xlu0 %1183
      %1185 = vrot.lane.b32.xlu0 %v451, 28
      %v1186 = vpop.permute.xlu0 %1185
      %1187 = vrot.lane.b32.xlu0 %v453, 28
      %v1188 = vpop.permute.xlu0 %1187
      %1189 = vrot.lane.b32.xlu0 %v456, 28
      %v1190 = vpop.permute.xlu0 %1189
      %1191 = vrot.lane.b32.xlu0 %v458, 28
      %v1192 = vpop.permute.xlu0 %1191
      %1193 = vrot.lane.b32.xlu0 %v833, 28
      %v1194 = vpop.permute.xlu0 %1193
      %1195 = vrot.lane.b32.xlu0 %v835, 28
      %v1196 = vpop.permute.xlu0 %1195
      %1197 = vrot.lane.b32.xlu0 %v1134, 28
      %v1198 = vpop.permute.xlu0 %1197
      %1199 = vrot.lane.b32.xlu0 %v1136, 28
      %v1200 = vpop.permute.xlu0 %1199
      %v1233 = vrot.slane %v327, 2
      %v1234 = vrot.slane %v328, 2
      %v1235 = vsel %vm555, %v1233, %v1234
      %v1236 = vrot.slane %v329, 2
      %v1237 = vsel %vm555, %v1234, %v1236
      %1238 = vrot.lane.b32.xlu0 %v568, 32
      %v1239 = vpop.permute.xlu0 %1238
      %1240 = vrot.lane.b32.xlu0 %v570, 32
      %v1241 = vpop.permute.xlu0 %1240
      %1242 = vrot.lane.b32.xlu0 %v573, 32
      %v1243 = vpop.permute.xlu0 %1242
      %1244 = vrot.lane.b32.xlu0 %v575, 32
      %v1245 = vpop.permute.xlu0 %1244
      %1246 = vrot.lane.b32.xlu0 %v578, 32
      %v1247 = vpop.permute.xlu0 %1246
      %1248 = vrot.lane.b32.xlu0 %v580, 32
      %v1249 = vpop.permute.xlu0 %1248
      %1250 = vrot.lane.b32.xlu0 %v583, 32
      %v1251 = vpop.permute.xlu0 %1250
      %1252 = vrot.lane.b32.xlu0 %v585, 32
      %v1253 = vpop.permute.xlu0 %1252
      %1254 = vrot.lane.b32.xlu0 %v588, 32
      %v1255 = vpop.permute.xlu0 %1254
      %1256 = vrot.lane.b32.xlu0 %v590, 32
      %v1257 = vpop.permute.xlu0 %1256
      %1258 = vrot.lane.b32.xlu0 %v593, 32
      %v1259 = vpop.permute.xlu0 %1258
      %1260 = vrot.lane.b32.xlu0 %v595, 32
      %v1261 = vpop.permute.xlu0 %1260
      %1262 = vrot.lane.b32.xlu0 %v598, 32
      %v1263 = vpop.permute.xlu0 %1262
      %1264 = vrot.lane.b32.xlu0 %v600, 32
      %v1265 = vpop.permute.xlu0 %1264
      %1266 = vrot.lane.b32.xlu0 %v603, 32
      %v1267 = vpop.permute.xlu0 %1266
      %1268 = vrot.lane.b32.xlu0 %v605, 32
      %v1269 = vpop.permute.xlu0 %1268
      %1270 = vrot.lane.b32.xlu0 %v608, 32
      %v1271 = vpop.permute.xlu0 %1270
      %1272 = vrot.lane.b32.xlu0 %v610, 32
      %v1273 = vpop.permute.xlu0 %1272
      %1274 = vrot.lane.b32.xlu0 %v613, 32
      %v1275 = vpop.permute.xlu0 %1274
      %1276 = vrot.lane.b32.xlu0 %v615, 32
      %v1277 = vpop.permute.xlu0 %1276
      %1278 = vrot.lane.b32.xlu0 %v618, 32
      %v1279 = vpop.permute.xlu0 %1278
      %1280 = vrot.lane.b32.xlu0 %v620, 32
      %v1281 = vpop.permute.xlu0 %1280
      %1282 = vrot.lane.b32.xlu0 %v623, 32
      %v1283 = vpop.permute.xlu0 %1282
      %1284 = vrot.lane.b32.xlu0 %v625, 32
      %v1285 = vpop.permute.xlu0 %1284
      %1286 = vrot.lane.b32.xlu0 %v628, 32
      %v1287 = vpop.permute.xlu0 %1286
      %1288 = vrot.lane.b32.xlu0 %v630, 32
      %v1289 = vpop.permute.xlu0 %1288
      %1290 = vrot.lane.b32.xlu0 %v633, 32
      %v1291 = vpop.permute.xlu0 %1290
      %1292 = vrot.lane.b32.xlu0 %v635, 32
      %v1293 = vpop.permute.xlu0 %1292
      %1294 = vrot.lane.b32.xlu0 %v934, 32
      %v1295 = vpop.permute.xlu0 %1294
      %1296 = vrot.lane.b32.xlu0 %v936, 32
      %v1297 = vpop.permute.xlu0 %1296
      %1298 = vrot.lane.b32.xlu0 %v1235, 32
      %v1299 = vpop.permute.xlu0 %1298
      %1300 = vrot.lane.b32.xlu0 %v1237, 32
      %v1301 = vpop.permute.xlu0 %1300
      %vm1334 = vcmask 31744
      %v1335 = vsel %vm1334, %v276, %v460
      %v1336 = vsel %vm1334, %v277, %v462
      %v1337 = vsel %vm1334, %v279, %v464
      %v1338 = vsel %vm1334, %v280, %v466
      %v1339 = vsel %vm1334, %v282, %v468
      %v1340 = vsel %vm1334, %v283, %v470
      %v1341 = vsel %vm1334, %v285, %v472
      %v1342 = vsel %vm1334, %v286, %v474
      %v1343 = vsel %vm1334, %v288, %v476
      %v1344 = vsel %vm1334, %v289, %v478
      %v1345 = vsel %vm1334, %v291, %v480
      %v1346 = vsel %vm1334, %v292, %v482
      %v1347 = vsel %vm1334, %v294, %v484
      %v1348 = vsel %vm1334, %v295, %v486
      %v1349 = vsel %vm1334, %v297, %v488
      %v1350 = vsel %vm1334, %v298, %v490
      %v1351 = vsel %vm1334, %v300, %v492
      %v1352 = vsel %vm1334, %v301, %v494
      %v1353 = vsel %vm1334, %v303, %v496
      %v1354 = vsel %vm1334, %v304, %v498
      %v1355 = vsel %vm1334, %v306, %v500
      %v1356 = vsel %vm1334, %v307, %v502
      %v1357 = vsel %vm1334, %v309, %v504
      %v1358 = vsel %vm1334, %v310, %v506
      %v1359 = vsel %vm1334, %v312, %v508
      %v1360 = vsel %vm1334, %v313, %v510
      %v1361 = vsel %vm1334, %v315, %v512
      %v1362 = vsel %vm1334, %v316, %v514
      %v1363 = vsel %vm1334, %v318, %v516
      %v1364 = vsel %vm1334, %v319, %v518
      %v1365 = vsel %vm1334, %v321, %v520
      %v1366 = vsel %vm1334, %v322, %v522
      %vm1367 = vcmask 64512
      %v1368 = vsel %vm1367, %v1335, %v637
      %v1369 = vsel %vm1367, %v1336, %v639
      %v1370 = vsel %vm1367, %v1337, %v641
      %v1371 = vsel %vm1367, %v1338, %v643
      %v1372 = vsel %vm1367, %v1339, %v645
      %v1373 = vsel %vm1367, %v1340, %v647
      %v1374 = vsel %vm1367, %v1341, %v649
      %v1375 = vsel %vm1367, %v1342, %v651
      %v1376 = vsel %vm1367, %v1343, %v653
      %v1377 = vsel %vm1367, %v1344, %v655
      %v1378 = vsel %vm1367, %v1345, %v657
      %v1379 = vsel %vm1367, %v1346, %v659
      %v1380 = vsel %vm1367, %v1347, %v661
      %v1381 = vsel %vm1367, %v1348, %v663
      %v1382 = vsel %vm1367, %v1349, %v665
      %v1383 = vsel %vm1367, %v1350, %v667
      %v1384 = vsel %vm1367, %v1351, %v669
      %v1385 = vsel %vm1367, %v1352, %v671
      %v1386 = vsel %vm1367, %v1353, %v673
      %v1387 = vsel %vm1367, %v1354, %v675
      %v1388 = vsel %vm1367, %v1355, %v677
      %v1389 = vsel %vm1367, %v1356, %v679
      %v1390 = vsel %vm1367, %v1357, %v681
      %v1391 = vsel %vm1367, %v1358, %v683
      %v1392 = vsel %vm1367, %v1359, %v685
      %v1393 = vsel %vm1367, %v1360, %v687
      %v1394 = vsel %vm1367, %v1361, %v689
      %v1395 = vsel %vm1367, %v1362, %v691
      %v1396 = vsel %vm1367, %v1363, %v693
      %v1397 = vsel %vm1367, %v1364, %v695
      %v1398 = vsel %vm1367, %v1365, %v697
      %v1399 = vsel %vm1367, %v1366, %v699
      %vm1400 = vcmask 97280
      %v1401 = vsel %vm1400, %v1368, %v735
      %v1402 = vsel %vm1400, %v1369, %v737
      %v1403 = vsel %vm1400, %v1370, %v739
      %v1404 = vsel %vm1400, %v1371, %v741
      %v1405 = vsel %vm1400, %v1372, %v743
      %v1406 = vsel %vm1400, %v1373, %v745
      %v1407 = vsel %vm1400, %v1374, %v747
      %v1408 = vsel %vm1400, %v1375, %v749
      %v1409 = vsel %vm1400, %v1376, %v751
      %v1410 = vsel %vm1400, %v1377, %v753
      %v1411 = vsel %vm1400, %v1378, %v755
      %v1412 = vsel %vm1400, %v1379, %v757
      %v1413 = vsel %vm1400, %v1380, %v759
      %v1414 = vsel %vm1400, %v1381, %v761
      %v1415 = vsel %vm1400, %v1382, %v763
      %v1416 = vsel %vm1400, %v1383, %v765
      %v1417 = vsel %vm1400, %v1384, %v767
      %v1418 = vsel %vm1400, %v1385, %v769
      %v1419 = vsel %vm1400, %v1386, %v771
      %v1420 = vsel %vm1400, %v1387, %v773
      %v1421 = vsel %vm1400, %v1388, %v775
      %v1422 = vsel %vm1400, %v1389, %v777
      %v1423 = vsel %vm1400, %v1390, %v779
      %v1424 = vsel %vm1400, %v1391, %v781
      %v1425 = vsel %vm1400, %v1392, %v783
      %v1426 = vsel %vm1400, %v1393, %v785
      %v1427 = vsel %vm1400, %v1394, %v787
      %v1428 = vsel %vm1400, %v1395, %v789
      %v1429 = vsel %vm1400, %v1396, %v791
      %v1430 = vsel %vm1400, %v1397, %v793
      %v1431 = vsel %vm1400, %v1398, %v795
      %v1432 = vsel %vm1400, %v1399, %v797
      %vm1433 = vcmask 130048
      %v1434 = vsel %vm1433, %v1401, %v837
      %v1435 = vsel %vm1433, %v1402, %v839
      %v1436 = vsel %vm1433, %v1403, %v841
      %v1437 = vsel %vm1433, %v1404, %v843
      %v1438 = vsel %vm1433, %v1405, %v845
      %v1439 = vsel %vm1433, %v1406, %v847
      %v1440 = vsel %vm1433, %v1407, %v849
      %v1441 = vsel %vm1433, %v1408, %v851
      %v1442 = vsel %vm1433, %v1409, %v853
      %v1443 = vsel %vm1433, %v1410, %v855
      %v1444 = vsel %vm1433, %v1411, %v857
      %v1445 = vsel %vm1433, %v1412, %v859
      %v1446 = vsel %vm1433, %v1413, %v861
      %v1447 = vsel %vm1433, %v1414, %v863
      %v1448 = vsel %vm1433, %v1415, %v865
      %v1449 = vsel %vm1433, %v1416, %v867
      %v1450 = vsel %vm1433, %v1417, %v869
      %v1451 = vsel %vm1433, %v1418, %v871
      %v1452 = vsel %vm1433, %v1419, %v873
      %v1453 = vsel %vm1433, %v1420, %v875
      %v1454 = vsel %vm1433, %v1421, %v877
      %v1455 = vsel %vm1433, %v1422, %v879
      %v1456 = vsel %vm1433, %v1423, %v881
      %v1457 = vsel %vm1433, %v1424, %v883
      %v1458 = vsel %vm1433, %v1425, %v885
      %v1459 = vsel %vm1433, %v1426, %v887
      %v1460 = vsel %vm1433, %v1427, %v889
      %v1461 = vsel %vm1433, %v1428, %v891
      %v1462 = vsel %vm1433, %v1429, %v893
      %v1463 = vsel %vm1433, %v1430, %v895
      %v1464 = vsel %vm1433, %v1431, %v897
      %v1465 = vsel %vm1433, %v1432, %v899
      %vm1466 = vcmask 162816
      %v1467 = vsel %vm1466, %v1434, %v938
      %v1468 = vsel %vm1466, %v1435, %v940
      %v1469 = vsel %vm1466, %v1436, %v942
      %v1470 = vsel %vm1466, %v1437, %v944
      %v1471 = vsel %vm1466, %v1438, %v946
      %v1472 = vsel %vm1466, %v1439, %v948
      %v1473 = vsel %vm1466, %v1440, %v950
      %v1474 = vsel %vm1466, %v1441, %v952
      %v1475 = vsel %vm1466, %v1442, %v954
      %v1476 = vsel %vm1466, %v1443, %v956
      %v1477 = vsel %vm1466, %v1444, %v958
      %v1478 = vsel %vm1466, %v1445, %v960
      %v1479 = vsel %vm1466, %v1446, %v962
      %v1480 = vsel %vm1466, %v1447, %v964
      %v1481 = vsel %vm1466, %v1448, %v966
      %v1482 = vsel %vm1466, %v1449, %v968
      %v1483 = vsel %vm1466, %v1450, %v970
      %v1484 = vsel %vm1466, %v1451, %v972
      %v1485 = vsel %vm1466, %v1452, %v974
      %v1486 = vsel %vm1466, %v1453, %v976
      %v1487 = vsel %vm1466, %v1454, %v978
      %v1488 = vsel %vm1466, %v1455, %v980
      %v1489 = vsel %vm1466, %v1456, %v982
      %v1490 = vsel %vm1466, %v1457, %v984
      %v1491 = vsel %vm1466, %v1458, %v986
      %v1492 = vsel %vm1466, %v1459, %v988
      %v1493 = vsel %vm1466, %v1460, %v990
      %v1494 = vsel %vm1466, %v1461, %v992
      %v1495 = vsel %vm1466, %v1462, %v994
      %v1496 = vsel %vm1466, %v1463, %v996
      %v1497 = vsel %vm1466, %v1464, %v998
      %v1498 = vsel %vm1466, %v1465, %v1000
      %vm1499 = vcmask 195584
      %v1500 = vsel %vm1499, %v1467, %v1036
      %v1501 = vsel %vm1499, %v1468, %v1038
      %v1502 = vsel %vm1499, %v1469, %v1040
      %v1503 = vsel %vm1499, %v1470, %v1042
      %v1504 = vsel %vm1499, %v1471, %v1044
      %v1505 = vsel %vm1499, %v1472, %v1046
      %v1506 = vsel %vm1499, %v1473, %v1048
      %v1507 = vsel %vm1499, %v1474, %v1050
      %v1508 = vsel %vm1499, %v1475, %v1052
      %v1509 = vsel %vm1499, %v1476, %v1054
      %v1510 = vsel %vm1499, %v1477, %v1056
      %v1511 = vsel %vm1499, %v1478, %v1058
      %v1512 = vsel %vm1499, %v1479, %v1060
      %v1513 = vsel %vm1499, %v1480, %v1062
      %v1514 = vsel %vm1499, %v1481, %v1064
      %v1515 = vsel %vm1499, %v1482, %v1066
      %v1516 = vsel %vm1499, %v1483, %v1068
      %v1517 = vsel %vm1499, %v1484, %v1070
      %v1518 = vsel %vm1499, %v1485, %v1072
      %v1519 = vsel %vm1499, %v1486, %v1074
      %v1520 = vsel %vm1499, %v1487, %v1076
      %v1521 = vsel %vm1499, %v1488, %v1078
      %v1522 = vsel %vm1499, %v1489, %v1080
      %v1523 = vsel %vm1499, %v1490, %v1082
      %v1524 = vsel %vm1499, %v1491, %v1084
      %v1525 = vsel %vm1499, %v1492, %v1086
      %v1526 = vsel %vm1499, %v1493, %v1088
      %v1527 = vsel %vm1499, %v1494, %v1090
      %v1528 = vsel %vm1499, %v1495, %v1092
      %v1529 = vsel %vm1499, %v1496, %v1094
      %v1530 = vsel %vm1499, %v1497, %v1096
      %v1531 = vsel %vm1499, %v1498, %v1098
      %vm1532 = vcmask 228352
      %v1533 = vsel %vm1532, %v1500, %v1138
      %v1534 = vsel %vm1532, %v1501, %v1140
      %v1535 = vsel %vm1532, %v1502, %v1142
      %v1536 = vsel %vm1532, %v1503, %v1144
      %v1537 = vsel %vm1532, %v1504, %v1146
      %v1538 = vsel %vm1532, %v1505, %v1148
      %v1539 = vsel %vm1532, %v1506, %v1150
      %v1540 = vsel %vm1532, %v1507, %v1152
      %v1541 = vsel %vm1532, %v1508, %v1154
      %v1542 = vsel %vm1532, %v1509, %v1156
      %v1543 = vsel %vm1532, %v1510, %v1158
      %v1544 = vsel %vm1532, %v1511, %v1160
      %v1545 = vsel %vm1532, %v1512, %v1162
      %v1546 = vsel %vm1532, %v1513, %v1164
      %v1547 = vsel %vm1532, %v1514, %v1166
      %v1548 = vsel %vm1532, %v1515, %v1168
      %v1549 = vsel %vm1532, %v1516, %v1170
      %v1550 = vsel %vm1532, %v1517, %v1172
      %v1551 = vsel %vm1532, %v1518, %v1174
      %v1552 = vsel %vm1532, %v1519, %v1176
      %v1553 = vsel %vm1532, %v1520, %v1178
      %v1554 = vsel %vm1532, %v1521, %v1180
      %v1555 = vsel %vm1532, %v1522, %v1182
      %v1556 = vsel %vm1532, %v1523, %v1184
      %v1557 = vsel %vm1532, %v1524, %v1186
      %v1558 = vsel %vm1532, %v1525, %v1188
      %v1559 = vsel %vm1532, %v1526, %v1190
      %v1560 = vsel %vm1532, %v1527, %v1192
      %v1561 = vsel %vm1532, %v1528, %v1194
      %v1562 = vsel %vm1532, %v1529, %v1196
      %v1563 = vsel %vm1532, %v1530, %v1198
      %v1564 = vsel %vm1532, %v1531, %v1200
      %vm1565 = vcmask 261120
      %v1566 = vsel %vm1565, %v1533, %v1239
      %v1567 = vsel %vm1565, %v1534, %v1241
      %v1568 = vsel %vm1565, %v1535, %v1243
      %v1569 = vsel %vm1565, %v1536, %v1245
      %v1570 = vsel %vm1565, %v1537, %v1247
      %v1571 = vsel %vm1565, %v1538, %v1249
      %v1572 = vsel %vm1565, %v1539, %v1251
      %v1573 = vsel %vm1565, %v1540, %v1253
      %v1574 = vsel %vm1565, %v1541, %v1255
      %v1575 = vsel %vm1565, %v1542, %v1257
      %v1576 = vsel %vm1565, %v1543, %v1259
      %v1577 = vsel %vm1565, %v1544, %v1261
      %v1578 = vsel %vm1565, %v1545, %v1263
      %v1579 = vsel %vm1565, %v1546, %v1265
      %v1580 = vsel %vm1565, %v1547, %v1267
      %v1581 = vsel %vm1565, %v1548, %v1269
      %v1582 = vsel %vm1565, %v1549, %v1271
      %v1583 = vsel %vm1565, %v1550, %v1273
      %v1584 = vsel %vm1565, %v1551, %v1275
      %v1585 = vsel %vm1565, %v1552, %v1277
      %v1586 = vsel %vm1565, %v1553, %v1279
      %v1587 = vsel %vm1565, %v1554, %v1281
      %v1588 = vsel %vm1565, %v1555, %v1283
      %v1589 = vsel %vm1565, %v1556, %v1285
      %v1590 = vsel %vm1565, %v1557, %v1287
      %v1591 = vsel %vm1565, %v1558, %v1289
      %v1592 = vsel %vm1565, %v1559, %v1291
      %v1593 = vsel %vm1565, %v1560, %v1293
      %v1594 = vsel %vm1565, %v1561, %v1295
      %v1595 = vsel %vm1565, %v1562, %v1297
      %v1596 = vsel %vm1565, %v1563, %v1299
      %v1597 = vsel %vm1565, %v1564, %v1301
      %v1598 = vpack.c.bf16 %v1567, %v1566
      %v1599 = vpack.c.bf16 %v1569, %v1568
      %v1600 = vpack.c.bf16 %v1571, %v1570
      %v1601 = vpack.c.bf16 %v1573, %v1572
      %v1602 = vpack.c.bf16 %v1575, %v1574
      %v1603 = vpack.c.bf16 %v1577, %v1576
      %v1604 = vpack.c.bf16 %v1579, %v1578
      %v1605 = vpack.c.bf16 %v1581, %v1580
      %v1606 = vpack.c.bf16 %v1583, %v1582
      %v1607 = vpack.c.bf16 %v1585, %v1584
      %v1608 = vpack.c.bf16 %v1587, %v1586
      %v1609 = vpack.c.bf16 %v1589, %v1588
      %v1610 = vpack.c.bf16 %v1591, %v1590
      %v1611 = vpack.c.bf16 %v1593, %v1592
      %v1612 = vpack.c.bf16 %v1595, %v1594
      %v1613 = vpack.c.bf16 %v1597, %v1596
      %v1614 = vld [vmem:[%s1] sm:$0xf]
      %v1615 = vld [vmem:[%s1 + $0x4] sm:$0xf]
      %v1616 = vld [vmem:[%s1 + $0x8] sm:$0xf]
      %v1617 = vld [vmem:[%s1 + $0xc] sm:$0xf]
      %v1618 = vld [vmem:[%s1 + $0x10] sm:$0x3]
      %v1624 = vunpack.c.l.b16 %v1614
      %v1625 = vunpack.c.l.b16 %v1615
      %v1626 = vunpack.c.l.b16 %v1616
      %v1627 = vunpack.c.l.b16 %v1617
      %v1628 = vunpack.c.l.b16 %v1618
      %v1629 = vpack.c.b16 %v1625, %v1624
      %v1630 = vpack.c.b16 %v1627, %v1626
      %v1631 = vpack.c.b16 %v1628, %v1628
      %vm1634 = vcmask 293888
      %v1636 = vsel %vm1634, %v1598, 0
      %v1639 = vsel %vm1634, %v1599, 0
      %v1642 = vsel %vm1634, %v1600, 0
      %v1645 = vsel %vm1634, %v1601, 0
      %v1648 = vsel %vm1634, %v1602, 0
      %v1651 = vsel %vm1634, %v1603, 0
      %v1654 = vsel %vm1634, %v1604, 0
      %v1657 = vsel %vm1634, %v1605, 0
      %v1660 = vsel %vm1634, %v1606, 0
      %v1663 = vsel %vm1634, %v1607, 0
      %v1666 = vsel %vm1634, %v1608, 0
      %v1669 = vsel %vm1634, %v1609, 0
      %v1672 = vsel %vm1634, %v1610, 0
      %v1675 = vsel %vm1634, %v1611, 0
      %v1678 = vsel %vm1634, %v1612, 0
      %v1681 = vsel %vm1634, %v1613, 0
      %vm1683 = vcmask 1041408
      %v1685 = vsel %vm1683, %v1631, 0
      %1687 = vmatpush.bf16.msra.mxu0 0
      %1688 = vmatpush.bf16.msra.mxu0 0
      %1689 = vmatpush.bf16.msra.mxu0 0
      %1690 = vmatpush.bf16.msra.mxu0 0
      %1691 = vmatpush.bf16.msra.mxu0 0
      %1692 = vmatpush.bf16.msra.mxu0 %v1685
      %1693 = vmatpush.bf16.msra.mxu0 %v1630
      %1694 = vmatpush.bf16.msra.mxu0 %v1629
      %1695 = vmatmul.bf16.gmra.mxu0 %v1636
      %v1696 = vpop.f32.mrf.mxu0
      %v1697 = vadd.f32 0.0, %v1696
      %v1698 = vpop.f32.mrf.mxu0
      %v1699 = vadd.f32 0.0, %v1698
      %1700 = vmatmul.bf16.gmra.mxu0 %v1639
      %v1701 = vpop.f32.mrf.mxu0
      %v1702 = vadd.f32 0.0, %v1701
      %v1703 = vpop.f32.mrf.mxu0
      %v1704 = vadd.f32 0.0, %v1703
      %1705 = vmatmul.bf16.gmra.mxu0 %v1642
      %v1706 = vpop.f32.mrf.mxu0
      %v1707 = vadd.f32 0.0, %v1706
      %v1708 = vpop.f32.mrf.mxu0
      %v1709 = vadd.f32 0.0, %v1708
      %1710 = vmatmul.bf16.gmra.mxu0 %v1645
      %v1711 = vpop.f32.mrf.mxu0
      %v1712 = vadd.f32 0.0, %v1711
      %v1713 = vpop.f32.mrf.mxu0
      %v1714 = vadd.f32 0.0, %v1713
      %1715 = vmatmul.bf16.gmra.mxu0 %v1648
      %v1716 = vpop.f32.mrf.mxu0
      %v1717 = vadd.f32 0.0, %v1716
      %v1718 = vpop.f32.mrf.mxu0
      %v1719 = vadd.f32 0.0, %v1718
      %1720 = vmatmul.bf16.gmra.mxu0 %v1651
      %v1721 = vpop.f32.mrf.mxu0
      %v1722 = vadd.f32 0.0, %v1721
      %v1723 = vpop.f32.mrf.mxu0
      %v1724 = vadd.f32 0.0, %v1723
      %1725 = vmatmul.bf16.gmra.mxu0 %v1654
      %v1726 = vpop.f32.mrf.mxu0
      %v1727 = vadd.f32 0.0, %v1726
      %v1728 = vpop.f32.mrf.mxu0
      %v1729 = vadd.f32 0.0, %v1728
      %1730 = vmatmul.bf16.gmra.mxu0 %v1657
      %v1731 = vpop.f32.mrf.mxu0
      %v1732 = vadd.f32 0.0, %v1731
      %v1733 = vpop.f32.mrf.mxu0
      %v1734 = vadd.f32 0.0, %v1733
      %1735 = vmatmul.bf16.gmra.mxu0 %v1660
      %v1736 = vpop.f32.mrf.mxu0
      %v1737 = vadd.f32 0.0, %v1736
      %v1738 = vpop.f32.mrf.mxu0
      %v1739 = vadd.f32 0.0, %v1738
      %1740 = vmatmul.bf16.gmra.mxu0 %v1663
      %v1741 = vpop.f32.mrf.mxu0
      %v1742 = vadd.f32 0.0, %v1741
      %v1743 = vpop.f32.mrf.mxu0
      %v1744 = vadd.f32 0.0, %v1743
      %1745 = vmatmul.bf16.gmra.mxu0 %v1666
      %v1746 = vpop.f32.mrf.mxu0
      %v1747 = vadd.f32 0.0, %v1746
      %v1748 = vpop.f32.mrf.mxu0
      %v1749 = vadd.f32 0.0, %v1748
      %1750 = vmatmul.bf16.gmra.mxu0 %v1669
      %v1751 = vpop.f32.mrf.mxu0
      %v1752 = vadd.f32 0.0, %v1751
      %v1753 = vpop.f32.mrf.mxu0
      %v1754 = vadd.f32 0.0, %v1753
      %1755 = vmatmul.bf16.gmra.mxu0 %v1672
      %v1756 = vpop.f32.mrf.mxu0
      %v1757 = vadd.f32 0.0, %v1756
      %v1758 = vpop.f32.mrf.mxu0
      %v1759 = vadd.f32 0.0, %v1758
      %1760 = vmatmul.bf16.gmra.mxu0 %v1675
      %v1761 = vpop.f32.mrf.mxu0
      %v1762 = vadd.f32 0.0, %v1761
      %v1763 = vpop.f32.mrf.mxu0
      %v1764 = vadd.f32 0.0, %v1763
      %1765 = vmatmul.bf16.gmra.mxu0 %v1678
      %v1766 = vpop.f32.mrf.mxu0
      %v1767 = vadd.f32 0.0, %v1766
      %v1768 = vpop.f32.mrf.mxu0
      %v1769 = vadd.f32 0.0, %v1768
      %1770 = vmatmul.bf16.gmra.mxu0 %v1681
      %v1771 = vpop.f32.mrf.mxu0
      %v1772 = vadd.f32 0.0, %v1771
      %v1773 = vpop.f32.mrf.mxu0
      %v1774 = vadd.f32 0.0, %v1773
      %1775 = vdwg.mxu0
      %v1776 = vld [vmem:[%s2] sm:$0x1]
      %v1778 = vperm.slane %v1776, 0
      %v1780 = vmul.f32 %v1697, %v1778
      %v1781 = vmul.f32 %v1699, %v1778
      %v1782 = vmul.f32 %v1702, %v1778
      %v1783 = vmul.f32 %v1704, %v1778
      %v1784 = vmul.f32 %v1707, %v1778
      %v1785 = vmul.f32 %v1709, %v1778
      %v1786 = vmul.f32 %v1712, %v1778
      %v1787 = vmul.f32 %v1714, %v1778
      %v1788 = vmul.f32 %v1717, %v1778
      %v1789 = vmul.f32 %v1719, %v1778
      %v1790 = vmul.f32 %v1722, %v1778
      %v1791 = vmul.f32 %v1724, %v1778
      %v1792 = vmul.f32 %v1727, %v1778
      %v1793 = vmul.f32 %v1729, %v1778
      %v1794 = vmul.f32 %v1732, %v1778
      %v1795 = vmul.f32 %v1734, %v1778
      %v1796 = vmul.f32 %v1737, %v1778
      %v1797 = vmul.f32 %v1739, %v1778
      %v1798 = vmul.f32 %v1742, %v1778
      %v1799 = vmul.f32 %v1744, %v1778
      %v1800 = vmul.f32 %v1747, %v1778
      %v1801 = vmul.f32 %v1749, %v1778
      %v1802 = vmul.f32 %v1752, %v1778
      %v1803 = vmul.f32 %v1754, %v1778
      %v1804 = vmul.f32 %v1757, %v1778
      %v1805 = vmul.f32 %v1759, %v1778
      %v1806 = vmul.f32 %v1762, %v1778
      %v1807 = vmul.f32 %v1764, %v1778
      %v1808 = vmul.f32 %v1767, %v1778
      %v1809 = vmul.f32 %v1769, %v1778
      %v1810 = vmul.f32 %v1772, %v1778
      %v1811 = vmul.f32 %v1774, %v1778
      %v1812 = vld [vmem:[%s3] sm:$0x1]
      %v1814 = vperm.slane %v1812, 0
      %v1816 = vadd.f32 %v1780, %v1814
      %v1817 = vadd.f32 %v1781, %v1814
      %v1818 = vadd.f32 %v1782, %v1814
      %v1819 = vadd.f32 %v1783, %v1814
      %v1820 = vadd.f32 %v1784, %v1814
      %v1821 = vadd.f32 %v1785, %v1814
      %v1822 = vadd.f32 %v1786, %v1814
      %v1823 = vadd.f32 %v1787, %v1814
      %v1824 = vadd.f32 %v1788, %v1814
      %v1825 = vadd.f32 %v1789, %v1814
      %v1826 = vadd.f32 %v1790, %v1814
      %v1827 = vadd.f32 %v1791, %v1814
      %v1828 = vadd.f32 %v1792, %v1814
      %v1829 = vadd.f32 %v1793, %v1814
      %v1830 = vadd.f32 %v1794, %v1814
      %v1831 = vadd.f32 %v1795, %v1814
      %v1832 = vadd.f32 %v1796, %v1814
      %v1833 = vadd.f32 %v1797, %v1814
      %v1834 = vadd.f32 %v1798, %v1814
      %v1835 = vadd.f32 %v1799, %v1814
      %v1836 = vadd.f32 %v1800, %v1814
      %v1837 = vadd.f32 %v1801, %v1814
      %v1838 = vadd.f32 %v1802, %v1814
      %v1839 = vadd.f32 %v1803, %v1814
      %v1840 = vadd.f32 %v1804, %v1814
      %v1841 = vadd.f32 %v1805, %v1814
      %v1842 = vadd.f32 %v1806, %v1814
      %v1843 = vadd.f32 %v1807, %v1814
      %v1844 = vadd.f32 %v1808, %v1814
      %v1845 = vadd.f32 %v1809, %v1814
      %v1846 = vadd.f32 %v1810, %v1814
      %v1847 = vadd.f32 %v1811, %v1814
      %v1848 = vmax.f32 %v1816, 0.0
      %v1849 = vmax.f32 %v1817, 0.0
      %v1850 = vmax.f32 %v1818, 0.0
      %v1851 = vmax.f32 %v1819, 0.0
      %v1852 = vmax.f32 %v1820, 0.0
      %v1853 = vmax.f32 %v1821, 0.0
      %v1854 = vmax.f32 %v1822, 0.0
      %v1855 = vmax.f32 %v1823, 0.0
      %v1856 = vmax.f32 %v1824, 0.0
      %v1857 = vmax.f32 %v1825, 0.0
      %v1858 = vmax.f32 %v1826, 0.0
      %v1859 = vmax.f32 %v1827, 0.0
      %v1860 = vmax.f32 %v1828, 0.0
      %v1861 = vmax.f32 %v1829, 0.0
      %v1862 = vmax.f32 %v1830, 0.0
      %v1863 = vmax.f32 %v1831, 0.0
      %v1864 = vmax.f32 %v1832, 0.0
      %v1865 = vmax.f32 %v1833, 0.0
      %v1866 = vmax.f32 %v1834, 0.0
      %v1867 = vmax.f32 %v1835, 0.0
      %v1868 = vmax.f32 %v1836, 0.0
      %v1869 = vmax.f32 %v1837, 0.0
      %v1870 = vmax.f32 %v1838, 0.0
      %v1871 = vmax.f32 %v1839, 0.0
      %v1872 = vmax.f32 %v1840, 0.0
      %v1873 = vmax.f32 %v1841, 0.0
      %v1874 = vmax.f32 %v1842, 0.0
      %v1875 = vmax.f32 %v1843, 0.0
      %v1876 = vmax.f32 %v1844, 0.0
      %v1877 = vmax.f32 %v1845, 0.0
      %v1878 = vmax.f32 %v1846, 0.0
      %v1879 = vmax.f32 %v1847, 0.0
      %1880 = vst.msk [vmem:[%s219] sm:$0xff] %vm1367, %v1848
      %1881 = vst.msk [vmem:[%s219 + $0x8] sm:$0xff] %vm1367, %v1849
      %1882 = vst.msk [vmem:[%s219 + $0x10] sm:$0xff] %vm1367, %v1850
      %1883 = vst.msk [vmem:[%s219 + $0x18] sm:$0xff] %vm1367, %v1851
      %1884 = vst.msk [vmem:[%s219 + $0x20] sm:$0xff] %vm1367, %v1852
      %1885 = vst.msk [vmem:[%s219 + $0x28] sm:$0xff] %vm1367, %v1853
      %1886 = vst.msk [vmem:[%s219 + $0x30] sm:$0xff] %vm1367, %v1854
      %1887 = vst.msk [vmem:[%s219 + $0x38] sm:$0xff] %vm1367, %v1855
      %1888 = vst.msk [vmem:[%s219 + $0x40] sm:$0xff] %vm1367, %v1856
      %1889 = vst.msk [vmem:[%s219 + $0x48] sm:$0xff] %vm1367, %v1857
      %1890 = vst.msk [vmem:[%s219 + $0x50] sm:$0xff] %vm1367, %v1858
      %1891 = vst.msk [vmem:[%s219 + $0x58] sm:$0xff] %vm1367, %v1859
      %1892 = vst.msk [vmem:[%s219 + $0x60] sm:$0xff] %vm1367, %v1860
      %1893 = vst.msk [vmem:[%s219 + $0x68] sm:$0xff] %vm1367, %v1861
      %1894 = vst.msk [vmem:[%s219 + $0x70] sm:$0xff] %vm1367, %v1862
      %1895 = vst.msk [vmem:[%s219 + $0x78] sm:$0xff] %vm1367, %v1863
      %1896 = vst.msk [vmem:[%s219 + $0x80] sm:$0xff] %vm1367, %v1864
      %1897 = vst.msk [vmem:[%s219 + $0x88] sm:$0xff] %vm1367, %v1865
      %1898 = vst.msk [vmem:[%s219 + $0x90] sm:$0xff] %vm1367, %v1866
      %1899 = vst.msk [vmem:[%s219 + $0x98] sm:$0xff] %vm1367, %v1867
      %1900 = vst.msk [vmem:[%s219 + $0xa0] sm:$0xff] %vm1367, %v1868
      %1901 = vst.msk [vmem:[%s219 + $0xa8] sm:$0xff] %vm1367, %v1869
      %1902 = vst.msk [vmem:[%s219 + $0xb0] sm:$0xff] %vm1367, %v1870
      %1903 = vst.msk [vmem:[%s219 + $0xb8] sm:$0xff] %vm1367, %v1871
      %1904 = vst.msk [vmem:[%s219 + $0xc0] sm:$0xff] %vm1367, %v1872
      %1905 = vst.msk [vmem:[%s219 + $0xc8] sm:$0xff] %vm1367, %v1873
      %1906 = vst.msk [vmem:[%s219 + $0xd0] sm:$0xff] %vm1367, %v1874
      %1907 = vst.msk [vmem:[%s219 + $0xd8] sm:$0xff] %vm1367, %v1875
      %1908 = vst.msk [vmem:[%s219 + $0xe0] sm:$0xff] %vm1367, %v1876
      %1909 = vst.msk [vmem:[%s219 + $0xe8] sm:$0xff] %vm1367, %v1877
      %1910 = vst.msk [vmem:[%s219 + $0xf0] sm:$0xff] %vm1367, %v1878
      %1911 = vst.msk [vmem:[%s219 + $0xf8] sm:$0xff] %vm1367, %v1879
      %s1912 = smul.u32 32, %s20
      %p1913 = scmp.lt.s32.totalorder %s19, 1
      %s1914 = scalar_select %p1913, %s19, 1
      %p1915 = scmp.lt.s32.totalorder %s1912, 31
      %s1916 = scalar_select %p1915, %s1912, 31
      %s1917 = smul.addr %s1914, 32
      %s1918 = sadd.s32 %s1916, %s1917
      %s1919 = smul.addr %s1918, 8
      %s1920 = scalar_lea.vmem %s4, %s1919
      // Predicated region
      $region37: #{conv_bn_relu.3} parent=35 // pred_check
        %p1921 = pneg %p136
      $region38: #{conv_bn_relu.3} parent=35 // pred_check_branch
        %1923 = sbr.rel (%p1921) target = $region40
      $region39: #{conv_bn_relu.3} parent=35 // pred_region
        %s1924 = smul.u32 32, %s20
      $region40: #{conv_bn_relu.3} parent=35 // pred_fallthru
        _
    $region36: #{conv_bn_relu.3} parent=5 // pred_fallthru
      _
    %p1925 = scmp.le.s32.totalorder 2, %s10
    // Predicated region
    $region41: #{conv_bn_relu.3} parent=5 // pred_check
      %p1926 = pneg %p1925
    $region42: #{conv_bn_relu.3} parent=5 // pred_check_branch
      %1928 = sbr.rel (%p1926) target = $region44
    $region43: #{conv_bn_relu.3} parent=5 // pred_region
      %s1929 = ssub.s32 %s10, 2
      // Predicated region
      $region45: #{conv_bn_relu.3} parent=43 // pred_check
        %p1930 = pneg %p142
      $region46: #{conv_bn_relu.3} parent=43 // pred_check_branch
        %1932 = sbr.rel (%p1930) target = $region48
      $region47: #{conv_bn_relu.3} parent=43 // pred_region
        %s1933 = smul.u32 32, %s22
        %p1934 = scmp.lt.s32.totalorder %s21, 1
        %s1935 = scalar_select %p1934, %s21, 1
        %p1936 = scmp.lt.s32.totalorder %s1933, 31
        %s1937 = scalar_select %p1936, %s1933, 31
        %s1938 = smul.addr %s1935, 32
        %s1939 = sadd.s32 %s1937, %s1938
        %s1940 = smul.addr %s1939, 8
        %s1941 = scalar_lea.vmem %s4, %s1940
      $region48: #{conv_bn_relu.3} parent=43 // pred_fallthru
        _
    $region44: #{conv_bn_relu.3} parent=5 // pred_fallthru
      _
  $region6: #{conv_bn_relu.3} parent=0 // loop_footer
    %s14 = sadd.s32 1, %s10
  $region7: #{conv_bn_relu.3} parent=0 // loop_footer_branch
    %9 = sbr.rel target = $region3
  $region8: #{conv_bn_relu.3} parent=0 // loop_exit
    _

</llo_original>
